<compile_context>
chip_gen: v5e
topology: v5e:2x2
jax: 0.10.0
libtpu: 0.0.40
codegen_flags: <defaults>
</compile_context>

<pallas_src>
import jax
import jax.numpy as jnp
from jax.experimental import pallas as pl
from jax.experimental.pallas import tpu as pltpu

IN_FEATURES = 2 * 20 * 40 * 3          # 4800
HIDDEN = [512, 256, 128, 64, 32, 32]   # hidden widths, each followed by BN + ReLU
OUT_FEATURES = 2
BN_EPS = 1e-5

K_PAD = 5120     # 4800 zero-padded up to a multiple of 128 (40 * 128)
TK = 1280        # layer-1 reduction tile -> K_PAD // TK = 4 pipelined grid steps
PP_ROWS = 16     # packed small-param rows: 12 gamma/beta + 1 final bias, padded to 16


def _bn_relu(h, gamma, beta):
    # BatchNorm1d (training-mode batch statistics, biased variance) + ReLU.
    mean = jnp.mean(h, axis=0, keepdims=True)
    var = jnp.mean((h - mean) ** 2, axis=0, keepdims=True)
    h = (h - mean) * jax.lax.rsqrt(var + BN_EPS)
    h = h * gamma + beta
    return jnp.maximum(h, 0.0)


def mlp_relation_kernel(x_ref, w1_ref, w2_ref, w3_ref, w4_ref, w5_ref, w6_ref,
                        w7_ref, pp_ref, out_ref, acc_ref):
    """grid = (K_PAD // TK,) over layer-1's reduction dim.

    x_ref  : (B, TK)       k-th K-slice of the zero-padded input
    w1_ref : (TK, 512)     k-th K-slice of the zero-padded layer-1 weights
    w2..w7 : full weights  (constant index_map -> VMEM-resident across the grid)
    pp_ref : (16, 512)     row 2i = gamma_i, row 2i+1 = beta_i, row 12 = final bias
    acc_ref: (B, 512) f32  layer-1 accumulator (VMEM scratch)
    """
    k = pl.program_id(0)

    @pl.when(k == 0)
    def _():
        acc_ref[...] = jnp.zeros_like(acc_ref)

    # Stream layer 1: accumulate this K tile's partial product on the MXU while
    # the pipeline prefetches the next W1 / x tile.
    acc_ref[...] += jnp.dot(x_ref[...], w1_ref[...],
                            preferred_element_type=jnp.float32)

    @pl.when(k == pl.num_programs(0) - 1)
    def _():
        pp = pp_ref[...]
        ws = (w2_ref, w3_ref, w4_ref, w5_ref, w6_ref, w7_ref)

        # Hidden-layer Linear biases are omitted: BN's batch-mean subtraction
        # cancels a constant per-feature bias exactly (training-mode stats).
        h = _bn_relu(acc_ref[...], pp[0, :HIDDEN[0]], pp[1, :HIDDEN[0]])
        for i in range(1, len(HIDDEN)):
            h = jnp.dot(h, ws[i - 1][...], preferred_element_type=jnp.float32)
            h = _bn_relu(h, pp[2 * i, :HIDDEN[i]], pp[2 * i + 1, :HIDDEN[i]])

        h = jnp.dot(h, ws[-1][...], preferred_element_type=jnp.float32)
        h = h + pp[2 * len(HIDDEN), :OUT_FEATURES]     # final-layer bias
        out_ref[...] = jax.nn.sigmoid(h)


def mlp_relation_net(x, packed):
    """x: (B, 4800) f32.  packed: output of pack_params()."""
    B = x.shape[0]
    ws, pp = packed["ws"], packed["pp"]

    # Zero-pad the input features to K_PAD (exact: padded columns contribute 0).
    x_pad = jnp.zeros((B, K_PAD), x.dtype).at[:, :IN_FEATURES].set(x)

    in_specs = [
        pl.BlockSpec((B, TK), lambda k: (0, k)),           # x: stream K tiles
        pl.BlockSpec((TK, HIDDEN[0]), lambda k: (k, 0)),   # W1: stream K tiles
    ]
    # W2..W7 and the packed small params: whole array, constant index map ->
    # DMA'd once and kept resident in VMEM across all K grid steps.
    for w in ws[1:]:
        in_specs.append(pl.BlockSpec(w.shape, lambda k: (0, 0)))
    in_specs.append(pl.BlockSpec(pp.shape, lambda k: (0, 0)))

    # TODO(synk): for many independent B=8 batches per call, add a leading
    # "parallel" batch grid axis (per-batch x/out blocks) to amortize weight DMA
    # and shard across v7x's two TensorCores; BN stats stay per-batch-block.
    return pl.pallas_call(
        mlp_relation_kernel,
        out_shape=jax.ShapeDtypeStruct((B, OUT_FEATURES), jnp.float32),
        grid_spec=pltpu.PrefetchScalarGridSpec(
            num_scalar_prefetch=0,
            grid=(K_PAD // TK,),
            in_specs=in_specs,
            out_specs=pl.BlockSpec((B, OUT_FEATURES), lambda k: (0, 0)),
            scratch_shapes=[pltpu.VMEM((B, HIDDEN[0]), jnp.float32)],
        ),
        compiler_params=pltpu.CompilerParams(
            dimension_semantics=("arbitrary",),   # K is a reduction axis
            vmem_limit_bytes=32 << 20,            # footprint ~7 MiB; valid on v7x (64 MiB)
        ),
    )(x_pad, *ws, pp)


def init_params(key):
    """Deterministic PyTorch-style (uniform +/- 1/sqrt(fan_in)) init."""
    dims = [IN_FEATURES] + HIDDEN + [OUT_FEATURES]
    params = []
    for i in range(len(dims) - 1):
        fan_in, fan_out = dims[i], dims[i + 1]
        key, k_w, k_b = jax.random.split(key, 3)
        bound = 1.0 / (fan_in ** 0.5)
        w = jax.random.uniform(k_w, (fan_in, fan_out), jnp.float32, -bound, bound)
        b = jax.random.uniform(k_b, (1, fan_out), jnp.float32, -bound, bound)
        layer = [w, b]
        if i < len(dims) - 2:   # hidden layers have BatchNorm affine params
            layer.append(jnp.ones((1, fan_out), jnp.float32))    # gamma
            layer.append(jnp.zeros((1, fan_out), jnp.float32))   # beta
        params.append(layer)
    return params


def pack_params(params):
    """One-time parameter prep for the kernel.

    - W1 is zero-padded along its input dim to K_PAD.
    - All small per-feature vectors (BN gamma/beta for the 6 hidden layers and
      the final Linear bias) are packed into a single (16, 512) f32 array.
    - Hidden-layer Linear biases are dropped (cancelled exactly by BatchNorm's
      batch-mean subtraction).
    """
    w1 = params[0][0]
    w1p = jnp.zeros((K_PAD, HIDDEN[0]), w1.dtype).at[:IN_FEATURES, :].set(w1)
    ws = [w1p] + [params[i][0] for i in range(1, len(params))]

    pp = jnp.zeros((PP_ROWS, HIDDEN[0]), jnp.float32)
    for i, width in enumerate(HIDDEN):
        gamma, beta = params[i][2], params[i][3]
        pp = pp.at[2 * i, :width].set(gamma.reshape(-1))
        pp = pp.at[2 * i + 1, :width].set(beta.reshape(-1))
    pp = pp.at[2 * len(HIDDEN), :OUT_FEATURES].set(params[-1][1].reshape(-1))
    return {"ws": ws, "pp": pp}


def reference_forward(x, params):
    """Pure-JAX reference with the exact PyTorch-module semantics (incl. biases)."""
    h = x
    for i, layer in enumerate(params):
        w, b = layer[0], layer[1]
        h = h @ w + b
        if i < len(params) - 1:
            gamma, beta = layer[2], layer[3]
            h = _bn_relu(h, gamma, beta)
    return jax.nn.sigmoid(h)


if __name__ == "__main__":
    key = jax.random.PRNGKey(0)
    key, k_x = jax.random.split(key)

    B = 8  # small batch; BatchNorm1d needs B > 1 in training mode
    x = jax.random.normal(k_x, (B, IN_FEATURES), dtype=jnp.float32)
    params = init_params(key)
    packed = pack_params(params)

    out = mlp_relation_net(x, packed)
    out = jax.block_until_ready(out)

    ref = reference_forward(x, params)
    assert out.shape == (B, OUT_FEATURES)
    assert jnp.allclose(out, ref, atol=1e-4, rtol=1e-4), "mismatch vs JAX reference"

    print("KERNEL_OK")
</pallas_src>

<mosaic_0001>
module attributes {stable_mosaic.version = 11 : i64} {
  func.func @mlp_relation_kernel(%arg0: i32, %arg1: memref<8x1280xf32, #tpu.memory_space<vmem>>, %arg2: memref<1280x512xf32, #tpu.memory_space<vmem>>, %arg3: memref<512x256xf32, #tpu.memory_space<vmem>>, %arg4: memref<256x128xf32, #tpu.memory_space<vmem>>, %arg5: memref<128x64xf32, #tpu.memory_space<vmem>>, %arg6: memref<64x32xf32, #tpu.memory_space<vmem>>, %arg7: memref<32x32xf32, #tpu.memory_space<vmem>>, %arg8: memref<32x2xf32, #tpu.memory_space<vmem>>, %arg9: memref<16x512xf32, #tpu.memory_space<vmem>>, %arg10: memref<8x2xf32, #tpu.memory_space<vmem>>, %arg11: memref<8x512xf32, #tpu.memory_space<vmem>>) attributes {dimension_semantics = [#tpu.dimension_semantics<arbitrary>], iteration_bounds = array<i64: 4>, scalar_prefetch = 0 : i64, scratch_operands = 1 : i64, tpu.core_type = #tpu.core_type<tc>, window_params = [{transform_indices = @transform_0, window_bounds = array<i64: 8, 1280>}, {transform_indices = @transform_1, window_bounds = array<i64: 1280, 512>}, {pipeline_mode = #tpu.pipeline_mode<synchronous>, transform_indices = @transform_2, window_bounds = array<i64: 512, 256>}, {pipeline_mode = #tpu.pipeline_mode<synchronous>, transform_indices = @transform_3, window_bounds = array<i64: 256, 128>}, {pipeline_mode = #tpu.pipeline_mode<synchronous>, transform_indices = @transform_4, window_bounds = array<i64: 128, 64>}, {pipeline_mode = #tpu.pipeline_mode<synchronous>, transform_indices = @transform_5, window_bounds = array<i64: 64, 32>}, {pipeline_mode = #tpu.pipeline_mode<synchronous>, transform_indices = @transform_6, window_bounds = array<i64: 32, 32>}, {pipeline_mode = #tpu.pipeline_mode<synchronous>, transform_indices = @transform_7, window_bounds = array<i64: 32, 2>}, {pipeline_mode = #tpu.pipeline_mode<synchronous>, transform_indices = @transform_8, window_bounds = array<i64: 16, 512>}, {pipeline_mode = #tpu.pipeline_mode<synchronous>, transform_indices = @transform_9, window_bounds = array<i64: 8, 2>}]} {
    %c0_i32 = arith.constant 0 : i32
    %0 = arith.cmpi eq, %arg0, %c0_i32 : i32
    %1 = arith.extui %0 : i1 to i32
    %c0_i32_0 = arith.constant 0 : i32
    %2 = arith.cmpi ne, %1, %c0_i32_0 : i32
    scf.if %2 {
      %cst_9 = arith.constant 0.000000e+00 : f32
      %12 = vector.broadcast %cst_9 : f32 to vector<8x512xf32>
      %c0_10 = arith.constant 0 : index
      %c0_11 = arith.constant 0 : index
      %13 = vector.load %arg11[%c0_10, %c0_11] : memref<8x512xf32, #tpu.memory_space<vmem>>, vector<8x512xf32>
      tpu.vector_store %arg11[%c0_10, %c0_11], %12 {strides = array<i32>} : memref<8x512xf32, #tpu.memory_space<vmem>>, vector<8x512xf32>,
    } else {
    }
    %c0 = arith.constant 0 : index
    %c0_1 = arith.constant 0 : index
    %3 = vector.load %arg11[%c0, %c0_1] : memref<8x512xf32, #tpu.memory_space<vmem>>, vector<8x512xf32>
    %c0_2 = arith.constant 0 : index
    %c0_3 = arith.constant 0 : index
    %4 = vector.load %arg1[%c0_2, %c0_3] : memref<8x1280xf32, #tpu.memory_space<vmem>>, vector<8x1280xf32>
    %c0_4 = arith.constant 0 : index
    %c0_5 = arith.constant 0 : index
    %5 = vector.load %arg2[%c0_4, %c0_5] : memref<1280x512xf32, #tpu.memory_space<vmem>>, vector<1280x512xf32>
    %cst = arith.constant dense<0.000000e+00> : vector<8x512xf32>
    %6 = tpu.matmul %4, %5, %cst {dimension_numbers = #tpu.dot_dimension_numbers<[1], [0], [0], [1], [0, 0, 1, 1], [], []>} : vector<8x1280xf32>, vector<1280x512xf32>, vector<8x512xf32> -> vector<8x512xf32>
    %7 = arith.addf %3, %6 : vector<8x512xf32>
    %c0_6 = arith.constant 0 : index
    %c0_7 = arith.constant 0 : index
    %8 = vector.load %arg11[%c0_6, %c0_7] : memref<8x512xf32, #tpu.memory_space<vmem>>, vector<8x512xf32>
    tpu.vector_store %arg11[%c0_6, %c0_7], %7 {strides = array<i32>} : memref<8x512xf32, #tpu.memory_space<vmem>>, vector<8x512xf32>,
    %c3_i32 = arith.constant 3 : i32
    %9 = arith.cmpi eq, %arg0, %c3_i32 : i32
    %10 = arith.extui %9 : i1 to i32
    %c0_i32_8 = arith.constant 0 : i32
    %11 = arith.cmpi ne, %10, %c0_i32_8 : i32
    scf.if %11 {
      %c0_9 = arith.constant 0 : index
      %c0_10 = arith.constant 0 : index
      %12 = vector.load %arg9[%c0_9, %c0_10] : memref<16x512xf32, #tpu.memory_space<vmem>>, vector<16x512xf32>
      %c0_11 = arith.constant 0 : index
      %c0_12 = arith.constant 0 : index
      %13 = vector.load %arg11[%c0_11, %c0_12] : memref<8x512xf32, #tpu.memory_space<vmem>>, vector<8x512xf32>
      %14 = vector.extract_strided_slice %12 {offsets = [0, 0], sizes = [1, 512], strides = [1, 1]} : vector<16x512xf32> to vector<1x512xf32>
      %15 = vector.shape_cast %14 : vector<1x512xf32> to vector<512xf32>
      %16 = vector.extract_strided_slice %12 {offsets = [1, 0], sizes = [1, 512], strides = [1, 1]} : vector<16x512xf32> to vector<1x512xf32>
      %17 = vector.shape_cast %16 : vector<1x512xf32> to vector<512xf32>
      %cst_13 = arith.constant dense<0.000000e+00> : vector<512xf32>
      %18 = vector.multi_reduction <add>, %13, %cst_13 [0] : vector<8x512xf32> to vector<512xf32>
      %19 = vector.shape_cast %18 : vector<512xf32> to vector<1x512xf32>
      %cst_14 = arith.constant 8.000000e+00 : f32
      %20 = vector.broadcast %cst_14 : f32 to vector<1x512xf32>
      %21 = arith.divf %19, %20 : vector<1x512xf32>
      %22 = vector.broadcast %21 : vector<1x512xf32> to vector<8x512xf32>
      %23 = arith.subf %13, %22 : vector<8x512xf32>
      %24 = arith.mulf %23, %23 : vector<8x512xf32>
      %cst_15 = arith.constant dense<0.000000e+00> : vector<512xf32>
      %25 = vector.multi_reduction <add>, %24, %cst_15 [0] : vector<8x512xf32> to vector<512xf32>
      %26 = vector.shape_cast %25 : vector<512xf32> to vector<1x512xf32>
      %cst_16 = arith.constant 8.000000e+00 : f32
      %27 = vector.broadcast %cst_16 : f32 to vector<1x512xf32>
      %28 = arith.divf %26, %27 : vector<1x512xf32>
      %29 = vector.broadcast %21 : vector<1x512xf32> to vector<8x512xf32>
      %30 = arith.subf %13, %29 : vector<8x512xf32>
      %cst_17 = arith.constant 9.99999974E-6 : f32
      %31 = vector.broadcast %cst_17 : f32 to vector<1x512xf32>
      %32 = arith.addf %28, %31 : vector<1x512xf32>
      %33 = math.rsqrt %32 : vector<1x512xf32>
      %34 = vector.broadcast %33 : vector<1x512xf32> to vector<8x512xf32>
      %35 = arith.mulf %30, %34 : vector<8x512xf32>
      %36 = vector.shape_cast %15 : vector<512xf32> to vector<1x512xf32>
      %37 = vector.broadcast %36 : vector<1x512xf32> to vector<8x512xf32>
      %38 = arith.mulf %35, %37 : vector<8x512xf32>
      %39 = vector.shape_cast %17 : vector<512xf32> to vector<1x512xf32>
      %40 = vector.broadcast %39 : vector<1x512xf32> to vector<8x512xf32>
      %41 = arith.addf %38, %40 : vector<8x512xf32>
      %cst_18 = arith.constant 0.000000e+00 : f32
      %42 = vector.broadcast %cst_18 : f32 to vector<8x512xf32>
      %43 = arith.maximumf %41, %42 : vector<8x512xf32>
      %c0_19 = arith.constant 0 : index
      %c0_20 = arith.constant 0 : index
      %44 = vector.load %arg3[%c0_19, %c0_20] : memref<512x256xf32, #tpu.memory_space<vmem>>, vector<512x256xf32>
      %cst_21 = arith.constant dense<0.000000e+00> : vector<8x256xf32>
      %45 = tpu.matmul %43, %44, %cst_21 {dimension_numbers = #tpu.dot_dimension_numbers<[1], [0], [0], [1], [0, 0, 1, 1], [], []>} : vector<8x512xf32>, vector<512x256xf32>, vector<8x256xf32> -> vector<8x256xf32>
      %46 = vector.extract_strided_slice %12 {offsets = [2, 0], sizes = [1, 256], strides = [1, 1]} : vector<16x512xf32> to vector<1x256xf32>
      %47 = vector.shape_cast %46 : vector<1x256xf32> to vector<256xf32>
      %48 = vector.extract_strided_slice %12 {offsets = [3, 0], sizes = [1, 256], strides = [1, 1]} : vector<16x512xf32> to vector<1x256xf32>
      %49 = vector.shape_cast %48 : vector<1x256xf32> to vector<256xf32>
      %cst_22 = arith.constant dense<0.000000e+00> : vector<256xf32>
      %50 = vector.multi_reduction <add>, %45, %cst_22 [0] : vector<8x256xf32> to vector<256xf32>
      %51 = vector.shape_cast %50 : vector<256xf32> to vector<1x256xf32>
      %cst_23 = arith.constant 8.000000e+00 : f32
      %52 = vector.broadcast %cst_23 : f32 to vector<1x256xf32>
      %53 = arith.divf %51, %52 : vector<1x256xf32>
      %54 = vector.broadcast %53 : vector<1x256xf32> to vector<8x256xf32>
      %55 = arith.subf %45, %54 : vector<8x256xf32>
      %56 = arith.mulf %55, %55 : vector<8x256xf32>
      %cst_24 = arith.constant dense<0.000000e+00> : vector<256xf32>
      %57 = vector.multi_reduction <add>, %56, %cst_24 [0] : vector<8x256xf32> to vector<256xf32>
      %58 = vector.shape_cast %57 : vector<256xf32> to vector<1x256xf32>
      %cst_25 = arith.constant 8.000000e+00 : f32
      %59 = vector.broadcast %cst_25 : f32 to vector<1x256xf32>
      %60 = arith.divf %58, %59 : vector<1x256xf32>
      %61 = vector.broadcast %53 : vector<1x256xf32> to vector<8x256xf32>
      %62 = arith.subf %45, %61 : vector<8x256xf32>
      %cst_26 = arith.constant 9.99999974E-6 : f32
      %63 = vector.broadcast %cst_26 : f32 to vector<1x256xf32>
      %64 = arith.addf %60, %63 : vector<1x256xf32>
      %65 = math.rsqrt %64 : vector<1x256xf32>
      %66 = vector.broadcast %65 : vector<1x256xf32> to vector<8x256xf32>
      %67 = arith.mulf %62, %66 : vector<8x256xf32>
      %68 = vector.shape_cast %47 : vector<256xf32> to vector<1x256xf32>
      %69 = vector.broadcast %68 : vector<1x256xf32> to vector<8x256xf32>
      %70 = arith.mulf %67, %69 : vector<8x256xf32>
      %71 = vector.shape_cast %49 : vector<256xf32> to vector<1x256xf32>
      %72 = vector.broadcast %71 : vector<1x256xf32> to vector<8x256xf32>
      %73 = arith.addf %70, %72 : vector<8x256xf32>
      %cst_27 = arith.constant 0.000000e+00 : f32
      %74 = vector.broadcast %cst_27 : f32 to vector<8x256xf32>
      %75 = arith.maximumf %73, %74 : vector<8x256xf32>
      %c0_28 = arith.constant 0 : index
      %c0_29 = arith.constant 0 : index
      %76 = vector.load %arg4[%c0_28, %c0_29] : memref<256x128xf32, #tpu.memory_space<vmem>>, vector<256x128xf32>
      %cst_30 = arith.constant dense<0.000000e+00> : vector<8x128xf32>
      %77 = tpu.matmul %75, %76, %cst_30 {dimension_numbers = #tpu.dot_dimension_numbers<[1], [0], [0], [1], [0, 0, 1, 1], [], []>} : vector<8x256xf32>, vector<256x128xf32>, vector<8x128xf32> -> vector<8x128xf32>
      %78 = vector.extract_strided_slice %12 {offsets = [4, 0], sizes = [1, 128], strides = [1, 1]} : vector<16x512xf32> to vector<1x128xf32>
      %79 = vector.shape_cast %78 : vector<1x128xf32> to vector<128xf32>
      %80 = vector.extract_strided_slice %12 {offsets = [5, 0], sizes = [1, 128], strides = [1, 1]} : vector<16x512xf32> to vector<1x128xf32>
      %81 = vector.shape_cast %80 : vector<1x128xf32> to vector<128xf32>
      %cst_31 = arith.constant dense<0.000000e+00> : vector<128xf32>
      %82 = vector.multi_reduction <add>, %77, %cst_31 [0] : vector<8x128xf32> to vector<128xf32>
      %83 = vector.shape_cast %82 : vector<128xf32> to vector<1x128xf32>
      %cst_32 = arith.constant 8.000000e+00 : f32
      %84 = vector.broadcast %cst_32 : f32 to vector<1x128xf32>
      %85 = arith.divf %83, %84 : vector<1x128xf32>
      %86 = vector.broadcast %85 : vector<1x128xf32> to vector<8x128xf32>
      %87 = arith.subf %77, %86 : vector<8x128xf32>
      %88 = arith.mulf %87, %87 : vector<8x128xf32>
      %cst_33 = arith.constant dense<0.000000e+00> : vector<128xf32>
      %89 = vector.multi_reduction <add>, %88, %cst_33 [0] : vector<8x128xf32> to vector<128xf32>
      %90 = vector.shape_cast %89 : vector<128xf32> to vector<1x128xf32>
      %cst_34 = arith.constant 8.000000e+00 : f32
      %91 = vector.broadcast %cst_34 : f32 to vector<1x128xf32>
      %92 = arith.divf %90, %91 : vector<1x128xf32>
      %93 = vector.broadcast %85 : vector<1x128xf32> to vector<8x128xf32>
      %94 = arith.subf %77, %93 : vector<8x128xf32>
      %cst_35 = arith.constant 9.99999974E-6 : f32
      %95 = vector.broadcast %cst_35 : f32 to vector<1x128xf32>
      %96 = arith.addf %92, %95 : vector<1x128xf32>
      %97 = math.rsqrt %96 : vector<1x128xf32>
      %98 = vector.broadcast %97 : vector<1x128xf32> to vector<8x128xf32>
      %99 = arith.mulf %94, %98 : vector<8x128xf32>
      %100 = vector.shape_cast %79 : vector<128xf32> to vector<1x128xf32>
      %101 = vector.broadcast %100 : vector<1x128xf32> to vector<8x128xf32>
      %102 = arith.mulf %99, %101 : vector<8x128xf32>
      %103 = vector.shape_cast %81 : vector<128xf32> to vector<1x128xf32>
      %104 = vector.broadcast %103 : vector<1x128xf32> to vector<8x128xf32>
      %105 = arith.addf %102, %104 : vector<8x128xf32>
      %cst_36 = arith.constant 0.000000e+00 : f32
      %106 = vector.broadcast %cst_36 : f32 to vector<8x128xf32>
      %107 = arith.maximumf %105, %106 : vector<8x128xf32>
      %c0_37 = arith.constant 0 : index
      %c0_38 = arith.constant 0 : index
      %108 = vector.load %arg5[%c0_37, %c0_38] : memref<128x64xf32, #tpu.memory_space<vmem>>, vector<128x64xf32>
      %cst_39 = arith.constant dense<0.000000e+00> : vector<8x64xf32>
      %109 = tpu.matmul %107, %108, %cst_39 {dimension_numbers = #tpu.dot_dimension_numbers<[1], [0], [0], [1], [0, 0, 1, 1], [], []>} : vector<8x128xf32>, vector<128x64xf32>, vector<8x64xf32> -> vector<8x64xf32>
      %110 = vector.extract_strided_slice %12 {offsets = [6, 0], sizes = [1, 64], strides = [1, 1]} : vector<16x512xf32> to vector<1x64xf32>
      %111 = vector.shape_cast %110 : vector<1x64xf32> to vector<64xf32>
      %112 = vector.extract_strided_slice %12 {offsets = [7, 0], sizes = [1, 64], strides = [1, 1]} : vector<16x512xf32> to vector<1x64xf32>
      %113 = vector.shape_cast %112 : vector<1x64xf32> to vector<64xf32>
      %cst_40 = arith.constant dense<0.000000e+00> : vector<64xf32>
      %114 = vector.multi_reduction <add>, %109, %cst_40 [0] : vector<8x64xf32> to vector<64xf32>
      %115 = vector.shape_cast %114 : vector<64xf32> to vector<1x64xf32>
      %cst_41 = arith.constant 8.000000e+00 : f32
      %116 = vector.broadcast %cst_41 : f32 to vector<1x64xf32>
      %117 = arith.divf %115, %116 : vector<1x64xf32>
      %118 = vector.broadcast %117 : vector<1x64xf32> to vector<8x64xf32>
      %119 = arith.subf %109, %118 : vector<8x64xf32>
      %120 = arith.mulf %119, %119 : vector<8x64xf32>
      %cst_42 = arith.constant dense<0.000000e+00> : vector<64xf32>
      %121 = vector.multi_reduction <add>, %120, %cst_42 [0] : vector<8x64xf32> to vector<64xf32>
      %122 = vector.shape_cast %121 : vector<64xf32> to vector<1x64xf32>
      %cst_43 = arith.constant 8.000000e+00 : f32
      %123 = vector.broadcast %cst_43 : f32 to vector<1x64xf32>
      %124 = arith.divf %122, %123 : vector<1x64xf32>
      %125 = vector.broadcast %117 : vector<1x64xf32> to vector<8x64xf32>
      %126 = arith.subf %109, %125 : vector<8x64xf32>
      %cst_44 = arith.constant 9.99999974E-6 : f32
      %127 = vector.broadcast %cst_44 : f32 to vector<1x64xf32>
      %128 = arith.addf %124, %127 : vector<1x64xf32>
      %129 = math.rsqrt %128 : vector<1x64xf32>
      %130 = vector.broadcast %129 : vector<1x64xf32> to vector<8x64xf32>
      %131 = arith.mulf %126, %130 : vector<8x64xf32>
      %132 = vector.shape_cast %111 : vector<64xf32> to vector<1x64xf32>
      %133 = vector.broadcast %132 : vector<1x64xf32> to vector<8x64xf32>
      %134 = arith.mulf %131, %133 : vector<8x64xf32>
      %135 = vector.shape_cast %113 : vector<64xf32> to vector<1x64xf32>
      %136 = vector.broadcast %135 : vector<1x64xf32> to vector<8x64xf32>
      %137 = arith.addf %134, %136 : vector<8x64xf32>
      %cst_45 = arith.constant 0.000000e+00 : f32
      %138 = vector.broadcast %cst_45 : f32 to vector<8x64xf32>
      %139 = arith.maximumf %137, %138 : vector<8x64xf32>
      %c0_46 = arith.constant 0 : index
      %c0_47 = arith.constant 0 : index
      %140 = vector.load %arg6[%c0_46, %c0_47] : memref<64x32xf32, #tpu.memory_space<vmem>>, vector<64x32xf32>
      %cst_48 = arith.constant dense<0.000000e+00> : vector<8x32xf32>
      %141 = tpu.matmul %139, %140, %cst_48 {dimension_numbers = #tpu.dot_dimension_numbers<[1], [0], [0], [1], [0, 0, 1, 1], [], []>} : vector<8x64xf32>, vector<64x32xf32>, vector<8x32xf32> -> vector<8x32xf32>
      %142 = vector.extract_strided_slice %12 {offsets = [8, 0], sizes = [1, 32], strides = [1, 1]} : vector<16x512xf32> to vector<1x32xf32>
      %143 = vector.shape_cast %142 : vector<1x32xf32> to vector<32xf32>
      %144 = vector.extract_strided_slice %12 {offsets = [9, 0], sizes = [1, 32], strides = [1, 1]} : vector<16x512xf32> to vector<1x32xf32>
      %145 = vector.shape_cast %144 : vector<1x32xf32> to vector<32xf32>
      %cst_49 = arith.constant dense<0.000000e+00> : vector<32xf32>
      %146 = vector.multi_reduction <add>, %141, %cst_49 [0] : vector<8x32xf32> to vector<32xf32>
      %147 = vector.shape_cast %146 : vector<32xf32> to vector<1x32xf32>
      %cst_50 = arith.constant 8.000000e+00 : f32
      %148 = vector.broadcast %cst_50 : f32 to vector<1x32xf32>
      %149 = arith.divf %147, %148 : vector<1x32xf32>
      %150 = vector.broadcast %149 : vector<1x32xf32> to vector<8x32xf32>
      %151 = arith.subf %141, %150 : vector<8x32xf32>
      %152 = arith.mulf %151, %151 : vector<8x32xf32>
      %cst_51 = arith.constant dense<0.000000e+00> : vector<32xf32>
      %153 = vector.multi_reduction <add>, %152, %cst_51 [0] : vector<8x32xf32> to vector<32xf32>
      %154 = vector.shape_cast %153 : vector<32xf32> to vector<1x32xf32>
      %cst_52 = arith.constant 8.000000e+00 : f32
      %155 = vector.broadcast %cst_52 : f32 to vector<1x32xf32>
      %156 = arith.divf %154, %155 : vector<1x32xf32>
      %157 = vector.broadcast %149 : vector<1x32xf32> to vector<8x32xf32>
      %158 = arith.subf %141, %157 : vector<8x32xf32>
      %cst_53 = arith.constant 9.99999974E-6 : f32
      %159 = vector.broadcast %cst_53 : f32 to vector<1x32xf32>
      %160 = arith.addf %156, %159 : vector<1x32xf32>
      %161 = math.rsqrt %160 : vector<1x32xf32>
      %162 = vector.broadcast %161 : vector<1x32xf32> to vector<8x32xf32>
      %163 = arith.mulf %158, %162 : vector<8x32xf32>
      %164 = vector.shape_cast %143 : vector<32xf32> to vector<1x32xf32>
      %165 = vector.broadcast %164 : vector<1x32xf32> to vector<8x32xf32>
      %166 = arith.mulf %163, %165 : vector<8x32xf32>
      %167 = vector.shape_cast %145 : vector<32xf32> to vector<1x32xf32>
      %168 = vector.broadcast %167 : vector<1x32xf32> to vector<8x32xf32>
      %169 = arith.addf %166, %168 : vector<8x32xf32>
      %cst_54 = arith.constant 0.000000e+00 : f32
      %170 = vector.broadcast %cst_54 : f32 to vector<8x32xf32>
      %171 = arith.maximumf %169, %170 : vector<8x32xf32>
      %c0_55 = arith.constant 0 : index
      %c0_56 = arith.constant 0 : index
      %172 = vector.load %arg7[%c0_55, %c0_56] : memref<32x32xf32, #tpu.memory_space<vmem>>, vector<32x32xf32>
      %cst_57 = arith.constant dense<0.000000e+00> : vector<8x32xf32>
      %173 = tpu.matmul %171, %172, %cst_57 {dimension_numbers = #tpu.dot_dimension_numbers<[1], [0], [0], [1], [0, 0, 1, 1], [], []>} : vector<8x32xf32>, vector<32x32xf32>, vector<8x32xf32> -> vector<8x32xf32>
      %174 = vector.extract_strided_slice %12 {offsets = [10, 0], sizes = [1, 32], strides = [1, 1]} : vector<16x512xf32> to vector<1x32xf32>
      %175 = vector.shape_cast %174 : vector<1x32xf32> to vector<32xf32>
      %176 = vector.extract_strided_slice %12 {offsets = [11, 0], sizes = [1, 32], strides = [1, 1]} : vector<16x512xf32> to vector<1x32xf32>
      %177 = vector.shape_cast %176 : vector<1x32xf32> to vector<32xf32>
      %cst_58 = arith.constant dense<0.000000e+00> : vector<32xf32>
      %178 = vector.multi_reduction <add>, %173, %cst_58 [0] : vector<8x32xf32> to vector<32xf32>
      %179 = vector.shape_cast %178 : vector<32xf32> to vector<1x32xf32>
      %cst_59 = arith.constant 8.000000e+00 : f32
      %180 = vector.broadcast %cst_59 : f32 to vector<1x32xf32>
      %181 = arith.divf %179, %180 : vector<1x32xf32>
      %182 = vector.broadcast %181 : vector<1x32xf32> to vector<8x32xf32>
      %183 = arith.subf %173, %182 : vector<8x32xf32>
      %184 = arith.mulf %183, %183 : vector<8x32xf32>
      %cst_60 = arith.constant dense<0.000000e+00> : vector<32xf32>
      %185 = vector.multi_reduction <add>, %184, %cst_60 [0] : vector<8x32xf32> to vector<32xf32>
      %186 = vector.shape_cast %185 : vector<32xf32> to vector<1x32xf32>
      %cst_61 = arith.constant 8.000000e+00 : f32
      %187 = vector.broadcast %cst_61 : f32 to vector<1x32xf32>
      %188 = arith.divf %186, %187 : vector<1x32xf32>
      %189 = vector.broadcast %181 : vector<1x32xf32> to vector<8x32xf32>
      %190 = arith.subf %173, %189 : vector<8x32xf32>
      %cst_62 = arith.constant 9.99999974E-6 : f32
      %191 = vector.broadcast %cst_62 : f32 to vector<1x32xf32>
      %192 = arith.addf %188, %191 : vector<1x32xf32>
      %193 = math.rsqrt %192 : vector<1x32xf32>
      %194 = vector.broadcast %193 : vector<1x32xf32> to vector<8x32xf32>
      %195 = arith.mulf %190, %194 : vector<8x32xf32>
      %196 = vector.shape_cast %175 : vector<32xf32> to vector<1x32xf32>
      %197 = vector.broadcast %196 : vector<1x32xf32> to vector<8x32xf32>
      %198 = arith.mulf %195, %197 : vector<8x32xf32>
      %199 = vector.shape_cast %177 : vector<32xf32> to vector<1x32xf32>
      %200 = vector.broadcast %199 : vector<1x32xf32> to vector<8x32xf32>
      %201 = arith.addf %198, %200 : vector<8x32xf32>
      %cst_63 = arith.constant 0.000000e+00 : f32
      %202 = vector.broadcast %cst_63 : f32 to vector<8x32xf32>
      %203 = arith.maximumf %201, %202 : vector<8x32xf32>
      %c0_64 = arith.constant 0 : index
      %c0_65 = arith.constant 0 : index
      %204 = vector.load %arg8[%c0_64, %c0_65] : memref<32x2xf32, #tpu.memory_space<vmem>>, vector<32x2xf32>
      %cst_66 = arith.constant dense<0.000000e+00> : vector<8x2xf32>
      %205 = tpu.matmul %203, %204, %cst_66 {dimension_numbers = #tpu.dot_dimension_numbers<[1], [0], [0], [1], [0, 0, 1, 1], [], []>} : vector<8x32xf32>, vector<32x2xf32>, vector<8x2xf32> -> vector<8x2xf32>
      %206 = vector.extract_strided_slice %12 {offsets = [12, 0], sizes = [1, 2], strides = [1, 1]} : vector<16x512xf32> to vector<1x2xf32>
      %207 = vector.shape_cast %206 : vector<1x2xf32> to vector<2xf32>
      %208 = vector.shape_cast %207 : vector<2xf32> to vector<1x2xf32>
      %209 = vector.broadcast %208 : vector<1x2xf32> to vector<8x2xf32>
      %210 = arith.addf %205, %209 : vector<8x2xf32>
      %211 = arith.negf %210 : vector<8x2xf32>
      %212 = math.exp %211 : vector<8x2xf32>
      %cst_67 = arith.constant 1.000000e+00 : f32
      %213 = vector.broadcast %cst_67 : f32 to vector<8x2xf32>
      %214 = arith.addf %213, %212 : vector<8x2xf32>
      %215 = arith.divf %213, %214 : vector<8x2xf32>
      %c0_68 = arith.constant 0 : index
      %c0_69 = arith.constant 0 : index
      %216 = vector.load %arg10[%c0_68, %c0_69] : memref<8x2xf32, #tpu.memory_space<vmem>>, vector<8x2xf32>
      tpu.vector_store %arg10[%c0_68, %c0_69], %215 {strides = array<i32>} : memref<8x2xf32, #tpu.memory_space<vmem>>, vector<8x2xf32>,
    } else {
    }
    return
  }
  func.func @transform_0(%arg0: i32) -> (i32, i32) {
    %c0_i32 = arith.constant 0 : i32
    %c0_i32_0 = arith.constant 0 : i32
    return %c0_i32, %arg0 : i32, i32
  }
  func.func @transform_1(%arg0: i32) -> (i32, i32) {
    %c0_i32 = arith.constant 0 : i32
    %c0_i32_0 = arith.constant 0 : i32
    return %arg0, %c0_i32 : i32, i32
  }
  func.func @transform_2(%arg0: i32) -> (i32, i32) {
    %c0_i32 = arith.constant 0 : i32
    %c0_i32_0 = arith.constant 0 : i32
    %c0_i32_1 = arith.constant 0 : i32
    return %c0_i32, %c0_i32_0 : i32, i32
  }
  func.func @transform_3(%arg0: i32) -> (i32, i32) {
    %c0_i32 = arith.constant 0 : i32
    %c0_i32_0 = arith.constant 0 : i32
    %c0_i32_1 = arith.constant 0 : i32
    return %c0_i32, %c0_i32_0 : i32, i32
  }
  func.func @transform_4(%arg0: i32) -> (i32, i32) {
    %c0_i32 = arith.constant 0 : i32
    %c0_i32_0 = arith.constant 0 : i32
    %c0_i32_1 = arith.constant 0 : i32
    return %c0_i32, %c0_i32_0 : i32, i32
  }
  func.func @transform_5(%arg0: i32) -> (i32, i32) {
    %c0_i32 = arith.constant 0 : i32
    %c0_i32_0 = arith.constant 0 : i32
    %c0_i32_1 = arith.constant 0 : i32
    return %c0_i32, %c0_i32_0 : i32, i32
  }
  func.func @transform_6(%arg0: i32) -> (i32, i32) {
    %c0_i32 = arith.constant 0 : i32
    %c0_i32_0 = arith.constant 0 : i32
    %c0_i32_1 = arith.constant 0 : i32
    return %c0_i32, %c0_i32_0 : i32, i32
  }
  func.func @transform_7(%arg0: i32) -> (i32, i32) {
    %c0_i32 = arith.constant 0 : i32
    %c0_i32_0 = arith.constant 0 : i32
    %c0_i32_1 = arith.constant 0 : i32
    return %c0_i32, %c0_i32_0 : i32, i32
  }
  func.func @transform_8(%arg0: i32) -> (i32, i32) {
    %c0_i32 = arith.constant 0 : i32
    %c0_i32_0 = arith.constant 0 : i32
    %c0_i32_1 = arith.constant 0 : i32
    return %c0_i32, %c0_i32_0 : i32, i32
  }
  func.func @transform_9(%arg0: i32) -> (i32, i32) {
    %c0_i32 = arith.constant 0 : i32
    %c0_i32_0 = arith.constant 0 : i32
    %c0_i32_1 = arith.constant 0 : i32
    return %c0_i32, %c0_i32_0 : i32, i32
  }
}

</mosaic_0001>

<llo_original>
// kernel: tpu_custom_call.1
$region0: #{tpu_custom_call.1}
  #allocation0 [shape = 'u32[]', space=smem, size = 0x4, offset = 0x4, fixed_abs, tag = 'smem constant byte address 0x4 - core index']
  #allocation1 [shape = 'u32[72,128]{1,0:T(1,128)}', space=vmem, size = 0x9000, scoped, tag = 'internal scratch']
  #allocation2 [shape = 'f32[8,512]{1,0:T(8,128)}', space=vmem, size = 0x4000, scoped, tag = 'scratch operand']
  %s0 = inlined_call_operand.hbm [shape: f32[8,5120], index: 0, kind: input, shape index: {}]
  %s1 = inlined_call_operand.hbm [shape: f32[5120,512], index: 1, kind: input, shape index: {}]
  %s2 = inlined_call_operand.hbm [shape: f32[512,256], index: 2, kind: input, shape index: {}]
  %s3 = inlined_call_operand.hbm [shape: f32[256,128], index: 3, kind: input, shape index: {}]
  %s4 = inlined_call_operand.vmem [shape: f32[128,64], index: 4, kind: input, shape index: {}]
  %s5 = inlined_call_operand.vmem [shape: f32[64,32], index: 5, kind: input, shape index: {}]
  %s6 = inlined_call_operand.hbm [shape: f32[32,32], index: 6, kind: input, shape index: {}]
  %s7 = inlined_call_operand.vmem [shape: f32[32,2], index: 7, kind: input, shape index: {}]
  %s8 = inlined_call_operand.hbm [shape: f32[16,512], index: 8, kind: input, shape index: {}]
  %s9 = inlined_call_operand.vmem [shape: f32[8,2], index: 9, kind: output, shape index: {}]
  %s10 = sld [smem:[#allocation0]]
  $region101: #{tpu_custom_call.1} parent=0
    _
  %s12 = ssub.s32 1, %s10
  %s13 = scalar_select 0, %s12, %s10
  $region1: #{tpu_custom_call.1} parent=0
    #allocation3 [shape = 'u8[81920]{0}', space=vmem, size = 0x14000, scoped, tag = 'input window, operand 0']
    #allocation4 [shape = 's32[2]{0}', space=sflag, size = 0x8, scoped, tag = 'scoped memory for tpu_custom_call.1']
    #allocation5 [shape = 'u8[5242880]{0}', space=vmem, size = 0x500000, scoped, tag = 'input window, operand 1']
    #allocation6 [shape = 's32[2]{0}', space=sflag, size = 0x8, scoped, tag = 'scoped memory for tpu_custom_call.1']
    #allocation7 [shape = 'u8[524288]{0}', space=vmem, size = 0x80000, scoped, tag = 'input window, operand 2, single buffered']
    #allocation8 [shape = 'u8[131072]{0}', space=vmem, size = 0x20000, scoped, tag = 'input window, operand 3, single buffered']
    #allocation9 [shape = 's32[1]{0}', space=sflag, size = 0x4, scoped, tag = 'scoped memory for tpu_custom_call.1']
    #allocation10 [shape = 'u8[16384]{0}', space=vmem, size = 0x4000, scoped, tag = 'input window, operand 6, single buffered']
    #allocation11 [shape = 'u8[32768]{0}', space=vmem, size = 0x8000, scoped, tag = 'input window, operand 8, single buffered']
    #allocation12 [shape = 's32[1]{0}', space=sflag, size = 0x4, scoped, tag = 'scoped memory for tpu_custom_call.1']
    %14 = vsyncpa [#allocation4], 0
    %s15 = scalar_lea.sflag [#allocation4], 1
    %16 = vsyncpa %s15, 0
    %17 = vsyncpa [#allocation6], 0
    %s18 = scalar_lea.sflag [#allocation6], 1
    %19 = vsyncpa %s18, 0
    %20 = vsyncpa [#allocation9], 0
    %21 = vsyncpa [#allocation12], 0
    loop: start=0, step=1, limit=6
    $region2: #{tpu_custom_call.1} parent=1 // loop_pre_header
      _
    $region3: #{tpu_custom_call.1} parent=1 // loop_header
      %s23 = sphi 0, %s27
      %p24 = scmp.ge.s32.totalorder %s23, 6
      %s33 = sphi 0, %s35
      %s36 = sphi 0, %s33
      %s37 = sphi 0, %s36
      %s53 = sphi 0, %s37
      %s59 = sphi 0, %s61
      %s62 = sphi 0, %s59
      %s63 = sphi 0, %s62
      %s79 = sphi 0, %s63
      %s83 = sphi 0, %s83
      %s85 = sphi 0, %s83
      %s86 = sphi 0, %s85
      %s100 = sphi 0, %s86
      %s104 = sphi 0, %s104
      %s106 = sphi 0, %s104
      %s107 = sphi 0, %s106
      %s121 = sphi 0, %s107
      %s125 = sphi 0, %s125
      %s127 = sphi 0, %s125
      %s128 = sphi 0, %s127
      %s142 = sphi 0, %s128
      %s146 = sphi 0, %s146
      %s148 = sphi 0, %s146
      %s149 = sphi 0, %s148
      %s163 = sphi 0, %s149
      %s167 = sphi 0, %s167
      %s169 = sphi 0, %s167
      %s170 = sphi 0, %s169
      %s184 = sphi 0, %s170
      %s188 = sphi 0, %s188
      %s190 = sphi 0, %s188
      %s191 = sphi 0, %s190
      %s205 = sphi 0, %s191
      %s209 = sphi 0, %s209
      %s211 = sphi 0, %s209
      %s212 = sphi 0, %s211
      %s226 = sphi 0, %s212
      %s230 = sphi 0, %s230
      %s232 = sphi 0, %s230
      %s233 = sphi 0, %s232
      %s247 = sphi 0, %s233
    $region4: #{tpu_custom_call.1} parent=1 // loop_header_branch
      %26 = sbr.rel (%p24) target = $region8
    $region5: #{tpu_custom_call.1} parent=1 // loop_body
      %s28 = ssub.s32 %s23, 1
      %s29 = ssub.s32 %s23, 2
      %s30 = sadd.s32 %s23, 1
      %s31 = ssub.s32 %s23, %s30
      %p32 = scmp.eq.s32.totalorder %s31, 0
      %s34 = sadd.s32 %s33, 1
      %s35 = scalar_select %p32, %s33, %s34
      %p38 = pneg %p32
      %p39 = scmp.eq.s32.totalorder %s23, 3
      %p40 = por %p38, %p39
      %p41 = scmp.ne.s32.totalorder %s33, %s36
      %p42 = scmp.eq.s32.totalorder %s23, 0
      %p43 = por %p41, %p42
      %p44 = scmp.ne.s32.totalorder %s33, %s36
      %p45 = scmp.eq.s32.totalorder %s28, 3
      %p46 = por %p44, %p45
      %p47 = scmp.ne.s32.totalorder %s36, %s37
      %p48 = scmp.eq.s32.totalorder %s28, 0
      %p49 = por %p47, %p48
      %p50 = scmp.ne.s32.totalorder %s36, %s37
      %p51 = scmp.eq.s32.totalorder %s29, 3
      %p52 = por %p50, %p51
      %p54 = scmp.ne.s32.totalorder %s37, %s53
      %p55 = scmp.eq.s32.totalorder %s29, 0
      %p56 = por %p54, %p55
      %s57 = ssub.s32 %s23, %s30
      %p58 = scmp.eq.s32.totalorder %s57, 0
      %s60 = sadd.s32 %s59, 1
      %s61 = scalar_select %p58, %s59, %s60
      %p64 = pneg %p58
      %p65 = scmp.eq.s32.totalorder %s23, 3
      %p66 = por %p64, %p65
      %p67 = scmp.ne.s32.totalorder %s59, %s62
      %p68 = scmp.eq.s32.totalorder %s23, 0
      %p69 = por %p67, %p68
      %p70 = scmp.ne.s32.totalorder %s59, %s62
      %p71 = scmp.eq.s32.totalorder %s28, 3
      %p72 = por %p70, %p71
      %p73 = scmp.ne.s32.totalorder %s62, %s63
      %p74 = scmp.eq.s32.totalorder %s28, 0
      %p75 = por %p73, %p74
      %p76 = scmp.ne.s32.totalorder %s62, %s63
      %p77 = scmp.eq.s32.totalorder %s29, 3
      %p78 = por %p76, %p77
      %p80 = scmp.ne.s32.totalorder %s63, %s79
      %p81 = scmp.eq.s32.totalorder %s29, 0
      %p82 = por %p80, %p81
      %s84 = sadd.s32 %s83, 1
      %p87 = scmp.eq.s32.totalorder %s23, 3
      %p88 = scmp.ne.s32.totalorder %s83, %s85
      %p89 = scmp.eq.s32.totalorder %s23, 0
      %p90 = por %p88, %p89
      %p91 = scmp.ne.s32.totalorder %s83, %s85
      %p92 = scmp.eq.s32.totalorder %s28, 3
      %p93 = por %p91, %p92
      %p94 = scmp.ne.s32.totalorder %s85, %s86
      %p95 = scmp.eq.s32.totalorder %s28, 0
      %p96 = por %p94, %p95
      %p97 = scmp.ne.s32.totalorder %s85, %s86
      %p98 = scmp.eq.s32.totalorder %s29, 3
      %p99 = por %p97, %p98
      %p101 = scmp.ne.s32.totalorder %s86, %s100
      %p102 = scmp.eq.s32.totalorder %s29, 0
      %p103 = por %p101, %p102
      %s105 = sadd.s32 %s104, 1
      %p108 = scmp.eq.s32.totalorder %s23, 3
      %p109 = scmp.ne.s32.totalorder %s104, %s106
      %p110 = scmp.eq.s32.totalorder %s23, 0
      %p111 = por %p109, %p110
      %p112 = scmp.ne.s32.totalorder %s104, %s106
      %p113 = scmp.eq.s32.totalorder %s28, 3
      %p114 = por %p112, %p113
      %p115 = scmp.ne.s32.totalorder %s106, %s107
      %p116 = scmp.eq.s32.totalorder %s28, 0
      %p117 = por %p115, %p116
      %p118 = scmp.ne.s32.totalorder %s106, %s107
      %p119 = scmp.eq.s32.totalorder %s29, 3
      %p120 = por %p118, %p119
      %p122 = scmp.ne.s32.totalorder %s107, %s121
      %p123 = scmp.eq.s32.totalorder %s29, 0
      %p124 = por %p122, %p123
      %s126 = sadd.s32 %s125, 1
      %p129 = scmp.eq.s32.totalorder %s23, 3
      %p130 = scmp.ne.s32.totalorder %s125, %s127
      %p131 = scmp.eq.s32.totalorder %s23, 0
      %p132 = por %p130, %p131
      %p133 = scmp.ne.s32.totalorder %s125, %s127
      %p134 = scmp.eq.s32.totalorder %s28, 3
      %p135 = por %p133, %p134
      %p136 = scmp.ne.s32.totalorder %s127, %s128
      %p137 = scmp.eq.s32.totalorder %s28, 0
      %p138 = por %p136, %p137
      %p139 = scmp.ne.s32.totalorder %s127, %s128
      %p140 = scmp.eq.s32.totalorder %s29, 3
      %p141 = por %p139, %p140
      %p143 = scmp.ne.s32.totalorder %s128, %s142
      %p144 = scmp.eq.s32.totalorder %s29, 0
      %p145 = por %p143, %p144
      %s147 = sadd.s32 %s146, 1
      %p150 = scmp.eq.s32.totalorder %s23, 3
      %p151 = scmp.ne.s32.totalorder %s146, %s148
      %p152 = scmp.eq.s32.totalorder %s23, 0
      %p153 = por %p151, %p152
      %p154 = scmp.ne.s32.totalorder %s146, %s148
      %p155 = scmp.eq.s32.totalorder %s28, 3
      %p156 = por %p154, %p155
      %p157 = scmp.ne.s32.totalorder %s148, %s149
      %p158 = scmp.eq.s32.totalorder %s28, 0
      %p159 = por %p157, %p158
      %p160 = scmp.ne.s32.totalorder %s148, %s149
      %p161 = scmp.eq.s32.totalorder %s29, 3
      %p162 = por %p160, %p161
      %p164 = scmp.ne.s32.totalorder %s149, %s163
      %p165 = scmp.eq.s32.totalorder %s29, 0
      %p166 = por %p164, %p165
      %s168 = sadd.s32 %s167, 1
      %p171 = scmp.eq.s32.totalorder %s23, 3
      %p172 = scmp.ne.s32.totalorder %s167, %s169
      %p173 = scmp.eq.s32.totalorder %s23, 0
      %p174 = por %p172, %p173
      %p175 = scmp.ne.s32.totalorder %s167, %s169
      %p176 = scmp.eq.s32.totalorder %s28, 3
      %p177 = por %p175, %p176
      %p178 = scmp.ne.s32.totalorder %s169, %s170
      %p179 = scmp.eq.s32.totalorder %s28, 0
      %p180 = por %p178, %p179
      %p181 = scmp.ne.s32.totalorder %s169, %s170
      %p182 = scmp.eq.s32.totalorder %s29, 3
      %p183 = por %p181, %p182
      %p185 = scmp.ne.s32.totalorder %s170, %s184
      %p186 = scmp.eq.s32.totalorder %s29, 0
      %p187 = por %p185, %p186
      %s189 = sadd.s32 %s188, 1
      %p192 = scmp.eq.s32.totalorder %s23, 3
      %p193 = scmp.ne.s32.totalorder %s188, %s190
      %p194 = scmp.eq.s32.totalorder %s23, 0
      %p195 = por %p193, %p194
      %p196 = scmp.ne.s32.totalorder %s188, %s190
      %p197 = scmp.eq.s32.totalorder %s28, 3
      %p198 = por %p196, %p197
      %p199 = scmp.ne.s32.totalorder %s190, %s191
      %p200 = scmp.eq.s32.totalorder %s28, 0
      %p201 = por %p199, %p200
      %p202 = scmp.ne.s32.totalorder %s190, %s191
      %p203 = scmp.eq.s32.totalorder %s29, 3
      %p204 = por %p202, %p203
      %p206 = scmp.ne.s32.totalorder %s191, %s205
      %p207 = scmp.eq.s32.totalorder %s29, 0
      %p208 = por %p206, %p207
      %s210 = sadd.s32 %s209, 1
      %p213 = scmp.eq.s32.totalorder %s23, 3
      %p214 = scmp.ne.s32.totalorder %s209, %s211
      %p215 = scmp.eq.s32.totalorder %s23, 0
      %p216 = por %p214, %p215
      %p217 = scmp.ne.s32.totalorder %s209, %s211
      %p218 = scmp.eq.s32.totalorder %s28, 3
      %p219 = por %p217, %p218
      %p220 = scmp.ne.s32.totalorder %s211, %s212
      %p221 = scmp.eq.s32.totalorder %s28, 0
      %p222 = por %p220, %p221
      %p223 = scmp.ne.s32.totalorder %s211, %s212
      %p224 = scmp.eq.s32.totalorder %s29, 3
      %p225 = por %p223, %p224
      %p227 = scmp.ne.s32.totalorder %s212, %s226
      %p228 = scmp.eq.s32.totalorder %s29, 0
      %p229 = por %p227, %p228
      %s231 = sadd.s32 %s230, 1
      %p234 = scmp.eq.s32.totalorder %s23, 3
      %p235 = scmp.ne.s32.totalorder %s230, %s232
      %p236 = scmp.eq.s32.totalorder %s23, 0
      %p237 = por %p235, %p236
      %p238 = scmp.ne.s32.totalorder %s230, %s232
      %p239 = scmp.eq.s32.totalorder %s28, 3
      %p240 = por %p238, %p239
      %p241 = scmp.ne.s32.totalorder %s232, %s233
      %p242 = scmp.eq.s32.totalorder %s28, 0
      %p243 = por %p241, %p242
      %p244 = scmp.ne.s32.totalorder %s232, %s233
      %p245 = scmp.eq.s32.totalorder %s29, 3
      %p246 = por %p244, %p245
      %p248 = scmp.ne.s32.totalorder %s233, %s247
      %p249 = scmp.eq.s32.totalorder %s29, 0
      %p250 = por %p248, %p249
      %p251 = scmp.le.s32.totalorder 1, %s23
      %p252 = scmp.lt.s32.totalorder %s23, 5
      %p253 = pnand %p251, %p252
      %p254 = pneg %p253
      // Predicated region
      $region9: #{tpu_custom_call.1} parent=5 // pred_check
        _
      $region10: #{tpu_custom_call.1} parent=5 // pred_check_branch
        %256 = sbr.rel (%p253) target = $region12
      $region11: #{tpu_custom_call.1} parent=5 // pred_region
        %s257 = ssub.s32 %s23, 1
        // Predicated region
        $region13: #{tpu_custom_call.1} parent=11 // pred_check
          %p258 = pneg %p96
        $region14: #{tpu_custom_call.1} parent=11 // pred_check_branch
          %260 = sbr.rel (%p258) target = $region16
        $region15: #{tpu_custom_call.1} parent=11 // pred_region
          %262 = vsyncadd [#allocation6], 0
          %s263 = sshll.u32 %s2, 4
          %s264 = int_to_ptr.hbm [resolvable:$true] %s263
          %s265 = sshll.u32 [#allocation7], 4
          %s266 = int_to_ptr.vmem [resolvable:$true] %s265
          %271 = dma.hbm_to_vmem [thread:$0]  %s264, 16384, %s266, [#allocation6], 256, 256, 16
        $region16: #{tpu_custom_call.1} parent=11 // pred_fallthru
          _
        // Predicated region
        $region17: #{tpu_custom_call.1} parent=11 // pred_check
          %p272 = pneg %p117
        $region18: #{tpu_custom_call.1} parent=11 // pred_check_branch
          %274 = sbr.rel (%p272) target = $region20
        $region19: #{tpu_custom_call.1} parent=11 // pred_region
          %276 = vsyncadd [#allocation9], 0
          %s277 = sshll.u32 %s3, 4
          %s278 = int_to_ptr.hbm [resolvable:$true] %s277
          %s279 = sshll.u32 [#allocation8], 4
          %s280 = int_to_ptr.vmem [resolvable:$true] %s279
          %285 = dma.hbm_to_vmem [thread:$0]  %s278, 4096, %s280, [#allocation9], 128, 128, 8
        $region20: #{tpu_custom_call.1} parent=11 // pred_fallthru
          _
        // Predicated region
        $region21: #{tpu_custom_call.1} parent=11 // pred_check
          %p286 = pneg %p138
        $region22: #{tpu_custom_call.1} parent=11 // pred_check_branch
          %288 = sbr.rel (%p286) target = $region24
        $region23: #{tpu_custom_call.1} parent=11 // pred_region
          _
        $region24: #{tpu_custom_call.1} parent=11 // pred_fallthru
          _
        // Predicated region
        $region25: #{tpu_custom_call.1} parent=11 // pred_check
          %p289 = pneg %p159
        $region26: #{tpu_custom_call.1} parent=11 // pred_check_branch
          %291 = sbr.rel (%p289) target = $region28
        $region27: #{tpu_custom_call.1} parent=11 // pred_region
          _
        $region28: #{tpu_custom_call.1} parent=11 // pred_fallthru
          _
        // Predicated region
        $region29: #{tpu_custom_call.1} parent=11 // pred_check
          %p292 = pneg %p180
        $region30: #{tpu_custom_call.1} parent=11 // pred_check_branch
          %294 = sbr.rel (%p292) target = $region32
        $region31: #{tpu_custom_call.1} parent=11 // pred_region
          %296 = vsyncadd [#allocation9], 0
          %s297 = sshll.u32 %s6, 4
          %s298 = int_to_ptr.hbm [resolvable:$true] %s297
          %s299 = sshll.u32 [#allocation10], 4
          %s300 = int_to_ptr.vmem [resolvable:$true] %s299
          %305 = dma.hbm_to_vmem [thread:$0]  %s298, 512, %s300, [#allocation9], 128, 128, 8
        $region32: #{tpu_custom_call.1} parent=11 // pred_fallthru
          _
        // Predicated region
        $region33: #{tpu_custom_call.1} parent=11 // pred_check
          %p306 = pneg %p201
        $region34: #{tpu_custom_call.1} parent=11 // pred_check_branch
          %308 = sbr.rel (%p306) target = $region36
        $region35: #{tpu_custom_call.1} parent=11 // pred_region
          _
        $region36: #{tpu_custom_call.1} parent=11 // pred_fallthru
          _
        // Predicated region
        $region37: #{tpu_custom_call.1} parent=11 // pred_check
          %p309 = pneg %p222
        $region38: #{tpu_custom_call.1} parent=11 // pred_check_branch
          %311 = sbr.rel (%p309) target = $region40
        $region39: #{tpu_custom_call.1} parent=11 // pred_region
          %313 = vsyncadd [#allocation12], 0
          %s314 = sshll.u32 %s8, 4
          %s315 = int_to_ptr.hbm [resolvable:$true] %s314
          %s316 = sshll.u32 [#allocation11], 4
          %s317 = int_to_ptr.vmem [resolvable:$true] %s316
          %322 = dma.hbm_to_vmem [thread:$0]  %s315, 1024, %s317, [#allocation12], 512, 512, 32
        $region40: #{tpu_custom_call.1} parent=11 // pred_fallthru
          _
      $region12: #{tpu_custom_call.1} parent=5 // pred_fallthru
        _
      %p323 = scmp.lt.s32.totalorder %s23, 4
      // Predicated region
      $region41: #{tpu_custom_call.1} parent=5 // pred_check
        %p324 = pneg %p323
      $region42: #{tpu_custom_call.1} parent=5 // pred_check_branch
        %326 = sbr.rel (%p324) target = $region44
      $region43: #{tpu_custom_call.1} parent=5 // pred_region
        // Predicated region
        $region45: #{tpu_custom_call.1} parent=43 // pred_check
          %p327 = pneg %p43
        $region46: #{tpu_custom_call.1} parent=43 // pred_check_branch
          %329 = sbr.rel (%p327) target = $region48
        $region47: #{tpu_custom_call.1} parent=43 // pred_region
          %s330 = sand.u32 %s33, 1
          %s331 = scalar_lea.sflag [#allocation4], %s330
          %s332 = sand.u32 %s33, 1
          %s333 = smul.addr %s332, 80
          %s334 = scalar_lea.vmem [#allocation3], %s333
          %s335 = smul.u32 10, %s23
          %337 = vsyncadd %s331, 0
          %s338 = smul.addr %s335, 8
          %s339 = scalar_lea.hbm %s0, %s338
          %s341 = sshll.u32 %s339, 4
          %s342 = int_to_ptr.hbm [resolvable:$true] %s341
          %s343 = sshll.u32 %s334, 4
          %s344 = int_to_ptr.vmem [resolvable:$true] %s343
          %346 = dma.hbm_to_vmem [thread:$0]  %s342, 1280, %s344, %s331
        $region48: #{tpu_custom_call.1} parent=43 // pred_fallthru
          _
        // Predicated region
        $region49: #{tpu_custom_call.1} parent=43 // pred_check
          %p347 = pneg %p69
        $region50: #{tpu_custom_call.1} parent=43 // pred_check_branch
          %349 = sbr.rel (%p347) target = $region52
        $region51: #{tpu_custom_call.1} parent=43 // pred_region
          %s350 = sand.u32 %s23, 1
          %s351 = scalar_lea.sflag [#allocation6], %s350
          %s352 = sand.u32 %s59, 1
          %s353 = smul.addr %s352, 5120
          %s354 = scalar_lea.vmem [#allocation5], %s353
          %s355 = smul.u32 160, %s23
          %357 = vsyncadd %s351, 0
          %s358 = smul.addr %s355, 4
          %s359 = smul.addr %s358, 8
          %s360 = scalar_lea.hbm %s1, %s359
          %s361 = sshll.u32 %s360, 4
          %s362 = int_to_ptr.hbm [resolvable:$true] %s361
          %s363 = sshll.u32 %s354, 4
          %s364 = int_to_ptr.vmem [resolvable:$true] %s363
          %369 = dma.hbm_to_vmem [thread:$0]  %s362, 81920, %s364, %s351, 512, 512, 32
        $region52: #{tpu_custom_call.1} parent=43 // pred_fallthru
          _
      $region44: #{tpu_custom_call.1} parent=5 // pred_fallthru
        _
      %p370 = scmp.le.s32.totalorder 1, %s23
      %p371 = scmp.lt.s32.totalorder %s23, 5
      %p372 = pnand %p370, %p371
      %p373 = pneg %p372
      // Predicated region
      $region53: #{tpu_custom_call.1} parent=5 // pred_check
        _
      $region54: #{tpu_custom_call.1} parent=5 // pred_check_branch
        %375 = sbr.rel (%p372) target = $region56
      $region55: #{tpu_custom_call.1} parent=5 // pred_region
        %s376 = ssub.s32 %s23, 1
        %s377 = sand.u32 %s36, 1
        %s378 = scalar_lea.sflag [#allocation4], %s377
        %s379 = sand.u32 %s36, 1
        %s380 = smul.addr %s379, 80
        %s381 = scalar_lea.vmem [#allocation3], %s380
        // Predicated region
        $region57: #{tpu_custom_call.1} parent=55 // pred_check
          %p382 = pneg %p49
        $region58: #{tpu_custom_call.1} parent=55 // pred_check_branch
          %384 = sbr.rel (%p382) target = $region60
        $region59: #{tpu_custom_call.1} parent=55 // pred_region
          %386 = dma.done %s378, 1280
        $region60: #{tpu_custom_call.1} parent=55 // pred_fallthru
          _
        %s387 = sand.u32 %s28, 1
        %s388 = scalar_lea.sflag [#allocation6], %s387
        %s389 = sand.u32 %s62, 1
        %s390 = smul.addr %s389, 5120
        %s391 = scalar_lea.vmem [#allocation5], %s390
        // Predicated region
        $region61: #{tpu_custom_call.1} parent=55 // pred_check
          %p392 = pneg %p75
        $region62: #{tpu_custom_call.1} parent=55 // pred_check_branch
          %394 = sbr.rel (%p392) target = $region64
        $region63: #{tpu_custom_call.1} parent=55 // pred_region
          %396 = dma.done %s388, 81920
        $region64: #{tpu_custom_call.1} parent=55 // pred_fallthru
          _
        // Predicated region
        $region65: #{tpu_custom_call.1} parent=55 // pred_check
          %p397 = pneg %p96
        $region66: #{tpu_custom_call.1} parent=55 // pred_check_branch
          %399 = sbr.rel (%p397) target = $region68
        $region67: #{tpu_custom_call.1} parent=55 // pred_region
          %401 = dma.done [#allocation6], 16384
        $region68: #{tpu_custom_call.1} parent=55 // pred_fallthru
          _
        // Predicated region
        $region69: #{tpu_custom_call.1} parent=55 // pred_check
          %p402 = pneg %p117
        $region70: #{tpu_custom_call.1} parent=55 // pred_check_branch
          %404 = sbr.rel (%p402) target = $region72
        $region71: #{tpu_custom_call.1} parent=55 // pred_region
          %406 = dma.done [#allocation9], 4096
        $region72: #{tpu_custom_call.1} parent=55 // pred_fallthru
          _
        // Predicated region
        $region73: #{tpu_custom_call.1} parent=55 // pred_check
          %p407 = pneg %p180
        $region74: #{tpu_custom_call.1} parent=55 // pred_check_branch
          %409 = sbr.rel (%p407) target = $region76
        $region75: #{tpu_custom_call.1} parent=55 // pred_region
          %411 = dma.done [#allocation9], 512
        $region76: #{tpu_custom_call.1} parent=55 // pred_fallthru
          _
        // Predicated region
        $region77: #{tpu_custom_call.1} parent=55 // pred_check
          %p412 = pneg %p222
        $region78: #{tpu_custom_call.1} parent=55 // pred_check_branch
          %414 = sbr.rel (%p412) target = $region80
        $region79: #{tpu_custom_call.1} parent=55 // pred_region
          %416 = dma.done [#allocation12], 1024
        $region80: #{tpu_custom_call.1} parent=55 // pred_fallthru
          _
        %s417 = sand.u32 %s36, 1
        %s418 = scalar_lea.sflag [#allocation4], %s417
        %s419 = sand.u32 %s36, 1
        %s420 = smul.addr %s419, 80
        %s421 = scalar_lea.vmem [#allocation3], %s420
        %p422 = pneg %p49
        %p423 = pneg %p46
        %s424 = sand.u32 %s28, 1
        %s425 = scalar_lea.sflag [#allocation6], %s424
        %s426 = sand.u32 %s62, 1
        %s427 = smul.addr %s426, 5120
        %s428 = scalar_lea.vmem [#allocation5], %s427
        %p429 = pneg %p75
        %p430 = pneg %p72
        %p431 = pneg %p96
        %p432 = pneg %p93
        %p433 = pneg %p117
        %p434 = pneg %p114
        %p435 = pneg %p138
        %p436 = pneg %p135
        %p437 = pneg %p159
        %p438 = pneg %p156
        %p439 = pneg %p180
        %p440 = pneg %p177
        %p441 = pneg %p201
        %p442 = pneg %p198
        %p443 = pneg %p222
        %p444 = pneg %p219
        %p445 = pneg %p243
        %p446 = pneg %p240
        %s447 = smul.u32 10, %s28
        %s448 = smul.u32 160, %s28
        %p449 = scmp.eq.s32.totalorder %s28, 0
        // Predicated region
        $region81: #{tpu_custom_call.1} parent=55 // pred_check
          %p450 = pneg %p449
        $region82: #{tpu_custom_call.1} parent=55 // pred_check_branch
          %452 = sbr.rel (%p450) target = $region84
        $region83: #{tpu_custom_call.1} parent=55 // pred_region
          %453 = vst [vmem:[#allocation2] sm:$0xff] 0.0
          %454 = vst [vmem:[#allocation2 + $0x8] sm:$0xff] 0.0
          %455 = vst [vmem:[#allocation2 + $0x10] sm:$0xff] 0.0
          %456 = vst [vmem:[#allocation2 + $0x18] sm:$0xff] 0.0
        $region84: #{tpu_custom_call.1} parent=55 // pred_fallthru
          _
        %v457 = vld [vmem:[#allocation2] sm:$0xff]
        %v458 = vld [vmem:[#allocation2 + $0x8] sm:$0xff]
        %v459 = vld [vmem:[#allocation2 + $0x10] sm:$0xff]
        %v460 = vld [vmem:[#allocation2 + $0x18] sm:$0xff]
        %v461 = vld [vmem:[%s381] sm:$0xff]
        %v462 = vld [vmem:[%s381 + $0x8] sm:$0xff]
        %v463 = vld [vmem:[%s381 + $0x10] sm:$0xff]
        %v464 = vld [vmem:[%s381 + $0x18] sm:$0xff]
        %v465 = vld [vmem:[%s381 + $0x20] sm:$0xff]
        %v466 = vld [vmem:[%s381 + $0x28] sm:$0xff]
        %v467 = vld [vmem:[%s381 + $0x30] sm:$0xff]
        %v468 = vld [vmem:[%s381 + $0x38] sm:$0xff]
        %v469 = vld [vmem:[%s381 + $0x40] sm:$0xff]
        %v470 = vld [vmem:[%s381 + $0x48] sm:$0xff]
        %v471 = vld [vmem:[%s391] sm:$0xff]
        %v472 = vld [vmem:[%s391 + $0x8] sm:$0xff]
        %v473 = vld [vmem:[%s391 + $0x10] sm:$0xff]
        %v474 = vld [vmem:[%s391 + $0x18] sm:$0xff]
        %v475 = vld [vmem:[%s391 + $0x20] sm:$0xff]
        %v476 = vld [vmem:[%s391 + $0x28] sm:$0xff]
        %v477 = vld [vmem:[%s391 + $0x30] sm:$0xff]
        %v478 = vld [vmem:[%s391 + $0x38] sm:$0xff]
        %v479 = vld [vmem:[%s391 + $0x40] sm:$0xff]
        %v480 = vld [vmem:[%s391 + $0x48] sm:$0xff]
        %v481 = vld [vmem:[%s391 + $0x50] sm:$0xff]
        %v482 = vld [vmem:[%s391 + $0x58] sm:$0xff]
        %v483 = vld [vmem:[%s391 + $0x60] sm:$0xff]
        %v484 = vld [vmem:[%s391 + $0x68] sm:$0xff]
        %v485 = vld [vmem:[%s391 + $0x70] sm:$0xff]
        %v486 = vld [vmem:[%s391 + $0x78] sm:$0xff]
        %v487 = vld [vmem:[%s391 + $0x80] sm:$0xff]
        %v488 = vld [vmem:[%s391 + $0x88] sm:$0xff]
        %v489 = vld [vmem:[%s391 + $0x90] sm:$0xff]
        %v490 = vld [vmem:[%s391 + $0x98] sm:$0xff]
        %v491 = vld [vmem:[%s391 + $0xa0] sm:$0xff]
        %v492 = vld [vmem:[%s391 + $0xa8] sm:$0xff]
        %v493 = vld [vmem:[%s391 + $0xb0] sm:$0xff]
        %v494 = vld [vmem:[%s391 + $0xb8] sm:$0xff]
        %v495 = vld [vmem:[%s391 + $0xc0] sm:$0xff]
        %v496 = vld [vmem:[%s391 + $0xc8] sm:$0xff]
        %v497 = vld [vmem:[%s391 + $0xd0] sm:$0xff]
        %v498 = vld [vmem:[%s391 + $0xd8] sm:$0xff]
        %v499 = vld [vmem:[%s391 + $0xe0] sm:$0xff]
        %v500 = vld [vmem:[%s391 + $0xe8] sm:$0xff]
        %v501 = vld [vmem:[%s391 + $0xf0] sm:$0xff]
        %v502 = vld [vmem:[%s391 + $0xf8] sm:$0xff]
        %v503 = vld [vmem:[%s391 + $0x100] sm:$0xff]
        %v504 = vld [vmem:[%s391 + $0x108] sm:$0xff]
        %v505 = vld [vmem:[%s391 + $0x110] sm:$0xff]
        %v506 = vld [vmem:[%s391 + $0x118] sm:$0xff]
        %v507 = vld [vmem:[%s391 + $0x120] sm:$0xff]
        %v508 = vld [vmem:[%s391 + $0x128] sm:$0xff]
        %v509 = vld [vmem:[%s391 + $0x130] sm:$0xff]
        %v510 = vld [vmem:[%s391 + $0x138] sm:$0xff]
        %v511 = vld [vmem:[%s391 + $0x140] sm:$0xff]
        %v512 = vld [vmem:[%s391 + $0x148] sm:$0xff]
        %v513 = vld [vmem:[%s391 + $0x150] sm:$0xff]
        %v514 = vld [vmem:[%s391 + $0x158] sm:$0xff]
        %v515 = vld [vmem:[%s391 + $0x160] sm:$0xff]
        %v516 = vld [vmem:[%s391 + $0x168] sm:$0xff]
        %v517 = vld [vmem:[%s391 + $0x170] sm:$0xff]
        %v518 = vld [vmem:[%s391 + $0x178] sm:$0xff]
        %v519 = vld [vmem:[%s391 + $0x180] sm:$0xff]
        %v520 = vld [vmem:[%s391 + $0x188] sm:$0xff]
        %v521 = vld [vmem:[%s391 + $0x190] sm:$0xff]
        %v522 = vld [vmem:[%s391 + $0x198] sm:$0xff]
        %v523 = vld [vmem:[%s391 + $0x1a0] sm:$0xff]
        %v524 = vld [vmem:[%s391 + $0x1a8] sm:$0xff]
        %v525 = vld [vmem:[%s391 + $0x1b0] sm:$0xff]
        %v526 = vld [vmem:[%s391 + $0x1b8] sm:$0xff]
        %v527 = vld [vmem:[%s391 + $0x1c0] sm:$0xff]
        %v528 = vld [vmem:[%s391 + $0x1c8] sm:$0xff]
        %v529 = vld [vmem:[%s391 + $0x1d0] sm:$0xff]
        %v530 = vld [vmem:[%s391 + $0x1d8] sm:$0xff]
        %v531 = vld [vmem:[%s391 + $0x1e0] sm:$0xff]
        %v532 = vld [vmem:[%s391 + $0x1e8] sm:$0xff]
        %v533 = vld [vmem:[%s391 + $0x1f0] sm:$0xff]
        %v534 = vld [vmem:[%s391 + $0x1f8] sm:$0xff]
        %v535 = vld [vmem:[%s391 + $0x200] sm:$0xff]
        %v536 = vld [vmem:[%s391 + $0x208] sm:$0xff]
        %v537 = vld [vmem:[%s391 + $0x210] sm:$0xff]
        %v538 = vld [vmem:[%s391 + $0x218] sm:$0xff]
        %v539 = vld [vmem:[%s391 + $0x220] sm:$0xff]
        %v540 = vld [vmem:[%s391 + $0x228] sm:$0xff]
        %v541 = vld [vmem:[%s391 + $0x230] sm:$0xff]
        %v542 = vld [vmem:[%s391 + $0x238] sm:$0xff]
        %v543 = vld [vmem:[%s391 + $0x240] sm:$0xff]
        %v544 = vld [vmem:[%s391 + $0x248] sm:$0xff]
        %v545 = vld [vmem:[%s391 + $0x250] sm:$0xff]
        %v546 = vld [vmem:[%s391 + $0x258] sm:$0xff]
        %v547 = vld [vmem:[%s391 + $0x260] sm:$0xff]
        %v548 = vld [vmem:[%s391 + $0x268] sm:$0xff]
        %v549 = vld [vmem:[%s391 + $0x270] sm:$0xff]
        %v550 = vld [vmem:[%s391 + $0x278] sm:$0xff]
        %v551 = vld [vmem:[%s391 + $0x280] sm:$0xff]
        %v552 = vld [vmem:[%s391 + $0x288] sm:$0xff]
        %v553 = vld [vmem:[%s391 + $0x290] sm:$0xff]
        %v554 = vld [vmem:[%s391 + $0x298] sm:$0xff]
        %v555 = vld [vmem:[%s391 + $0x2a0] sm:$0xff]
        %v556 = vld [vmem:[%s391 + $0x2a8] sm:$0xff]
        %v557 = vld [vmem:[%s391 + $0x2b0] sm:$0xff]
        %v558 = vld [vmem:[%s391 + $0x2b8] sm:$0xff]
        %v559 = vld [vmem:[%s391 + $0x2c0] sm:$0xff]
        %v560 = vld [vmem:[%s391 + $0x2c8] sm:$0xff]
        %v561 = vld [vmem:[%s391 + $0x2d0] sm:$0xff]
        %v562 = vld [vmem:[%s391 + $0x2d8] sm:$0xff]
        %v563 = vld [vmem:[%s391 + $0x2e0] sm:$0xff]
        %v564 = vld [vmem:[%s391 + $0x2e8] sm:$0xff]
        %v565 = vld [vmem:[%s391 + $0x2f0] sm:$0xff]
        %v566 = vld [vmem:[%s391 + $0x2f8] sm:$0xff]
        %v567 = vld [vmem:[%s391 + $0x300] sm:$0xff]
        %v568 = vld [vmem:[%s391 + $0x308] sm:$0xff]
        %v569 = vld [vmem:[%s391 + $0x310] sm:$0xff]
        %v570 = vld [vmem:[%s391 + $0x318] sm:$0xff]
        %v571 = vld [vmem:[%s391 + $0x320] sm:$0xff]
        %v572 = vld [vmem:[%s391 + $0x328] sm:$0xff]
        %v573 = vld [vmem:[%s391 + $0x330] sm:$0xff]
        %v574 = vld [vmem:[%s391 + $0x338] sm:$0xff]
        %v575 = vld [vmem:[%s391 + $0x340] sm:$0xff]
        %v576 = vld [vmem:[%s391 + $0x348] sm:$0xff]
        %v577 = vld [vmem:[%s391 + $0x350] sm:$0xff]
        %v578 = vld [vmem:[%s391 + $0x358] sm:$0xff]
        %v579 = vld [vmem:[%s391 + $0x360] sm:$0xff]
        %v580 = vld [vmem:[%s391 + $0x368] sm:$0xff]
        %v581 = vld [vmem:[%s391 + $0x370] sm:$0xff]
        %v582 = vld [vmem:[%s391 + $0x378] sm:$0xff]
        %v583 = vld [vmem:[%s391 + $0x380] sm:$0xff]
        %v584 = vld [vmem:[%s391 + $0x388] sm:$0xff]
        %v585 = vld [vmem:[%s391 + $0x390] sm:$0xff]
        %v586 = vld [vmem:[%s391 + $0x398] sm:$0xff]
        %v587 = vld [vmem:[%s391 + $0x3a0] sm:$0xff]
        %v588 = vld [vmem:[%s391 + $0x3a8] sm:$0xff]
        %v589 = vld [vmem:[%s391 + $0x3b0] sm:$0xff]
        %v590 = vld [vmem:[%s391 + $0x3b8] sm:$0xff]
        %v591 = vld [vmem:[%s391 + $0x3c0] sm:$0xff]
        %v592 = vld [vmem:[%s391 + $0x3c8] sm:$0xff]
        %v593 = vld [vmem:[%s391 + $0x3d0] sm:$0xff]
        %v594 = vld [vmem:[%s391 + $0x3d8] sm:$0xff]
        %v595 = vld [vmem:[%s391 + $0x3e0] sm:$0xff]
        %v596 = vld [vmem:[%s391 + $0x3e8] sm:$0xff]
        %v597 = vld [vmem:[%s391 + $0x3f0] sm:$0xff]
        %v598 = vld [vmem:[%s391 + $0x3f8] sm:$0xff]
        %v599 = vld [vmem:[%s391 + $0x400] sm:$0xff]
        %v600 = vld [vmem:[%s391 + $0x408] sm:$0xff]
        %v601 = vld [vmem:[%s391 + $0x410] sm:$0xff]
        %v602 = vld [vmem:[%s391 + $0x418] sm:$0xff]
        %v603 = vld [vmem:[%s391 + $0x420] sm:$0xff]
        %v604 = vld [vmem:[%s391 + $0x428] sm:$0xff]
        %v605 = vld [vmem:[%s391 + $0x430] sm:$0xff]
        %v606 = vld [vmem:[%s391 + $0x438] sm:$0xff]
        %v607 = vld [vmem:[%s391 + $0x440] sm:$0xff]
        %v608 = vld [vmem:[%s391 + $0x448] sm:$0xff]
        %v609 = vld [vmem:[%s391 + $0x450] sm:$0xff]
        %v610 = vld [vmem:[%s391 + $0x458] sm:$0xff]
        %v611 = vld [vmem:[%s391 + $0x460] sm:$0xff]
        %v612 = vld [vmem:[%s391 + $0x468] sm:$0xff]
        %v613 = vld [vmem:[%s391 + $0x470] sm:$0xff]
        %v614 = vld [vmem:[%s391 + $0x478] sm:$0xff]
        %v615 = vld [vmem:[%s391 + $0x480] sm:$0xff]
        %v616 = vld [vmem:[%s391 + $0x488] sm:$0xff]
        %v617 = vld [vmem:[%s391 + $0x490] sm:$0xff]
        %v618 = vld [vmem:[%s391 + $0x498] sm:$0xff]
        %v619 = vld [vmem:[%s391 + $0x4a0] sm:$0xff]
        %v620 = vld [vmem:[%s391 + $0x4a8] sm:$0xff]
        %v621 = vld [vmem:[%s391 + $0x4b0] sm:$0xff]
        %v622 = vld [vmem:[%s391 + $0x4b8] sm:$0xff]
        %v623 = vld [vmem:[%s391 + $0x4c0] sm:$0xff]
        %v624 = vld [vmem:[%s391 + $0x4c8] sm:$0xff]
        %v625 = vld [vmem:[%s391 + $0x4d0] sm:$0xff]
        %v626 = vld [vmem:[%s391 + $0x4d8] sm:$0xff]
        %v627 = vld [vmem:[%s391 + $0x4e0] sm:$0xff]
        %v628 = vld [vmem:[%s391 + $0x4e8] sm:$0xff]
        %v629 = vld [vmem:[%s391 + $0x4f0] sm:$0xff]
        %v630 = vld [vmem:[%s391 + $0x4f8] sm:$0xff]
        %v631 = vld [vmem:[%s391 + $0x500] sm:$0xff]
        %v632 = vld [vmem:[%s391 + $0x508] sm:$0xff]
        %v633 = vld [vmem:[%s391 + $0x510] sm:$0xff]
        %v634 = vld [vmem:[%s391 + $0x518] sm:$0xff]
        %v635 = vld [vmem:[%s391 + $0x520] sm:$0xff]
        %v636 = vld [vmem:[%s391 + $0x528] sm:$0xff]
        %v637 = vld [vmem:[%s391 + $0x530] sm:$0xff]
        %v638 = vld [vmem:[%s391 + $0x538] sm:$0xff]
        %v639 = vld [vmem:[%s391 + $0x540] sm:$0xff]
        %v640 = vld [vmem:[%s391 + $0x548] sm:$0xff]
        %v641 = vld [vmem:[%s391 + $0x550] sm:$0xff]
        %v642 = vld [vmem:[%s391 + $0x558] sm:$0xff]
        %v643 = vld [vmem:[%s391 + $0x560] sm:$0xff]
        %v644 = vld [vmem:[%s391 + $0x568] sm:$0xff]
        %v645 = vld [vmem:[%s391 + $0x570] sm:$0xff]
        %v646 = vld [vmem:[%s391 + $0x578] sm:$0xff]
        %v647 = vld [vmem:[%s391 + $0x580] sm:$0xff]
        %v648 = vld [vmem:[%s391 + $0x588] sm:$0xff]
        %v649 = vld [vmem:[%s391 + $0x590] sm:$0xff]
        %v650 = vld [vmem:[%s391 + $0x598] sm:$0xff]
        %v651 = vld [vmem:[%s391 + $0x5a0] sm:$0xff]
        %v652 = vld [vmem:[%s391 + $0x5a8] sm:$0xff]
        %v653 = vld [vmem:[%s391 + $0x5b0] sm:$0xff]
        %v654 = vld [vmem:[%s391 + $0x5b8] sm:$0xff]
        %v655 = vld [vmem:[%s391 + $0x5c0] sm:$0xff]
        %v656 = vld [vmem:[%s391 + $0x5c8] sm:$0xff]
        %v657 = vld [vmem:[%s391 + $0x5d0] sm:$0xff]
        %v658 = vld [vmem:[%s391 + $0x5d8] sm:$0xff]
        %v659 = vld [vmem:[%s391 + $0x5e0] sm:$0xff]
        %v660 = vld [vmem:[%s391 + $0x5e8] sm:$0xff]
        %v661 = vld [vmem:[%s391 + $0x5f0] sm:$0xff]
        %v662 = vld [vmem:[%s391 + $0x5f8] sm:$0xff]
        %v663 = vld [vmem:[%s391 + $0x600] sm:$0xff]
        %v664 = vld [vmem:[%s391 + $0x608] sm:$0xff]
        %v665 = vld [vmem:[%s391 + $0x610] sm:$0xff]
        %v666 = vld [vmem:[%s391 + $0x618] sm:$0xff]
        %v667 = vld [vmem:[%s391 + $0x620] sm:$0xff]
        %v668 = vld [vmem:[%s391 + $0x628] sm:$0xff]
        %v669 = vld [vmem:[%s391 + $0x630] sm:$0xff]
        %v670 = vld [vmem:[%s391 + $0x638] sm:$0xff]
        %v671 = vld [vmem:[%s391 + $0x640] sm:$0xff]
        %v672 = vld [vmem:[%s391 + $0x648] sm:$0xff]
        %v673 = vld [vmem:[%s391 + $0x650] sm:$0xff]
        %v674 = vld [vmem:[%s391 + $0x658] sm:$0xff]
        %v675 = vld [vmem:[%s391 + $0x660] sm:$0xff]
        %v676 = vld [vmem:[%s391 + $0x668] sm:$0xff]
        %v677 = vld [vmem:[%s391 + $0x670] sm:$0xff]
        %v678 = vld [vmem:[%s391 + $0x678] sm:$0xff]
        %v679 = vld [vmem:[%s391 + $0x680] sm:$0xff]
        %v680 = vld [vmem:[%s391 + $0x688] sm:$0xff]
        %v681 = vld [vmem:[%s391 + $0x690] sm:$0xff]
        %v682 = vld [vmem:[%s391 + $0x698] sm:$0xff]
        %v683 = vld [vmem:[%s391 + $0x6a0] sm:$0xff]
        %v684 = vld [vmem:[%s391 + $0x6a8] sm:$0xff]
        %v685 = vld [vmem:[%s391 + $0x6b0] sm:$0xff]
        %v686 = vld [vmem:[%s391 + $0x6b8] sm:$0xff]
        %v687 = vld [vmem:[%s391 + $0x6c0] sm:$0xff]
        %v688 = vld [vmem:[%s391 + $0x6c8] sm:$0xff]
        %v689 = vld [vmem:[%s391 + $0x6d0] sm:$0xff]
        %v690 = vld [vmem:[%s391 + $0x6d8] sm:$0xff]
        %v691 = vld [vmem:[%s391 + $0x6e0] sm:$0xff]
        %v692 = vld [vmem:[%s391 + $0x6e8] sm:$0xff]
        %v693 = vld [vmem:[%s391 + $0x6f0] sm:$0xff]
        %v694 = vld [vmem:[%s391 + $0x6f8] sm:$0xff]
        %v695 = vld [vmem:[%s391 + $0x700] sm:$0xff]
        %v696 = vld [vmem:[%s391 + $0x708] sm:$0xff]
        %v697 = vld [vmem:[%s391 + $0x710] sm:$0xff]
        %v698 = vld [vmem:[%s391 + $0x718] sm:$0xff]
        %v699 = vld [vmem:[%s391 + $0x720] sm:$0xff]
        %v700 = vld [vmem:[%s391 + $0x728] sm:$0xff]
        %v701 = vld [vmem:[%s391 + $0x730] sm:$0xff]
        %v702 = vld [vmem:[%s391 + $0x738] sm:$0xff]
        %v703 = vld [vmem:[%s391 + $0x740] sm:$0xff]
        %v704 = vld [vmem:[%s391 + $0x748] sm:$0xff]
        %v705 = vld [vmem:[%s391 + $0x750] sm:$0xff]
        %v706 = vld [vmem:[%s391 + $0x758] sm:$0xff]
        %v707 = vld [vmem:[%s391 + $0x760] sm:$0xff]
        %v708 = vld [vmem:[%s391 + $0x768] sm:$0xff]
        %v709 = vld [vmem:[%s391 + $0x770] sm:$0xff]
        %v710 = vld [vmem:[%s391 + $0x778] sm:$0xff]
        %v711 = vld [vmem:[%s391 + $0x780] sm:$0xff]
        %v712 = vld [vmem:[%s391 + $0x788] sm:$0xff]
        %v713 = vld [vmem:[%s391 + $0x790] sm:$0xff]
        %v714 = vld [vmem:[%s391 + $0x798] sm:$0xff]
        %v715 = vld [vmem:[%s391 + $0x7a0] sm:$0xff]
        %v716 = vld [vmem:[%s391 + $0x7a8] sm:$0xff]
        %v717 = vld [vmem:[%s391 + $0x7b0] sm:$0xff]
        %v718 = vld [vmem:[%s391 + $0x7b8] sm:$0xff]
        %v719 = vld [vmem:[%s391 + $0x7c0] sm:$0xff]
        %v720 = vld [vmem:[%s391 + $0x7c8] sm:$0xff]
        %v721 = vld [vmem:[%s391 + $0x7d0] sm:$0xff]
        %v722 = vld [vmem:[%s391 + $0x7d8] sm:$0xff]
        %v723 = vld [vmem:[%s391 + $0x7e0] sm:$0xff]
        %v724 = vld [vmem:[%s391 + $0x7e8] sm:$0xff]
        %v725 = vld [vmem:[%s391 + $0x7f0] sm:$0xff]
        %v726 = vld [vmem:[%s391 + $0x7f8] sm:$0xff]
        %v727 = vld [vmem:[%s391 + $0x800] sm:$0xff]
        %v728 = vld [vmem:[%s391 + $0x808] sm:$0xff]
        %v729 = vld [vmem:[%s391 + $0x810] sm:$0xff]
        %v730 = vld [vmem:[%s391 + $0x818] sm:$0xff]
        %v731 = vld [vmem:[%s391 + $0x820] sm:$0xff]
        %v732 = vld [vmem:[%s391 + $0x828] sm:$0xff]
        %v733 = vld [vmem:[%s391 + $0x830] sm:$0xff]
        %v734 = vld [vmem:[%s391 + $0x838] sm:$0xff]
        %v735 = vld [vmem:[%s391 + $0x840] sm:$0xff]
        %v736 = vld [vmem:[%s391 + $0x848] sm:$0xff]
        %v737 = vld [vmem:[%s391 + $0x850] sm:$0xff]
        %v738 = vld [vmem:[%s391 + $0x858] sm:$0xff]
        %v739 = vld [vmem:[%s391 + $0x860] sm:$0xff]
        %v740 = vld [vmem:[%s391 + $0x868] sm:$0xff]
        %v741 = vld [vmem:[%s391 + $0x870] sm:$0xff]
        %v742 = vld [vmem:[%s391 + $0x878] sm:$0xff]
        %v743 = vld [vmem:[%s391 + $0x880] sm:$0xff]
        %v744 = vld [vmem:[%s391 + $0x888] sm:$0xff]
        %v745 = vld [vmem:[%s391 + $0x890] sm:$0xff]
        %v746 = vld [vmem:[%s391 + $0x898] sm:$0xff]
        %v747 = vld [vmem:[%s391 + $0x8a0] sm:$0xff]
        %v748 = vld [vmem:[%s391 + $0x8a8] sm:$0xff]
        %v749 = vld [vmem:[%s391 + $0x8b0] sm:$0xff]
        %v750 = vld [vmem:[%s391 + $0x8b8] sm:$0xff]
        %v751 = vld [vmem:[%s391 + $0x8c0] sm:$0xff]
        %v752 = vld [vmem:[%s391 + $0x8c8] sm:$0xff]
        %v753 = vld [vmem:[%s391 + $0x8d0] sm:$0xff]
        %v754 = vld [vmem:[%s391 + $0x8d8] sm:$0xff]
        %v755 = vld [vmem:[%s391 + $0x8e0] sm:$0xff]
        %v756 = vld [vmem:[%s391 + $0x8e8] sm:$0xff]
        %v757 = vld [vmem:[%s391 + $0x8f0] sm:$0xff]
        %v758 = vld [vmem:[%s391 + $0x8f8] sm:$0xff]
        %v759 = vld [vmem:[%s391 + $0x900] sm:$0xff]
        %v760 = vld [vmem:[%s391 + $0x908] sm:$0xff]
        %v761 = vld [vmem:[%s391 + $0x910] sm:$0xff]
        %v762 = vld [vmem:[%s391 + $0x918] sm:$0xff]
        %v763 = vld [vmem:[%s391 + $0x920] sm:$0xff]
        %v764 = vld [vmem:[%s391 + $0x928] sm:$0xff]
        %v765 = vld [vmem:[%s391 + $0x930] sm:$0xff]
        %v766 = vld [vmem:[%s391 + $0x938] sm:$0xff]
        %v767 = vld [vmem:[%s391 + $0x940] sm:$0xff]
        %v768 = vld [vmem:[%s391 + $0x948] sm:$0xff]
        %v769 = vld [vmem:[%s391 + $0x950] sm:$0xff]
        %v770 = vld [vmem:[%s391 + $0x958] sm:$0xff]
        %v771 = vld [vmem:[%s391 + $0x960] sm:$0xff]
        %v772 = vld [vmem:[%s391 + $0x968] sm:$0xff]
        %v773 = vld [vmem:[%s391 + $0x970] sm:$0xff]
        %v774 = vld [vmem:[%s391 + $0x978] sm:$0xff]
        %v775 = vld [vmem:[%s391 + $0x980] sm:$0xff]
        %v776 = vld [vmem:[%s391 + $0x988] sm:$0xff]
        %v777 = vld [vmem:[%s391 + $0x990] sm:$0xff]
        %v778 = vld [vmem:[%s391 + $0x998] sm:$0xff]
        %v779 = vld [vmem:[%s391 + $0x9a0] sm:$0xff]
        %v780 = vld [vmem:[%s391 + $0x9a8] sm:$0xff]
        %v781 = vld [vmem:[%s391 + $0x9b0] sm:$0xff]
        %v782 = vld [vmem:[%s391 + $0x9b8] sm:$0xff]
        %v783 = vld [vmem:[%s391 + $0x9c0] sm:$0xff]
        %v784 = vld [vmem:[%s391 + $0x9c8] sm:$0xff]
        %v785 = vld [vmem:[%s391 + $0x9d0] sm:$0xff]
        %v786 = vld [vmem:[%s391 + $0x9d8] sm:$0xff]
        %v787 = vld [vmem:[%s391 + $0x9e0] sm:$0xff]
        %v788 = vld [vmem:[%s391 + $0x9e8] sm:$0xff]
        %v789 = vld [vmem:[%s391 + $0x9f0] sm:$0xff]
        %v790 = vld [vmem:[%s391 + $0x9f8] sm:$0xff]
        %v791 = vld [vmem:[%s391 + $0xa00] sm:$0xff]
        %v792 = vld [vmem:[%s391 + $0xa08] sm:$0xff]
        %v793 = vld [vmem:[%s391 + $0xa10] sm:$0xff]
        %v794 = vld [vmem:[%s391 + $0xa18] sm:$0xff]
        %v795 = vld [vmem:[%s391 + $0xa20] sm:$0xff]
        %v796 = vld [vmem:[%s391 + $0xa28] sm:$0xff]
        %v797 = vld [vmem:[%s391 + $0xa30] sm:$0xff]
        %v798 = vld [vmem:[%s391 + $0xa38] sm:$0xff]
        %v799 = vld [vmem:[%s391 + $0xa40] sm:$0xff]
        %v800 = vld [vmem:[%s391 + $0xa48] sm:$0xff]
        %v801 = vld [vmem:[%s391 + $0xa50] sm:$0xff]
        %v802 = vld [vmem:[%s391 + $0xa58] sm:$0xff]
        %v803 = vld [vmem:[%s391 + $0xa60] sm:$0xff]
        %v804 = vld [vmem:[%s391 + $0xa68] sm:$0xff]
        %v805 = vld [vmem:[%s391 + $0xa70] sm:$0xff]
        %v806 = vld [vmem:[%s391 + $0xa78] sm:$0xff]
        %v807 = vld [vmem:[%s391 + $0xa80] sm:$0xff]
        %v808 = vld [vmem:[%s391 + $0xa88] sm:$0xff]
        %v809 = vld [vmem:[%s391 + $0xa90] sm:$0xff]
        %v810 = vld [vmem:[%s391 + $0xa98] sm:$0xff]
        %v811 = vld [vmem:[%s391 + $0xaa0] sm:$0xff]
        %v812 = vld [vmem:[%s391 + $0xaa8] sm:$0xff]
        %v813 = vld [vmem:[%s391 + $0xab0] sm:$0xff]
        %v814 = vld [vmem:[%s391 + $0xab8] sm:$0xff]
        %v815 = vld [vmem:[%s391 + $0xac0] sm:$0xff]
        %v816 = vld [vmem:[%s391 + $0xac8] sm:$0xff]
        %v817 = vld [vmem:[%s391 + $0xad0] sm:$0xff]
        %v818 = vld [vmem:[%s391 + $0xad8] sm:$0xff]
        %v819 = vld [vmem:[%s391 + $0xae0] sm:$0xff]
        %v820 = vld [vmem:[%s391 + $0xae8] sm:$0xff]
        %v821 = vld [vmem:[%s391 + $0xaf0] sm:$0xff]
        %v822 = vld [vmem:[%s391 + $0xaf8] sm:$0xff]
        %v823 = vld [vmem:[%s391 + $0xb00] sm:$0xff]
        %v824 = vld [vmem:[%s391 + $0xb08] sm:$0xff]
        %v825 = vld [vmem:[%s391 + $0xb10] sm:$0xff]
        %v826 = vld [vmem:[%s391 + $0xb18] sm:$0xff]
        %v827 = vld [vmem:[%s391 + $0xb20] sm:$0xff]
        %v828 = vld [vmem:[%s391 + $0xb28] sm:$0xff]
        %v829 = vld [vmem:[%s391 + $0xb30] sm:$0xff]
        %v830 = vld [vmem:[%s391 + $0xb38] sm:$0xff]
        %v831 = vld [vmem:[%s391 + $0xb40] sm:$0xff]
        %v832 = vld [vmem:[%s391 + $0xb48] sm:$0xff]
        %v833 = vld [vmem:[%s391 + $0xb50] sm:$0xff]
        %v834 = vld [vmem:[%s391 + $0xb58] sm:$0xff]
        %v835 = vld [vmem:[%s391 + $0xb60] sm:$0xff]
        %v836 = vld [vmem:[%s391 + $0xb68] sm:$0xff]
        %v837 = vld [vmem:[%s391 + $0xb70] sm:$0xff]
        %v838 = vld [vmem:[%s391 + $0xb78] sm:$0xff]
        %v839 = vld [vmem:[%s391 + $0xb80] sm:$0xff]
        %v840 = vld [vmem:[%s391 + $0xb88] sm:$0xff]
        %v841 = vld [vmem:[%s391 + $0xb90] sm:$0xff]
        %v842 = vld [vmem:[%s391 + $0xb98] sm:$0xff]
        %v843 = vld [vmem:[%s391 + $0xba0] sm:$0xff]
        %v844 = vld [vmem:[%s391 + $0xba8] sm:$0xff]
        %v845 = vld [vmem:[%s391 + $0xbb0] sm:$0xff]
        %v846 = vld [vmem:[%s391 + $0xbb8] sm:$0xff]
        %v847 = vld [vmem:[%s391 + $0xbc0] sm:$0xff]
        %v848 = vld [vmem:[%s391 + $0xbc8] sm:$0xff]
        %v849 = vld [vmem:[%s391 + $0xbd0] sm:$0xff]
        %v850 = vld [vmem:[%s391 + $0xbd8] sm:$0xff]
        %v851 = vld [vmem:[%s391 + $0xbe0] sm:$0xff]
        %v852 = vld [vmem:[%s391 + $0xbe8] sm:$0xff]
        %v853 = vld [vmem:[%s391 + $0xbf0] sm:$0xff]
        %v854 = vld [vmem:[%s391 + $0xbf8] sm:$0xff]
        %v855 = vld [vmem:[%s391 + $0xc00] sm:$0xff]
        %v856 = vld [vmem:[%s391 + $0xc08] sm:$0xff]
        %v857 = vld [vmem:[%s391 + $0xc10] sm:$0xff]
        %v858 = vld [vmem:[%s391 + $0xc18] sm:$0xff]
        %v859 = vld [vmem:[%s391 + $0xc20] sm:$0xff]
        %v860 = vld [vmem:[%s391 + $0xc28] sm:$0xff]
        %v861 = vld [vmem:[%s391 + $0xc30] sm:$0xff]
        %v862 = vld [vmem:[%s391 + $0xc38] sm:$0xff]
        %v863 = vld [vmem:[%s391 + $0xc40] sm:$0xff]
        %v864 = vld [vmem:[%s391 + $0xc48] sm:$0xff]
        %v865 = vld [vmem:[%s391 + $0xc50] sm:$0xff]
        %v866 = vld [vmem:[%s391 + $0xc58] sm:$0xff]
        %v867 = vld [vmem:[%s391 + $0xc60] sm:$0xff]
        %v868 = vld [vmem:[%s391 + $0xc68] sm:$0xff]
        %v869 = vld [vmem:[%s391 + $0xc70] sm:$0xff]
        %v870 = vld [vmem:[%s391 + $0xc78] sm:$0xff]
        %v871 = vld [vmem:[%s391 + $0xc80] sm:$0xff]
        %v872 = vld [vmem:[%s391 + $0xc88] sm:$0xff]
        %v873 = vld [vmem:[%s391 + $0xc90] sm:$0xff]
        %v874 = vld [vmem:[%s391 + $0xc98] sm:$0xff]
        %v875 = vld [vmem:[%s391 + $0xca0] sm:$0xff]
        %v876 = vld [vmem:[%s391 + $0xca8] sm:$0xff]
        %v877 = vld [vmem:[%s391 + $0xcb0] sm:$0xff]
        %v878 = vld [vmem:[%s391 + $0xcb8] sm:$0xff]
        %v879 = vld [vmem:[%s391 + $0xcc0] sm:$0xff]
        %v880 = vld [vmem:[%s391 + $0xcc8] sm:$0xff]
        %v881 = vld [vmem:[%s391 + $0xcd0] sm:$0xff]
        %v882 = vld [vmem:[%s391 + $0xcd8] sm:$0xff]
        %v883 = vld [vmem:[%s391 + $0xce0] sm:$0xff]
        %v884 = vld [vmem:[%s391 + $0xce8] sm:$0xff]
        %v885 = vld [vmem:[%s391 + $0xcf0] sm:$0xff]
        %v886 = vld [vmem:[%s391 + $0xcf8] sm:$0xff]
        %v887 = vld [vmem:[%s391 + $0xd00] sm:$0xff]
        %v888 = vld [vmem:[%s391 + $0xd08] sm:$0xff]
        %v889 = vld [vmem:[%s391 + $0xd10] sm:$0xff]
        %v890 = vld [vmem:[%s391 + $0xd18] sm:$0xff]
        %v891 = vld [vmem:[%s391 + $0xd20] sm:$0xff]
        %v892 = vld [vmem:[%s391 + $0xd28] sm:$0xff]
        %v893 = vld [vmem:[%s391 + $0xd30] sm:$0xff]
        %v894 = vld [vmem:[%s391 + $0xd38] sm:$0xff]
        %v895 = vld [vmem:[%s391 + $0xd40] sm:$0xff]
        %v896 = vld [vmem:[%s391 + $0xd48] sm:$0xff]
        %v897 = vld [vmem:[%s391 + $0xd50] sm:$0xff]
        %v898 = vld [vmem:[%s391 + $0xd58] sm:$0xff]
        %v899 = vld [vmem:[%s391 + $0xd60] sm:$0xff]
        %v900 = vld [vmem:[%s391 + $0xd68] sm:$0xff]
        %v901 = vld [vmem:[%s391 + $0xd70] sm:$0xff]
        %v902 = vld [vmem:[%s391 + $0xd78] sm:$0xff]
        %v903 = vld [vmem:[%s391 + $0xd80] sm:$0xff]
        %v904 = vld [vmem:[%s391 + $0xd88] sm:$0xff]
        %v905 = vld [vmem:[%s391 + $0xd90] sm:$0xff]
        %v906 = vld [vmem:[%s391 + $0xd98] sm:$0xff]
        %v907 = vld [vmem:[%s391 + $0xda0] sm:$0xff]
        %v908 = vld [vmem:[%s391 + $0xda8] sm:$0xff]
        %v909 = vld [vmem:[%s391 + $0xdb0] sm:$0xff]
        %v910 = vld [vmem:[%s391 + $0xdb8] sm:$0xff]
        %v911 = vld [vmem:[%s391 + $0xdc0] sm:$0xff]
        %v912 = vld [vmem:[%s391 + $0xdc8] sm:$0xff]
        %v913 = vld [vmem:[%s391 + $0xdd0] sm:$0xff]
        %v914 = vld [vmem:[%s391 + $0xdd8] sm:$0xff]
        %v915 = vld [vmem:[%s391 + $0xde0] sm:$0xff]
        %v916 = vld [vmem:[%s391 + $0xde8] sm:$0xff]
        %v917 = vld [vmem:[%s391 + $0xdf0] sm:$0xff]
        %v918 = vld [vmem:[%s391 + $0xdf8] sm:$0xff]
        %v919 = vld [vmem:[%s391 + $0xe00] sm:$0xff]
        %v920 = vld [vmem:[%s391 + $0xe08] sm:$0xff]
        %v921 = vld [vmem:[%s391 + $0xe10] sm:$0xff]
        %v922 = vld [vmem:[%s391 + $0xe18] sm:$0xff]
        %v923 = vld [vmem:[%s391 + $0xe20] sm:$0xff]
        %v924 = vld [vmem:[%s391 + $0xe28] sm:$0xff]
        %v925 = vld [vmem:[%s391 + $0xe30] sm:$0xff]
        %v926 = vld [vmem:[%s391 + $0xe38] sm:$0xff]
        %v927 = vld [vmem:[%s391 + $0xe40] sm:$0xff]
        %v928 = vld [vmem:[%s391 + $0xe48] sm:$0xff]
        %v929 = vld [vmem:[%s391 + $0xe50] sm:$0xff]
        %v930 = vld [vmem:[%s391 + $0xe58] sm:$0xff]
        %v931 = vld [vmem:[%s391 + $0xe60] sm:$0xff]
        %v932 = vld [vmem:[%s391 + $0xe68] sm:$0xff]
        %v933 = vld [vmem:[%s391 + $0xe70] sm:$0xff]
        %v934 = vld [vmem:[%s391 + $0xe78] sm:$0xff]
        %v935 = vld [vmem:[%s391 + $0xe80] sm:$0xff]
        %v936 = vld [vmem:[%s391 + $0xe88] sm:$0xff]
        %v937 = vld [vmem:[%s391 + $0xe90] sm:$0xff]
        %v938 = vld [vmem:[%s391 + $0xe98] sm:$0xff]
        %v939 = vld [vmem:[%s391 + $0xea0] sm:$0xff]
        %v940 = vld [vmem:[%s391 + $0xea8] sm:$0xff]
        %v941 = vld [vmem:[%s391 + $0xeb0] sm:$0xff]
        %v942 = vld [vmem:[%s391 + $0xeb8] sm:$0xff]
        %v943 = vld [vmem:[%s391 + $0xec0] sm:$0xff]
        %v944 = vld [vmem:[%s391 + $0xec8] sm:$0xff]
        %v945 = vld [vmem:[%s391 + $0xed0] sm:$0xff]
        %v946 = vld [vmem:[%s391 + $0xed8] sm:$0xff]
        %v947 = vld [vmem:[%s391 + $0xee0] sm:$0xff]
        %v948 = vld [vmem:[%s391 + $0xee8] sm:$0xff]
        %v949 = vld [vmem:[%s391 + $0xef0] sm:$0xff]
        %v950 = vld [vmem:[%s391 + $0xef8] sm:$0xff]
        %v951 = vld [vmem:[%s391 + $0xf00] sm:$0xff]
        %v952 = vld [vmem:[%s391 + $0xf08] sm:$0xff]
        %v953 = vld [vmem:[%s391 + $0xf10] sm:$0xff]
        %v954 = vld [vmem:[%s391 + $0xf18] sm:$0xff]
        %v955 = vld [vmem:[%s391 + $0xf20] sm:$0xff]
        %v956 = vld [vmem:[%s391 + $0xf28] sm:$0xff]
        %v957 = vld [vmem:[%s391 + $0xf30] sm:$0xff]
        %v958 = vld [vmem:[%s391 + $0xf38] sm:$0xff]
        %v959 = vld [vmem:[%s391 + $0xf40] sm:$0xff]
        %v960 = vld [vmem:[%s391 + $0xf48] sm:$0xff]
        %v961 = vld [vmem:[%s391 + $0xf50] sm:$0xff]
        %v962 = vld [vmem:[%s391 + $0xf58] sm:$0xff]
        %v963 = vld [vmem:[%s391 + $0xf60] sm:$0xff]
        %v964 = vld [vmem:[%s391 + $0xf68] sm:$0xff]
        %v965 = vld [vmem:[%s391 + $0xf70] sm:$0xff]
        %v966 = vld [vmem:[%s391 + $0xf78] sm:$0xff]
        %v967 = vld [vmem:[%s391 + $0xf80] sm:$0xff]
        %v968 = vld [vmem:[%s391 + $0xf88] sm:$0xff]
        %v969 = vld [vmem:[%s391 + $0xf90] sm:$0xff]
        %v970 = vld [vmem:[%s391 + $0xf98] sm:$0xff]
        %v971 = vld [vmem:[%s391 + $0xfa0] sm:$0xff]
        %v972 = vld [vmem:[%s391 + $0xfa8] sm:$0xff]
        %v973 = vld [vmem:[%s391 + $0xfb0] sm:$0xff]
        %v974 = vld [vmem:[%s391 + $0xfb8] sm:$0xff]
        %v975 = vld [vmem:[%s391 + $0xfc0] sm:$0xff]
        %v976 = vld [vmem:[%s391 + $0xfc8] sm:$0xff]
        %v977 = vld [vmem:[%s391 + $0xfd0] sm:$0xff]
        %v978 = vld [vmem:[%s391 + $0xfd8] sm:$0xff]
        %v979 = vld [vmem:[%s391 + $0xfe0] sm:$0xff]
        %v980 = vld [vmem:[%s391 + $0xfe8] sm:$0xff]
        %v981 = vld [vmem:[%s391 + $0xff0] sm:$0xff]
        %v982 = vld [vmem:[%s391 + $0xff8] sm:$0xff]
        %v983 = vld [vmem:[%s391 + $0x1000] sm:$0xff]
        %v984 = vld [vmem:[%s391 + $0x1008] sm:$0xff]
        %v985 = vld [vmem:[%s391 + $0x1010] sm:$0xff]
        %v986 = vld [vmem:[%s391 + $0x1018] sm:$0xff]
        %v987 = vld [vmem:[%s391 + $0x1020] sm:$0xff]
        %v988 = vld [vmem:[%s391 + $0x1028] sm:$0xff]
        %v989 = vld [vmem:[%s391 + $0x1030] sm:$0xff]
        %v990 = vld [vmem:[%s391 + $0x1038] sm:$0xff]
        %v991 = vld [vmem:[%s391 + $0x1040] sm:$0xff]
        %v992 = vld [vmem:[%s391 + $0x1048] sm:$0xff]
        %v993 = vld [vmem:[%s391 + $0x1050] sm:$0xff]
        %v994 = vld [vmem:[%s391 + $0x1058] sm:$0xff]
        %v995 = vld [vmem:[%s391 + $0x1060] sm:$0xff]
        %v996 = vld [vmem:[%s391 + $0x1068] sm:$0xff]
        %v997 = vld [vmem:[%s391 + $0x1070] sm:$0xff]
        %v998 = vld [vmem:[%s391 + $0x1078] sm:$0xff]
        %v999 = vld [vmem:[%s391 + $0x1080] sm:$0xff]
        %v1000 = vld [vmem:[%s391 + $0x1088] sm:$0xff]
        %v1001 = vld [vmem:[%s391 + $0x1090] sm:$0xff]
        %v1002 = vld [vmem:[%s391 + $0x1098] sm:$0xff]
        %v1003 = vld [vmem:[%s391 + $0x10a0] sm:$0xff]
        %v1004 = vld [vmem:[%s391 + $0x10a8] sm:$0xff]
        %v1005 = vld [vmem:[%s391 + $0x10b0] sm:$0xff]
        %v1006 = vld [vmem:[%s391 + $0x10b8] sm:$0xff]
        %v1007 = vld [vmem:[%s391 + $0x10c0] sm:$0xff]
        %v1008 = vld [vmem:[%s391 + $0x10c8] sm:$0xff]
        %v1009 = vld [vmem:[%s391 + $0x10d0] sm:$0xff]
        %v1010 = vld [vmem:[%s391 + $0x10d8] sm:$0xff]
        %v1011 = vld [vmem:[%s391 + $0x10e0] sm:$0xff]
        %v1012 = vld [vmem:[%s391 + $0x10e8] sm:$0xff]
        %v1013 = vld [vmem:[%s391 + $0x10f0] sm:$0xff]
        %v1014 = vld [vmem:[%s391 + $0x10f8] sm:$0xff]
        %v1015 = vld [vmem:[%s391 + $0x1100] sm:$0xff]
        %v1016 = vld [vmem:[%s391 + $0x1108] sm:$0xff]
        %v1017 = vld [vmem:[%s391 + $0x1110] sm:$0xff]
        %v1018 = vld [vmem:[%s391 + $0x1118] sm:$0xff]
        %v1019 = vld [vmem:[%s391 + $0x1120] sm:$0xff]
        %v1020 = vld [vmem:[%s391 + $0x1128] sm:$0xff]
        %v1021 = vld [vmem:[%s391 + $0x1130] sm:$0xff]
        %v1022 = vld [vmem:[%s391 + $0x1138] sm:$0xff]
        %v1023 = vld [vmem:[%s391 + $0x1140] sm:$0xff]
        %v1024 = vld [vmem:[%s391 + $0x1148] sm:$0xff]
        %v1025 = vld [vmem:[%s391 + $0x1150] sm:$0xff]
        %v1026 = vld [vmem:[%s391 + $0x1158] sm:$0xff]
        %v1027 = vld [vmem:[%s391 + $0x1160] sm:$0xff]
        %v1028 = vld [vmem:[%s391 + $0x1168] sm:$0xff]
        %v1029 = vld [vmem:[%s391 + $0x1170] sm:$0xff]
        %v1030 = vld [vmem:[%s391 + $0x1178] sm:$0xff]
        %v1031 = vld [vmem:[%s391 + $0x1180] sm:$0xff]
        %v1032 = vld [vmem:[%s391 + $0x1188] sm:$0xff]
        %v1033 = vld [vmem:[%s391 + $0x1190] sm:$0xff]
        %v1034 = vld [vmem:[%s391 + $0x1198] sm:$0xff]
        %v1035 = vld [vmem:[%s391 + $0x11a0] sm:$0xff]
        %v1036 = vld [vmem:[%s391 + $0x11a8] sm:$0xff]
        %v1037 = vld [vmem:[%s391 + $0x11b0] sm:$0xff]
        %v1038 = vld [vmem:[%s391 + $0x11b8] sm:$0xff]
        %v1039 = vld [vmem:[%s391 + $0x11c0] sm:$0xff]
        %v1040 = vld [vmem:[%s391 + $0x11c8] sm:$0xff]
        %v1041 = vld [vmem:[%s391 + $0x11d0] sm:$0xff]
        %v1042 = vld [vmem:[%s391 + $0x11d8] sm:$0xff]
        %v1043 = vld [vmem:[%s391 + $0x11e0] sm:$0xff]
        %v1044 = vld [vmem:[%s391 + $0x11e8] sm:$0xff]
        %v1045 = vld [vmem:[%s391 + $0x11f0] sm:$0xff]
        %v1046 = vld [vmem:[%s391 + $0x11f8] sm:$0xff]
        %v1047 = vld [vmem:[%s391 + $0x1200] sm:$0xff]
        %v1048 = vld [vmem:[%s391 + $0x1208] sm:$0xff]
        %v1049 = vld [vmem:[%s391 + $0x1210] sm:$0xff]
        %v1050 = vld [vmem:[%s391 + $0x1218] sm:$0xff]
        %v1051 = vld [vmem:[%s391 + $0x1220] sm:$0xff]
        %v1052 = vld [vmem:[%s391 + $0x1228] sm:$0xff]
        %v1053 = vld [vmem:[%s391 + $0x1230] sm:$0xff]
        %v1054 = vld [vmem:[%s391 + $0x1238] sm:$0xff]
        %v1055 = vld [vmem:[%s391 + $0x1240] sm:$0xff]
        %v1056 = vld [vmem:[%s391 + $0x1248] sm:$0xff]
        %v1057 = vld [vmem:[%s391 + $0x1250] sm:$0xff]
        %v1058 = vld [vmem:[%s391 + $0x1258] sm:$0xff]
        %v1059 = vld [vmem:[%s391 + $0x1260] sm:$0xff]
        %v1060 = vld [vmem:[%s391 + $0x1268] sm:$0xff]
        %v1061 = vld [vmem:[%s391 + $0x1270] sm:$0xff]
        %v1062 = vld [vmem:[%s391 + $0x1278] sm:$0xff]
        %v1063 = vld [vmem:[%s391 + $0x1280] sm:$0xff]
        %v1064 = vld [vmem:[%s391 + $0x1288] sm:$0xff]
        %v1065 = vld [vmem:[%s391 + $0x1290] sm:$0xff]
        %v1066 = vld [vmem:[%s391 + $0x1298] sm:$0xff]
        %v1067 = vld [vmem:[%s391 + $0x12a0] sm:$0xff]
        %v1068 = vld [vmem:[%s391 + $0x12a8] sm:$0xff]
        %v1069 = vld [vmem:[%s391 + $0x12b0] sm:$0xff]
        %v1070 = vld [vmem:[%s391 + $0x12b8] sm:$0xff]
        %v1071 = vld [vmem:[%s391 + $0x12c0] sm:$0xff]
        %v1072 = vld [vmem:[%s391 + $0x12c8] sm:$0xff]
        %v1073 = vld [vmem:[%s391 + $0x12d0] sm:$0xff]
        %v1074 = vld [vmem:[%s391 + $0x12d8] sm:$0xff]
        %v1075 = vld [vmem:[%s391 + $0x12e0] sm:$0xff]
        %v1076 = vld [vmem:[%s391 + $0x12e8] sm:$0xff]
        %v1077 = vld [vmem:[%s391 + $0x12f0] sm:$0xff]
        %v1078 = vld [vmem:[%s391 + $0x12f8] sm:$0xff]
        %v1079 = vld [vmem:[%s391 + $0x1300] sm:$0xff]
        %v1080 = vld [vmem:[%s391 + $0x1308] sm:$0xff]
        %v1081 = vld [vmem:[%s391 + $0x1310] sm:$0xff]
        %v1082 = vld [vmem:[%s391 + $0x1318] sm:$0xff]
        %v1083 = vld [vmem:[%s391 + $0x1320] sm:$0xff]
        %v1084 = vld [vmem:[%s391 + $0x1328] sm:$0xff]
        %v1085 = vld [vmem:[%s391 + $0x1330] sm:$0xff]
        %v1086 = vld [vmem:[%s391 + $0x1338] sm:$0xff]
        %v1087 = vld [vmem:[%s391 + $0x1340] sm:$0xff]
        %v1088 = vld [vmem:[%s391 + $0x1348] sm:$0xff]
        %v1089 = vld [vmem:[%s391 + $0x1350] sm:$0xff]
        %v1090 = vld [vmem:[%s391 + $0x1358] sm:$0xff]
        %v1091 = vld [vmem:[%s391 + $0x1360] sm:$0xff]
        %v1092 = vld [vmem:[%s391 + $0x1368] sm:$0xff]
        %v1093 = vld [vmem:[%s391 + $0x1370] sm:$0xff]
        %v1094 = vld [vmem:[%s391 + $0x1378] sm:$0xff]
        %v1095 = vld [vmem:[%s391 + $0x1380] sm:$0xff]
        %v1096 = vld [vmem:[%s391 + $0x1388] sm:$0xff]
        %v1097 = vld [vmem:[%s391 + $0x1390] sm:$0xff]
        %v1098 = vld [vmem:[%s391 + $0x1398] sm:$0xff]
        %v1099 = vld [vmem:[%s391 + $0x13a0] sm:$0xff]
        %v1100 = vld [vmem:[%s391 + $0x13a8] sm:$0xff]
        %v1101 = vld [vmem:[%s391 + $0x13b0] sm:$0xff]
        %v1102 = vld [vmem:[%s391 + $0x13b8] sm:$0xff]
        %v1103 = vld [vmem:[%s391 + $0x13c0] sm:$0xff]
        %v1104 = vld [vmem:[%s391 + $0x13c8] sm:$0xff]
        %v1105 = vld [vmem:[%s391 + $0x13d0] sm:$0xff]
        %v1106 = vld [vmem:[%s391 + $0x13d8] sm:$0xff]
        %v1107 = vld [vmem:[%s391 + $0x13e0] sm:$0xff]
        %v1108 = vld [vmem:[%s391 + $0x13e8] sm:$0xff]
        %v1109 = vld [vmem:[%s391 + $0x13f0] sm:$0xff]
        %v1110 = vld [vmem:[%s391 + $0x13f8] sm:$0xff]
        %1111 = vmatpush.msra.mxu0 %v531
        %1112 = vmatpush.msra.mxu0 %v527
        %1113 = vmatpush.msra.mxu0 %v523
        %1114 = vmatpush.msra.mxu0 %v519
        %1115 = vmatpush.msra.mxu0 %v515
        %1116 = vmatpush.msra.mxu0 %v511
        %1117 = vmatpush.msra.mxu0 %v507
        %1118 = vmatpush.msra.mxu0 %v503
        %1119 = vmatpush.msra.mxu0 %v499
        %1120 = vmatpush.msra.mxu0 %v495
        %1121 = vmatpush.msra.mxu0 %v491
        %1122 = vmatpush.msra.mxu0 %v487
        %1123 = vmatpush.msra.mxu0 %v483
        %1124 = vmatpush.msra.mxu0 %v479
        %1125 = vmatpush.msra.mxu0 %v475
        %1126 = vmatpush.msra.mxu0 %v471
        %1127 = vmatmul.f32.gmra.mxu0 %v461
        %v1128 = vpop.f32.mrf.mxu0
        %v1129 = vadd.f32 0.0, %v1128
        %1130 = vdwg.mxu0
        %1131 = vmatpush.msra.mxu0 %v595
        %1132 = vmatpush.msra.mxu0 %v591
        %1133 = vmatpush.msra.mxu0 %v587
        %1134 = vmatpush.msra.mxu0 %v583
        %1135 = vmatpush.msra.mxu0 %v579
        %1136 = vmatpush.msra.mxu0 %v575
        %1137 = vmatpush.msra.mxu0 %v571
        %1138 = vmatpush.msra.mxu0 %v567
        %1139 = vmatpush.msra.mxu0 %v563
        %1140 = vmatpush.msra.mxu0 %v559
        %1141 = vmatpush.msra.mxu0 %v555
        %1142 = vmatpush.msra.mxu0 %v551
        %1143 = vmatpush.msra.mxu0 %v547
        %1144 = vmatpush.msra.mxu0 %v543
        %1145 = vmatpush.msra.mxu0 %v539
        %1146 = vmatpush.msra.mxu0 %v535
        %1147 = vmatmul.f32.gmra.mxu0 %v462
        %v1148 = vpop.f32.mrf.mxu0
        %v1149 = vadd.f32 %v1129, %v1148
        %1150 = vdwg.mxu0
        %1151 = vmatpush.msra.mxu0 %v659
        %1152 = vmatpush.msra.mxu0 %v655
        %1153 = vmatpush.msra.mxu0 %v651
        %1154 = vmatpush.msra.mxu0 %v647
        %1155 = vmatpush.msra.mxu0 %v643
        %1156 = vmatpush.msra.mxu0 %v639
        %1157 = vmatpush.msra.mxu0 %v635
        %1158 = vmatpush.msra.mxu0 %v631
        %1159 = vmatpush.msra.mxu0 %v627
        %1160 = vmatpush.msra.mxu0 %v623
        %1161 = vmatpush.msra.mxu0 %v619
        %1162 = vmatpush.msra.mxu0 %v615
        %1163 = vmatpush.msra.mxu0 %v611
        %1164 = vmatpush.msra.mxu0 %v607
        %1165 = vmatpush.msra.mxu0 %v603
        %1166 = vmatpush.msra.mxu0 %v599
        %1167 = vmatmul.f32.gmra.mxu0 %v463
        %v1168 = vpop.f32.mrf.mxu0
        %v1169 = vadd.f32 %v1149, %v1168
        %1170 = vdwg.mxu0
        %1171 = vmatpush.msra.mxu0 %v723
        %1172 = vmatpush.msra.mxu0 %v719
        %1173 = vmatpush.msra.mxu0 %v715
        %1174 = vmatpush.msra.mxu0 %v711
        %1175 = vmatpush.msra.mxu0 %v707
        %1176 = vmatpush.msra.mxu0 %v703
        %1177 = vmatpush.msra.mxu0 %v699
        %1178 = vmatpush.msra.mxu0 %v695
        %1179 = vmatpush.msra.mxu0 %v691
        %1180 = vmatpush.msra.mxu0 %v687
        %1181 = vmatpush.msra.mxu0 %v683
        %1182 = vmatpush.msra.mxu0 %v679
        %1183 = vmatpush.msra.mxu0 %v675
        %1184 = vmatpush.msra.mxu0 %v671
        %1185 = vmatpush.msra.mxu0 %v667
        %1186 = vmatpush.msra.mxu0 %v663
        %1187 = vmatmul.f32.gmra.mxu0 %v464
        %v1188 = vpop.f32.mrf.mxu0
        %v1189 = vadd.f32 %v1169, %v1188
        %1190 = vdwg.mxu0
        %1191 = vmatpush.msra.mxu0 %v787
        %1192 = vmatpush.msra.mxu0 %v783
        %1193 = vmatpush.msra.mxu0 %v779
        %1194 = vmatpush.msra.mxu0 %v775
        %1195 = vmatpush.msra.mxu0 %v771
        %1196 = vmatpush.msra.mxu0 %v767
        %1197 = vmatpush.msra.mxu0 %v763
        %1198 = vmatpush.msra.mxu0 %v759
        %1199 = vmatpush.msra.mxu0 %v755
        %1200 = vmatpush.msra.mxu0 %v751
        %1201 = vmatpush.msra.mxu0 %v747
        %1202 = vmatpush.msra.mxu0 %v743
        %1203 = vmatpush.msra.mxu0 %v739
        %1204 = vmatpush.msra.mxu0 %v735
        %1205 = vmatpush.msra.mxu0 %v731
        %1206 = vmatpush.msra.mxu0 %v727
        %1207 = vmatmul.f32.gmra.mxu0 %v465
        %v1208 = vpop.f32.mrf.mxu0
        %v1209 = vadd.f32 %v1189, %v1208
        %1210 = vdwg.mxu0
        %1211 = vmatpush.msra.mxu0 %v851
        %1212 = vmatpush.msra.mxu0 %v847
        %1213 = vmatpush.msra.mxu0 %v843
        %1214 = vmatpush.msra.mxu0 %v839
        %1215 = vmatpush.msra.mxu0 %v835
        %1216 = vmatpush.msra.mxu0 %v831
        %1217 = vmatpush.msra.mxu0 %v827
        %1218 = vmatpush.msra.mxu0 %v823
        %1219 = vmatpush.msra.mxu0 %v819
        %1220 = vmatpush.msra.mxu0 %v815
        %1221 = vmatpush.msra.mxu0 %v811
        %1222 = vmatpush.msra.mxu0 %v807
        %1223 = vmatpush.msra.mxu0 %v803
        %1224 = vmatpush.msra.mxu0 %v799
        %1225 = vmatpush.msra.mxu0 %v795
        %1226 = vmatpush.msra.mxu0 %v791
        %1227 = vmatmul.f32.gmra.mxu0 %v466
        %v1228 = vpop.f32.mrf.mxu0
        %v1229 = vadd.f32 %v1209, %v1228
        %1230 = vdwg.mxu0
        %1231 = vmatpush.msra.mxu0 %v915
        %1232 = vmatpush.msra.mxu0 %v911
        %1233 = vmatpush.msra.mxu0 %v907
        %1234 = vmatpush.msra.mxu0 %v903
        %1235 = vmatpush.msra.mxu0 %v899
        %1236 = vmatpush.msra.mxu0 %v895
        %1237 = vmatpush.msra.mxu0 %v891
        %1238 = vmatpush.msra.mxu0 %v887
        %1239 = vmatpush.msra.mxu0 %v883
        %1240 = vmatpush.msra.mxu0 %v879
        %1241 = vmatpush.msra.mxu0 %v875
        %1242 = vmatpush.msra.mxu0 %v871
        %1243 = vmatpush.msra.mxu0 %v867
        %1244 = vmatpush.msra.mxu0 %v863
        %1245 = vmatpush.msra.mxu0 %v859
        %1246 = vmatpush.msra.mxu0 %v855
        %1247 = vmatmul.f32.gmra.mxu0 %v467
        %v1248 = vpop.f32.mrf.mxu0
        %v1249 = vadd.f32 %v1229, %v1248
        %1250 = vdwg.mxu0
        %1251 = vmatpush.msra.mxu0 %v979
        %1252 = vmatpush.msra.mxu0 %v975
        %1253 = vmatpush.msra.mxu0 %v971
        %1254 = vmatpush.msra.mxu0 %v967
        %1255 = vmatpush.msra.mxu0 %v963
        %1256 = vmatpush.msra.mxu0 %v959
        %1257 = vmatpush.msra.mxu0 %v955
        %1258 = vmatpush.msra.mxu0 %v951
        %1259 = vmatpush.msra.mxu0 %v947
        %1260 = vmatpush.msra.mxu0 %v943
        %1261 = vmatpush.msra.mxu0 %v939
        %1262 = vmatpush.msra.mxu0 %v935
        %1263 = vmatpush.msra.mxu0 %v931
        %1264 = vmatpush.msra.mxu0 %v927
        %1265 = vmatpush.msra.mxu0 %v923
        %1266 = vmatpush.msra.mxu0 %v919
        %1267 = vmatmul.f32.gmra.mxu0 %v468
        %v1268 = vpop.f32.mrf.mxu0
        %v1269 = vadd.f32 %v1249, %v1268
        %1270 = vdwg.mxu0
        %1271 = vmatpush.msra.mxu0 %v1043
        %1272 = vmatpush.msra.mxu0 %v1039
        %1273 = vmatpush.msra.mxu0 %v1035
        %1274 = vmatpush.msra.mxu0 %v1031
        %1275 = vmatpush.msra.mxu0 %v1027
        %1276 = vmatpush.msra.mxu0 %v1023
        %1277 = vmatpush.msra.mxu0 %v1019
        %1278 = vmatpush.msra.mxu0 %v1015
        %1279 = vmatpush.msra.mxu0 %v1011
        %1280 = vmatpush.msra.mxu0 %v1007
        %1281 = vmatpush.msra.mxu0 %v1003
        %1282 = vmatpush.msra.mxu0 %v999
        %1283 = vmatpush.msra.mxu0 %v995
        %1284 = vmatpush.msra.mxu0 %v991
        %1285 = vmatpush.msra.mxu0 %v987
        %1286 = vmatpush.msra.mxu0 %v983
        %1287 = vmatmul.f32.gmra.mxu0 %v469
        %v1288 = vpop.f32.mrf.mxu0
        %v1289 = vadd.f32 %v1269, %v1288
        %1290 = vdwg.mxu0
        %1291 = vmatpush.msra.mxu0 %v1107
        %1292 = vmatpush.msra.mxu0 %v1103
        %1293 = vmatpush.msra.mxu0 %v1099
        %1294 = vmatpush.msra.mxu0 %v1095
        %1295 = vmatpush.msra.mxu0 %v1091
        %1296 = vmatpush.msra.mxu0 %v1087
        %1297 = vmatpush.msra.mxu0 %v1083
        %1298 = vmatpush.msra.mxu0 %v1079
        %1299 = vmatpush.msra.mxu0 %v1075
        %1300 = vmatpush.msra.mxu0 %v1071
        %1301 = vmatpush.msra.mxu0 %v1067
        %1302 = vmatpush.msra.mxu0 %v1063
        %1303 = vmatpush.msra.mxu0 %v1059
        %1304 = vmatpush.msra.mxu0 %v1055
        %1305 = vmatpush.msra.mxu0 %v1051
        %1306 = vmatpush.msra.mxu0 %v1047
        %1307 = vmatmul.f32.gmra.mxu0 %v470
        %v1308 = vpop.f32.mrf.mxu0
        %v1309 = vadd.f32 %v1289, %v1308
        %1310 = vdwg.mxu0
        %1311 = vmatpush.msra.mxu0 %v532
        %1312 = vmatpush.msra.mxu0 %v528
        %1313 = vmatpush.msra.mxu0 %v524
        %1314 = vmatpush.msra.mxu0 %v520
        %1315 = vmatpush.msra.mxu0 %v516
        %1316 = vmatpush.msra.mxu0 %v512
        %1317 = vmatpush.msra.mxu0 %v508
        %1318 = vmatpush.msra.mxu0 %v504
        %1319 = vmatpush.msra.mxu0 %v500
        %1320 = vmatpush.msra.mxu0 %v496
        %1321 = vmatpush.msra.mxu0 %v492
        %1322 = vmatpush.msra.mxu0 %v488
        %1323 = vmatpush.msra.mxu0 %v484
        %1324 = vmatpush.msra.mxu0 %v480
        %1325 = vmatpush.msra.mxu0 %v476
        %1326 = vmatpush.msra.mxu0 %v472
        %1327 = vmatmul.f32.gmra.mxu0 %v461
        %v1328 = vpop.f32.mrf.mxu0
        %v1329 = vadd.f32 0.0, %v1328
        %1330 = vdwg.mxu0
        %1331 = vmatpush.msra.mxu0 %v596
        %1332 = vmatpush.msra.mxu0 %v592
        %1333 = vmatpush.msra.mxu0 %v588
        %1334 = vmatpush.msra.mxu0 %v584
        %1335 = vmatpush.msra.mxu0 %v580
        %1336 = vmatpush.msra.mxu0 %v576
        %1337 = vmatpush.msra.mxu0 %v572
        %1338 = vmatpush.msra.mxu0 %v568
        %1339 = vmatpush.msra.mxu0 %v564
        %1340 = vmatpush.msra.mxu0 %v560
        %1341 = vmatpush.msra.mxu0 %v556
        %1342 = vmatpush.msra.mxu0 %v552
        %1343 = vmatpush.msra.mxu0 %v548
        %1344 = vmatpush.msra.mxu0 %v544
        %1345 = vmatpush.msra.mxu0 %v540
        %1346 = vmatpush.msra.mxu0 %v536
        %1347 = vmatmul.f32.gmra.mxu0 %v462
        %v1348 = vpop.f32.mrf.mxu0
        %v1349 = vadd.f32 %v1329, %v1348
        %1350 = vdwg.mxu0
        %1351 = vmatpush.msra.mxu0 %v660
        %1352 = vmatpush.msra.mxu0 %v656
        %1353 = vmatpush.msra.mxu0 %v652
        %1354 = vmatpush.msra.mxu0 %v648
        %1355 = vmatpush.msra.mxu0 %v644
        %1356 = vmatpush.msra.mxu0 %v640
        %1357 = vmatpush.msra.mxu0 %v636
        %1358 = vmatpush.msra.mxu0 %v632
        %1359 = vmatpush.msra.mxu0 %v628
        %1360 = vmatpush.msra.mxu0 %v624
        %1361 = vmatpush.msra.mxu0 %v620
        %1362 = vmatpush.msra.mxu0 %v616
        %1363 = vmatpush.msra.mxu0 %v612
        %1364 = vmatpush.msra.mxu0 %v608
        %1365 = vmatpush.msra.mxu0 %v604
        %1366 = vmatpush.msra.mxu0 %v600
        %1367 = vmatmul.f32.gmra.mxu0 %v463
        %v1368 = vpop.f32.mrf.mxu0
        %v1369 = vadd.f32 %v1349, %v1368
        %1370 = vdwg.mxu0
        %1371 = vmatpush.msra.mxu0 %v724
        %1372 = vmatpush.msra.mxu0 %v720
        %1373 = vmatpush.msra.mxu0 %v716
        %1374 = vmatpush.msra.mxu0 %v712
        %1375 = vmatpush.msra.mxu0 %v708
        %1376 = vmatpush.msra.mxu0 %v704
        %1377 = vmatpush.msra.mxu0 %v700
        %1378 = vmatpush.msra.mxu0 %v696
        %1379 = vmatpush.msra.mxu0 %v692
        %1380 = vmatpush.msra.mxu0 %v688
        %1381 = vmatpush.msra.mxu0 %v684
        %1382 = vmatpush.msra.mxu0 %v680
        %1383 = vmatpush.msra.mxu0 %v676
        %1384 = vmatpush.msra.mxu0 %v672
        %1385 = vmatpush.msra.mxu0 %v668
        %1386 = vmatpush.msra.mxu0 %v664
        %1387 = vmatmul.f32.gmra.mxu0 %v464
        %v1388 = vpop.f32.mrf.mxu0
        %v1389 = vadd.f32 %v1369, %v1388
        %1390 = vdwg.mxu0
        %1391 = vmatpush.msra.mxu0 %v788
        %1392 = vmatpush.msra.mxu0 %v784
        %1393 = vmatpush.msra.mxu0 %v780
        %1394 = vmatpush.msra.mxu0 %v776
        %1395 = vmatpush.msra.mxu0 %v772
        %1396 = vmatpush.msra.mxu0 %v768
        %1397 = vmatpush.msra.mxu0 %v764
        %1398 = vmatpush.msra.mxu0 %v760
        %1399 = vmatpush.msra.mxu0 %v756
        %1400 = vmatpush.msra.mxu0 %v752
        %1401 = vmatpush.msra.mxu0 %v748
        %1402 = vmatpush.msra.mxu0 %v744
        %1403 = vmatpush.msra.mxu0 %v740
        %1404 = vmatpush.msra.mxu0 %v736
        %1405 = vmatpush.msra.mxu0 %v732
        %1406 = vmatpush.msra.mxu0 %v728
        %1407 = vmatmul.f32.gmra.mxu0 %v465
        %v1408 = vpop.f32.mrf.mxu0
        %v1409 = vadd.f32 %v1389, %v1408
        %1410 = vdwg.mxu0
        %1411 = vmatpush.msra.mxu0 %v852
        %1412 = vmatpush.msra.mxu0 %v848
        %1413 = vmatpush.msra.mxu0 %v844
        %1414 = vmatpush.msra.mxu0 %v840
        %1415 = vmatpush.msra.mxu0 %v836
        %1416 = vmatpush.msra.mxu0 %v832
        %1417 = vmatpush.msra.mxu0 %v828
        %1418 = vmatpush.msra.mxu0 %v824
        %1419 = vmatpush.msra.mxu0 %v820
        %1420 = vmatpush.msra.mxu0 %v816
        %1421 = vmatpush.msra.mxu0 %v812
        %1422 = vmatpush.msra.mxu0 %v808
        %1423 = vmatpush.msra.mxu0 %v804
        %1424 = vmatpush.msra.mxu0 %v800
        %1425 = vmatpush.msra.mxu0 %v796
        %1426 = vmatpush.msra.mxu0 %v792
        %1427 = vmatmul.f32.gmra.mxu0 %v466
        %v1428 = vpop.f32.mrf.mxu0
        %v1429 = vadd.f32 %v1409, %v1428
        %1430 = vdwg.mxu0
        %1431 = vmatpush.msra.mxu0 %v916
        %1432 = vmatpush.msra.mxu0 %v912
        %1433 = vmatpush.msra.mxu0 %v908
        %1434 = vmatpush.msra.mxu0 %v904
        %1435 = vmatpush.msra.mxu0 %v900
        %1436 = vmatpush.msra.mxu0 %v896
        %1437 = vmatpush.msra.mxu0 %v892
        %1438 = vmatpush.msra.mxu0 %v888
        %1439 = vmatpush.msra.mxu0 %v884
        %1440 = vmatpush.msra.mxu0 %v880
        %1441 = vmatpush.msra.mxu0 %v876
        %1442 = vmatpush.msra.mxu0 %v872
        %1443 = vmatpush.msra.mxu0 %v868
        %1444 = vmatpush.msra.mxu0 %v864
        %1445 = vmatpush.msra.mxu0 %v860
        %1446 = vmatpush.msra.mxu0 %v856
        %1447 = vmatmul.f32.gmra.mxu0 %v467
        %v1448 = vpop.f32.mrf.mxu0
        %v1449 = vadd.f32 %v1429, %v1448
        %1450 = vdwg.mxu0
        %1451 = vmatpush.msra.mxu0 %v980
        %1452 = vmatpush.msra.mxu0 %v976
        %1453 = vmatpush.msra.mxu0 %v972
        %1454 = vmatpush.msra.mxu0 %v968
        %1455 = vmatpush.msra.mxu0 %v964
        %1456 = vmatpush.msra.mxu0 %v960
        %1457 = vmatpush.msra.mxu0 %v956
        %1458 = vmatpush.msra.mxu0 %v952
        %1459 = vmatpush.msra.mxu0 %v948
        %1460 = vmatpush.msra.mxu0 %v944
        %1461 = vmatpush.msra.mxu0 %v940
        %1462 = vmatpush.msra.mxu0 %v936
        %1463 = vmatpush.msra.mxu0 %v932
        %1464 = vmatpush.msra.mxu0 %v928
        %1465 = vmatpush.msra.mxu0 %v924
        %1466 = vmatpush.msra.mxu0 %v920
        %1467 = vmatmul.f32.gmra.mxu0 %v468
        %v1468 = vpop.f32.mrf.mxu0
        %v1469 = vadd.f32 %v1449, %v1468
        %1470 = vdwg.mxu0
        %1471 = vmatpush.msra.mxu0 %v1044
        %1472 = vmatpush.msra.mxu0 %v1040
        %1473 = vmatpush.msra.mxu0 %v1036
        %1474 = vmatpush.msra.mxu0 %v1032
        %1475 = vmatpush.msra.mxu0 %v1028
        %1476 = vmatpush.msra.mxu0 %v1024
        %1477 = vmatpush.msra.mxu0 %v1020
        %1478 = vmatpush.msra.mxu0 %v1016
        %1479 = vmatpush.msra.mxu0 %v1012
        %1480 = vmatpush.msra.mxu0 %v1008
        %1481 = vmatpush.msra.mxu0 %v1004
        %1482 = vmatpush.msra.mxu0 %v1000
        %1483 = vmatpush.msra.mxu0 %v996
        %1484 = vmatpush.msra.mxu0 %v992
        %1485 = vmatpush.msra.mxu0 %v988
        %1486 = vmatpush.msra.mxu0 %v984
        %1487 = vmatmul.f32.gmra.mxu0 %v469
        %v1488 = vpop.f32.mrf.mxu0
        %v1489 = vadd.f32 %v1469, %v1488
        %1490 = vdwg.mxu0
        %1491 = vmatpush.msra.mxu0 %v1108
        %1492 = vmatpush.msra.mxu0 %v1104
        %1493 = vmatpush.msra.mxu0 %v1100
        %1494 = vmatpush.msra.mxu0 %v1096
        %1495 = vmatpush.msra.mxu0 %v1092
        %1496 = vmatpush.msra.mxu0 %v1088
        %1497 = vmatpush.msra.mxu0 %v1084
        %1498 = vmatpush.msra.mxu0 %v1080
        %1499 = vmatpush.msra.mxu0 %v1076
        %1500 = vmatpush.msra.mxu0 %v1072
        %1501 = vmatpush.msra.mxu0 %v1068
        %1502 = vmatpush.msra.mxu0 %v1064
        %1503 = vmatpush.msra.mxu0 %v1060
        %1504 = vmatpush.msra.mxu0 %v1056
        %1505 = vmatpush.msra.mxu0 %v1052
        %1506 = vmatpush.msra.mxu0 %v1048
        %1507 = vmatmul.f32.gmra.mxu0 %v470
        %v1508 = vpop.f32.mrf.mxu0
        %v1509 = vadd.f32 %v1489, %v1508
        %1510 = vdwg.mxu0
        %1511 = vmatpush.msra.mxu0 %v533
        %1512 = vmatpush.msra.mxu0 %v529
        %1513 = vmatpush.msra.mxu0 %v525
        %1514 = vmatpush.msra.mxu0 %v521
        %1515 = vmatpush.msra.mxu0 %v517
        %1516 = vmatpush.msra.mxu0 %v513
        %1517 = vmatpush.msra.mxu0 %v509
        %1518 = vmatpush.msra.mxu0 %v505
        %1519 = vmatpush.msra.mxu0 %v501
        %1520 = vmatpush.msra.mxu0 %v497
        %1521 = vmatpush.msra.mxu0 %v493
        %1522 = vmatpush.msra.mxu0 %v489
        %1523 = vmatpush.msra.mxu0 %v485
        %1524 = vmatpush.msra.mxu0 %v481
        %1525 = vmatpush.msra.mxu0 %v477
        %1526 = vmatpush.msra.mxu0 %v473
        %1527 = vmatmul.f32.gmra.mxu0 %v461
        %v1528 = vpop.f32.mrf.mxu0
        %v1529 = vadd.f32 0.0, %v1528
        %1530 = vdwg.mxu0
        %1531 = vmatpush.msra.mxu0 %v597
        %1532 = vmatpush.msra.mxu0 %v593
        %1533 = vmatpush.msra.mxu0 %v589
        %1534 = vmatpush.msra.mxu0 %v585
        %1535 = vmatpush.msra.mxu0 %v581
        %1536 = vmatpush.msra.mxu0 %v577
        %1537 = vmatpush.msra.mxu0 %v573
        %1538 = vmatpush.msra.mxu0 %v569
        %1539 = vmatpush.msra.mxu0 %v565
        %1540 = vmatpush.msra.mxu0 %v561
        %1541 = vmatpush.msra.mxu0 %v557
        %1542 = vmatpush.msra.mxu0 %v553
        %1543 = vmatpush.msra.mxu0 %v549
        %1544 = vmatpush.msra.mxu0 %v545
        %1545 = vmatpush.msra.mxu0 %v541
        %1546 = vmatpush.msra.mxu0 %v537
        %1547 = vmatmul.f32.gmra.mxu0 %v462
        %v1548 = vpop.f32.mrf.mxu0
        %v1549 = vadd.f32 %v1529, %v1548
        %1550 = vdwg.mxu0
        %1551 = vmatpush.msra.mxu0 %v661
        %1552 = vmatpush.msra.mxu0 %v657
        %1553 = vmatpush.msra.mxu0 %v653
        %1554 = vmatpush.msra.mxu0 %v649
        %1555 = vmatpush.msra.mxu0 %v645
        %1556 = vmatpush.msra.mxu0 %v641
        %1557 = vmatpush.msra.mxu0 %v637
        %1558 = vmatpush.msra.mxu0 %v633
        %1559 = vmatpush.msra.mxu0 %v629
        %1560 = vmatpush.msra.mxu0 %v625
        %1561 = vmatpush.msra.mxu0 %v621
        %1562 = vmatpush.msra.mxu0 %v617
        %1563 = vmatpush.msra.mxu0 %v613
        %1564 = vmatpush.msra.mxu0 %v609
        %1565 = vmatpush.msra.mxu0 %v605
        %1566 = vmatpush.msra.mxu0 %v601
        %1567 = vmatmul.f32.gmra.mxu0 %v463
        %v1568 = vpop.f32.mrf.mxu0
        %v1569 = vadd.f32 %v1549, %v1568
        %1570 = vdwg.mxu0
        %1571 = vmatpush.msra.mxu0 %v725
        %1572 = vmatpush.msra.mxu0 %v721
        %1573 = vmatpush.msra.mxu0 %v717
        %1574 = vmatpush.msra.mxu0 %v713
        %1575 = vmatpush.msra.mxu0 %v709
        %1576 = vmatpush.msra.mxu0 %v705
        %1577 = vmatpush.msra.mxu0 %v701
        %1578 = vmatpush.msra.mxu0 %v697
        %1579 = vmatpush.msra.mxu0 %v693
        %1580 = vmatpush.msra.mxu0 %v689
        %1581 = vmatpush.msra.mxu0 %v685
        %1582 = vmatpush.msra.mxu0 %v681
        %1583 = vmatpush.msra.mxu0 %v677
        %1584 = vmatpush.msra.mxu0 %v673
        %1585 = vmatpush.msra.mxu0 %v669
        %1586 = vmatpush.msra.mxu0 %v665
        %1587 = vmatmul.f32.gmra.mxu0 %v464
        %v1588 = vpop.f32.mrf.mxu0
        %v1589 = vadd.f32 %v1569, %v1588
        %1590 = vdwg.mxu0
        %1591 = vmatpush.msra.mxu0 %v789
        %1592 = vmatpush.msra.mxu0 %v785
        %1593 = vmatpush.msra.mxu0 %v781
        %1594 = vmatpush.msra.mxu0 %v777
        %1595 = vmatpush.msra.mxu0 %v773
        %1596 = vmatpush.msra.mxu0 %v769
        %1597 = vmatpush.msra.mxu0 %v765
        %1598 = vmatpush.msra.mxu0 %v761
        %1599 = vmatpush.msra.mxu0 %v757
        %1600 = vmatpush.msra.mxu0 %v753
        %1601 = vmatpush.msra.mxu0 %v749
        %1602 = vmatpush.msra.mxu0 %v745
        %1603 = vmatpush.msra.mxu0 %v741
        %1604 = vmatpush.msra.mxu0 %v737
        %1605 = vmatpush.msra.mxu0 %v733
        %1606 = vmatpush.msra.mxu0 %v729
        %1607 = vmatmul.f32.gmra.mxu0 %v465
        %v1608 = vpop.f32.mrf.mxu0
        %v1609 = vadd.f32 %v1589, %v1608
        %1610 = vdwg.mxu0
        %1611 = vmatpush.msra.mxu0 %v853
        %1612 = vmatpush.msra.mxu0 %v849
        %1613 = vmatpush.msra.mxu0 %v845
        %1614 = vmatpush.msra.mxu0 %v841
        %1615 = vmatpush.msra.mxu0 %v837
        %1616 = vmatpush.msra.mxu0 %v833
        %1617 = vmatpush.msra.mxu0 %v829
        %1618 = vmatpush.msra.mxu0 %v825
        %1619 = vmatpush.msra.mxu0 %v821
        %1620 = vmatpush.msra.mxu0 %v817
        %1621 = vmatpush.msra.mxu0 %v813
        %1622 = vmatpush.msra.mxu0 %v809
        %1623 = vmatpush.msra.mxu0 %v805
        %1624 = vmatpush.msra.mxu0 %v801
        %1625 = vmatpush.msra.mxu0 %v797
        %1626 = vmatpush.msra.mxu0 %v793
        %1627 = vmatmul.f32.gmra.mxu0 %v466
        %v1628 = vpop.f32.mrf.mxu0
        %v1629 = vadd.f32 %v1609, %v1628
        %1630 = vdwg.mxu0
        %1631 = vmatpush.msra.mxu0 %v917
        %1632 = vmatpush.msra.mxu0 %v913
        %1633 = vmatpush.msra.mxu0 %v909
        %1634 = vmatpush.msra.mxu0 %v905
        %1635 = vmatpush.msra.mxu0 %v901
        %1636 = vmatpush.msra.mxu0 %v897
        %1637 = vmatpush.msra.mxu0 %v893
        %1638 = vmatpush.msra.mxu0 %v889
        %1639 = vmatpush.msra.mxu0 %v885
        %1640 = vmatpush.msra.mxu0 %v881
        %1641 = vmatpush.msra.mxu0 %v877
        %1642 = vmatpush.msra.mxu0 %v873
        %1643 = vmatpush.msra.mxu0 %v869
        %1644 = vmatpush.msra.mxu0 %v865
        %1645 = vmatpush.msra.mxu0 %v861
        %1646 = vmatpush.msra.mxu0 %v857
        %1647 = vmatmul.f32.gmra.mxu0 %v467
        %v1648 = vpop.f32.mrf.mxu0
        %v1649 = vadd.f32 %v1629, %v1648
        %1650 = vdwg.mxu0
        %1651 = vmatpush.msra.mxu0 %v981
        %1652 = vmatpush.msra.mxu0 %v977
        %1653 = vmatpush.msra.mxu0 %v973
        %1654 = vmatpush.msra.mxu0 %v969
        %1655 = vmatpush.msra.mxu0 %v965
        %1656 = vmatpush.msra.mxu0 %v961
        %1657 = vmatpush.msra.mxu0 %v957
        %1658 = vmatpush.msra.mxu0 %v953
        %1659 = vmatpush.msra.mxu0 %v949
        %1660 = vmatpush.msra.mxu0 %v945
        %1661 = vmatpush.msra.mxu0 %v941
        %1662 = vmatpush.msra.mxu0 %v937
        %1663 = vmatpush.msra.mxu0 %v933
        %1664 = vmatpush.msra.mxu0 %v929
        %1665 = vmatpush.msra.mxu0 %v925
        %1666 = vmatpush.msra.mxu0 %v921
        %1667 = vmatmul.f32.gmra.mxu0 %v468
        %v1668 = vpop.f32.mrf.mxu0
        %v1669 = vadd.f32 %v1649, %v1668
        %1670 = vdwg.mxu0
        %1671 = vmatpush.msra.mxu0 %v1045
        %1672 = vmatpush.msra.mxu0 %v1041
        %1673 = vmatpush.msra.mxu0 %v1037
        %1674 = vmatpush.msra.mxu0 %v1033
        %1675 = vmatpush.msra.mxu0 %v1029
        %1676 = vmatpush.msra.mxu0 %v1025
        %1677 = vmatpush.msra.mxu0 %v1021
        %1678 = vmatpush.msra.mxu0 %v1017
        %1679 = vmatpush.msra.mxu0 %v1013
        %1680 = vmatpush.msra.mxu0 %v1009
        %1681 = vmatpush.msra.mxu0 %v1005
        %1682 = vmatpush.msra.mxu0 %v1001
        %1683 = vmatpush.msra.mxu0 %v997
        %1684 = vmatpush.msra.mxu0 %v993
        %1685 = vmatpush.msra.mxu0 %v989
        %1686 = vmatpush.msra.mxu0 %v985
        %1687 = vmatmul.f32.gmra.mxu0 %v469
        %v1688 = vpop.f32.mrf.mxu0
        %v1689 = vadd.f32 %v1669, %v1688
        %1690 = vdwg.mxu0
        %1691 = vmatpush.msra.mxu0 %v1109
        %1692 = vmatpush.msra.mxu0 %v1105
        %1693 = vmatpush.msra.mxu0 %v1101
        %1694 = vmatpush.msra.mxu0 %v1097
        %1695 = vmatpush.msra.mxu0 %v1093
        %1696 = vmatpush.msra.mxu0 %v1089
        %1697 = vmatpush.msra.mxu0 %v1085
        %1698 = vmatpush.msra.mxu0 %v1081
        %1699 = vmatpush.msra.mxu0 %v1077
        %1700 = vmatpush.msra.mxu0 %v1073
        %1701 = vmatpush.msra.mxu0 %v1069
        %1702 = vmatpush.msra.mxu0 %v1065
        %1703 = vmatpush.msra.mxu0 %v1061
        %1704 = vmatpush.msra.mxu0 %v1057
        %1705 = vmatpush.msra.mxu0 %v1053
        %1706 = vmatpush.msra.mxu0 %v1049
        %1707 = vmatmul.f32.gmra.mxu0 %v470
        %v1708 = vpop.f32.mrf.mxu0
        %v1709 = vadd.f32 %v1689, %v1708
        %1710 = vdwg.mxu0
        %1711 = vmatpush.msra.mxu0 %v534
        %1712 = vmatpush.msra.mxu0 %v530
        %1713 = vmatpush.msra.mxu0 %v526
        %1714 = vmatpush.msra.mxu0 %v522
        %1715 = vmatpush.msra.mxu0 %v518
        %1716 = vmatpush.msra.mxu0 %v514
        %1717 = vmatpush.msra.mxu0 %v510
        %1718 = vmatpush.msra.mxu0 %v506
        %1719 = vmatpush.msra.mxu0 %v502
        %1720 = vmatpush.msra.mxu0 %v498
        %1721 = vmatpush.msra.mxu0 %v494
        %1722 = vmatpush.msra.mxu0 %v490
        %1723 = vmatpush.msra.mxu0 %v486
        %1724 = vmatpush.msra.mxu0 %v482
        %1725 = vmatpush.msra.mxu0 %v478
        %1726 = vmatpush.msra.mxu0 %v474
        %1727 = vmatmul.f32.gmra.mxu0 %v461
        %v1728 = vpop.f32.mrf.mxu0
        %v1729 = vadd.f32 0.0, %v1728
        %1730 = vdwg.mxu0
        %1731 = vmatpush.msra.mxu0 %v598
        %1732 = vmatpush.msra.mxu0 %v594
        %1733 = vmatpush.msra.mxu0 %v590
        %1734 = vmatpush.msra.mxu0 %v586
        %1735 = vmatpush.msra.mxu0 %v582
        %1736 = vmatpush.msra.mxu0 %v578
        %1737 = vmatpush.msra.mxu0 %v574
        %1738 = vmatpush.msra.mxu0 %v570
        %1739 = vmatpush.msra.mxu0 %v566
        %1740 = vmatpush.msra.mxu0 %v562
        %1741 = vmatpush.msra.mxu0 %v558
        %1742 = vmatpush.msra.mxu0 %v554
        %1743 = vmatpush.msra.mxu0 %v550
        %1744 = vmatpush.msra.mxu0 %v546
        %1745 = vmatpush.msra.mxu0 %v542
        %1746 = vmatpush.msra.mxu0 %v538
        %1747 = vmatmul.f32.gmra.mxu0 %v462
        %v1748 = vpop.f32.mrf.mxu0
        %v1749 = vadd.f32 %v1729, %v1748
        %1750 = vdwg.mxu0
        %1751 = vmatpush.msra.mxu0 %v662
        %1752 = vmatpush.msra.mxu0 %v658
        %1753 = vmatpush.msra.mxu0 %v654
        %1754 = vmatpush.msra.mxu0 %v650
        %1755 = vmatpush.msra.mxu0 %v646
        %1756 = vmatpush.msra.mxu0 %v642
        %1757 = vmatpush.msra.mxu0 %v638
        %1758 = vmatpush.msra.mxu0 %v634
        %1759 = vmatpush.msra.mxu0 %v630
        %1760 = vmatpush.msra.mxu0 %v626
        %1761 = vmatpush.msra.mxu0 %v622
        %1762 = vmatpush.msra.mxu0 %v618
        %1763 = vmatpush.msra.mxu0 %v614
        %1764 = vmatpush.msra.mxu0 %v610
        %1765 = vmatpush.msra.mxu0 %v606
        %1766 = vmatpush.msra.mxu0 %v602
        %1767 = vmatmul.f32.gmra.mxu0 %v463
        %v1768 = vpop.f32.mrf.mxu0
        %v1769 = vadd.f32 %v1749, %v1768
        %1770 = vdwg.mxu0
        %1771 = vmatpush.msra.mxu0 %v726
        %1772 = vmatpush.msra.mxu0 %v722
        %1773 = vmatpush.msra.mxu0 %v718
        %1774 = vmatpush.msra.mxu0 %v714
        %1775 = vmatpush.msra.mxu0 %v710
        %1776 = vmatpush.msra.mxu0 %v706
        %1777 = vmatpush.msra.mxu0 %v702
        %1778 = vmatpush.msra.mxu0 %v698
        %1779 = vmatpush.msra.mxu0 %v694
        %1780 = vmatpush.msra.mxu0 %v690
        %1781 = vmatpush.msra.mxu0 %v686
        %1782 = vmatpush.msra.mxu0 %v682
        %1783 = vmatpush.msra.mxu0 %v678
        %1784 = vmatpush.msra.mxu0 %v674
        %1785 = vmatpush.msra.mxu0 %v670
        %1786 = vmatpush.msra.mxu0 %v666
        %1787 = vmatmul.f32.gmra.mxu0 %v464
        %v1788 = vpop.f32.mrf.mxu0
        %v1789 = vadd.f32 %v1769, %v1788
        %1790 = vdwg.mxu0
        %1791 = vmatpush.msra.mxu0 %v790
        %1792 = vmatpush.msra.mxu0 %v786
        %1793 = vmatpush.msra.mxu0 %v782
        %1794 = vmatpush.msra.mxu0 %v778
        %1795 = vmatpush.msra.mxu0 %v774
        %1796 = vmatpush.msra.mxu0 %v770
        %1797 = vmatpush.msra.mxu0 %v766
        %1798 = vmatpush.msra.mxu0 %v762
        %1799 = vmatpush.msra.mxu0 %v758
        %1800 = vmatpush.msra.mxu0 %v754
        %1801 = vmatpush.msra.mxu0 %v750
        %1802 = vmatpush.msra.mxu0 %v746
        %1803 = vmatpush.msra.mxu0 %v742
        %1804 = vmatpush.msra.mxu0 %v738
        %1805 = vmatpush.msra.mxu0 %v734
        %1806 = vmatpush.msra.mxu0 %v730
        %1807 = vmatmul.f32.gmra.mxu0 %v465
        %v1808 = vpop.f32.mrf.mxu0
        %v1809 = vadd.f32 %v1789, %v1808
        %1810 = vdwg.mxu0
        %1811 = vmatpush.msra.mxu0 %v854
        %1812 = vmatpush.msra.mxu0 %v850
        %1813 = vmatpush.msra.mxu0 %v846
        %1814 = vmatpush.msra.mxu0 %v842
        %1815 = vmatpush.msra.mxu0 %v838
        %1816 = vmatpush.msra.mxu0 %v834
        %1817 = vmatpush.msra.mxu0 %v830
        %1818 = vmatpush.msra.mxu0 %v826
        %1819 = vmatpush.msra.mxu0 %v822
        %1820 = vmatpush.msra.mxu0 %v818
        %1821 = vmatpush.msra.mxu0 %v814
        %1822 = vmatpush.msra.mxu0 %v810
        %1823 = vmatpush.msra.mxu0 %v806
        %1824 = vmatpush.msra.mxu0 %v802
        %1825 = vmatpush.msra.mxu0 %v798
        %1826 = vmatpush.msra.mxu0 %v794
        %1827 = vmatmul.f32.gmra.mxu0 %v466
        %v1828 = vpop.f32.mrf.mxu0
        %v1829 = vadd.f32 %v1809, %v1828
        %1830 = vdwg.mxu0
        %1831 = vmatpush.msra.mxu0 %v918
        %1832 = vmatpush.msra.mxu0 %v914
        %1833 = vmatpush.msra.mxu0 %v910
        %1834 = vmatpush.msra.mxu0 %v906
        %1835 = vmatpush.msra.mxu0 %v902
        %1836 = vmatpush.msra.mxu0 %v898
        %1837 = vmatpush.msra.mxu0 %v894
        %1838 = vmatpush.msra.mxu0 %v890
        %1839 = vmatpush.msra.mxu0 %v886
        %1840 = vmatpush.msra.mxu0 %v882
        %1841 = vmatpush.msra.mxu0 %v878
        %1842 = vmatpush.msra.mxu0 %v874
        %1843 = vmatpush.msra.mxu0 %v870
        %1844 = vmatpush.msra.mxu0 %v866
        %1845 = vmatpush.msra.mxu0 %v862
        %1846 = vmatpush.msra.mxu0 %v858
        %1847 = vmatmul.f32.gmra.mxu0 %v467
        %v1848 = vpop.f32.mrf.mxu0
        %v1849 = vadd.f32 %v1829, %v1848
        %1850 = vdwg.mxu0
        %1851 = vmatpush.msra.mxu0 %v982
        %1852 = vmatpush.msra.mxu0 %v978
        %1853 = vmatpush.msra.mxu0 %v974
        %1854 = vmatpush.msra.mxu0 %v970
        %1855 = vmatpush.msra.mxu0 %v966
        %1856 = vmatpush.msra.mxu0 %v962
        %1857 = vmatpush.msra.mxu0 %v958
        %1858 = vmatpush.msra.mxu0 %v954
        %1859 = vmatpush.msra.mxu0 %v950
        %1860 = vmatpush.msra.mxu0 %v946
        %1861 = vmatpush.msra.mxu0 %v942
        %1862 = vmatpush.msra.mxu0 %v938
        %1863 = vmatpush.msra.mxu0 %v934
        %1864 = vmatpush.msra.mxu0 %v930
        %1865 = vmatpush.msra.mxu0 %v926
        %1866 = vmatpush.msra.mxu0 %v922
        %1867 = vmatmul.f32.gmra.mxu0 %v468
        %v1868 = vpop.f32.mrf.mxu0
        %v1869 = vadd.f32 %v1849, %v1868
        %1870 = vdwg.mxu0
        %1871 = vmatpush.msra.mxu0 %v1046
        %1872 = vmatpush.msra.mxu0 %v1042
        %1873 = vmatpush.msra.mxu0 %v1038
        %1874 = vmatpush.msra.mxu0 %v1034
        %1875 = vmatpush.msra.mxu0 %v1030
        %1876 = vmatpush.msra.mxu0 %v1026
        %1877 = vmatpush.msra.mxu0 %v1022
        %1878 = vmatpush.msra.mxu0 %v1018
        %1879 = vmatpush.msra.mxu0 %v1014
        %1880 = vmatpush.msra.mxu0 %v1010
        %1881 = vmatpush.msra.mxu0 %v1006
        %1882 = vmatpush.msra.mxu0 %v1002
        %1883 = vmatpush.msra.mxu0 %v998
        %1884 = vmatpush.msra.mxu0 %v994
        %1885 = vmatpush.msra.mxu0 %v990
        %1886 = vmatpush.msra.mxu0 %v986
        %1887 = vmatmul.f32.gmra.mxu0 %v469
        %v1888 = vpop.f32.mrf.mxu0
        %v1889 = vadd.f32 %v1869, %v1888
        %1890 = vdwg.mxu0
        %1891 = vmatpush.msra.mxu0 %v1110
        %1892 = vmatpush.msra.mxu0 %v1106
        %1893 = vmatpush.msra.mxu0 %v1102
        %1894 = vmatpush.msra.mxu0 %v1098
        %1895 = vmatpush.msra.mxu0 %v1094
        %1896 = vmatpush.msra.mxu0 %v1090
        %1897 = vmatpush.msra.mxu0 %v1086
        %1898 = vmatpush.msra.mxu0 %v1082
        %1899 = vmatpush.msra.mxu0 %v1078
        %1900 = vmatpush.msra.mxu0 %v1074
        %1901 = vmatpush.msra.mxu0 %v1070
        %1902 = vmatpush.msra.mxu0 %v1066
        %1903 = vmatpush.msra.mxu0 %v1062
        %1904 = vmatpush.msra.mxu0 %v1058
        %1905 = vmatpush.msra.mxu0 %v1054
        %1906 = vmatpush.msra.mxu0 %v1050
        %1907 = vmatmul.f32.gmra.mxu0 %v470
        %v1908 = vpop.f32.mrf.mxu0
        %v1909 = vadd.f32 %v1889, %v1908
        %1910 = vdwg.mxu0
        %v1911 = vadd.f32 %v457, %v1309
        %v1912 = vadd.f32 %v458, %v1509
        %v1913 = vadd.f32 %v459, %v1709
        %v1914 = vadd.f32 %v460, %v1909
        %1915 = vst [vmem:[#allocation2] sm:$0xff] %v1911
        %1916 = vst [vmem:[#allocation2 + $0x8] sm:$0xff] %v1912
        %1917 = vst [vmem:[#allocation2 + $0x10] sm:$0xff] %v1913
        %1918 = vst [vmem:[#allocation2 + $0x18] sm:$0xff] %v1914
        %p1919 = scmp.eq.s32.totalorder %s28, 3
        // Predicated region
        $region85: #{tpu_custom_call.1} parent=55 // pred_check
          %p1920 = pneg %p1919
        $region86: #{tpu_custom_call.1} parent=55 // pred_check_branch
          %1922 = sbr.rel (%p1920) target = $region88
        $region87: #{tpu_custom_call.1} parent=55 // pred_region
          %v1923 = vld [vmem:[#allocation11] sm:$0xff]
          %v1924 = vld [vmem:[#allocation11 + $0x8] sm:$0xff]
          %v1925 = vld [vmem:[#allocation11 + $0x10] sm:$0xff]
          %v1926 = vld [vmem:[#allocation11 + $0x18] sm:$0xff]
          %v1927 = vld [vmem:[#allocation11 + $0x20] sm:$0xff]
          %v1928 = vld [vmem:[#allocation2] sm:$0xff]
          %v1929 = vld [vmem:[#allocation2 + $0x8] sm:$0xff]
          %v1930 = vld [vmem:[#allocation2 + $0x10] sm:$0xff]
          %v1931 = vld [vmem:[#allocation2 + $0x18] sm:$0xff]
          %v1932 = vrot.slane %v1928, 4
          %v1933 = vadd.f32 %v1928, %v1932
          %v1934 = vrot.slane %v1933, 2
          %v1935 = vadd.f32 %v1933, %v1934
          %v1936 = vrot.slane %v1935, 1
          %v1937 = vadd.f32 %v1935, %v1936
          %v1938 = vrot.slane %v1929, 4
          %v1939 = vadd.f32 %v1929, %v1938
          %v1940 = vrot.slane %v1939, 2
          %v1941 = vadd.f32 %v1939, %v1940
          %v1942 = vrot.slane %v1941, 1
          %v1943 = vadd.f32 %v1941, %v1942
          %v1944 = vrot.slane %v1930, 4
          %v1945 = vadd.f32 %v1930, %v1944
          %v1946 = vrot.slane %v1945, 2
          %v1947 = vadd.f32 %v1945, %v1946
          %v1948 = vrot.slane %v1947, 1
          %v1949 = vadd.f32 %v1947, %v1948
          %v1950 = vrot.slane %v1931, 4
          %v1951 = vadd.f32 %v1931, %v1950
          %v1952 = vrot.slane %v1951, 2
          %v1953 = vadd.f32 %v1951, %v1952
          %v1954 = vrot.slane %v1953, 1
          %v1955 = vadd.f32 %v1953, %v1954
          %v1956 = vrcp.pop 8.0
          %v1957 = vmul.f32 8.0, %v1956
          %v1958 = vsub.f32 1.0, %v1957
          %v1959 = vmul.f32 %v1956, %v1958
          %v1960 = vadd.f32 %v1956, %v1959
          %vm1961 = vweird.f32 %v1956
          %v1962 = vsel %vm1961, %v1956, %v1960
          %v1963 = vmul.f32 %v1937, %v1962
          %v1964 = vmul.f32 %v1943, %v1962
          %v1965 = vmul.f32 %v1949, %v1962
          %v1966 = vmul.f32 %v1955, %v1962
          %v1967 = vsub.f32 %v1928, %v1963
          %v1968 = vsub.f32 %v1929, %v1964
          %v1969 = vsub.f32 %v1930, %v1965
          %v1970 = vsub.f32 %v1931, %v1966
          %v1971 = vmul.f32 %v1967, %v1967
          %v1972 = vmul.f32 %v1968, %v1968
          %v1973 = vmul.f32 %v1969, %v1969
          %v1974 = vmul.f32 %v1970, %v1970
          %v1975 = vrot.slane %v1971, 4
          %v1976 = vadd.f32 %v1971, %v1975
          %v1977 = vrot.slane %v1976, 2
          %v1978 = vadd.f32 %v1976, %v1977
          %v1979 = vrot.slane %v1978, 1
          %v1980 = vadd.f32 %v1978, %v1979
          %v1981 = vrot.slane %v1972, 4
          %v1982 = vadd.f32 %v1972, %v1981
          %v1983 = vrot.slane %v1982, 2
          %v1984 = vadd.f32 %v1982, %v1983
          %v1985 = vrot.slane %v1984, 1
          %v1986 = vadd.f32 %v1984, %v1985
          %v1987 = vrot.slane %v1973, 4
          %v1988 = vadd.f32 %v1973, %v1987
          %v1989 = vrot.slane %v1988, 2
          %v1990 = vadd.f32 %v1988, %v1989
          %v1991 = vrot.slane %v1990, 1
          %v1992 = vadd.f32 %v1990, %v1991
          %v1993 = vrot.slane %v1974, 4
          %v1994 = vadd.f32 %v1974, %v1993
          %v1995 = vrot.slane %v1994, 2
          %v1996 = vadd.f32 %v1994, %v1995
          %v1997 = vrot.slane %v1996, 1
          %v1998 = vadd.f32 %v1996, %v1997
          %v1999 = vmul.f32 %v1980, %v1962
          %v2000 = vmul.f32 %v1986, %v1962
          %v2001 = vmul.f32 %v1992, %v1962
          %v2002 = vmul.f32 %v1998, %v1962
          %v2003 = vadd.f32 %v1999, 1e-05
          %v2004 = vadd.f32 %v2000, 1e-05
          %v2005 = vadd.f32 %v2001, 1e-05
          %v2006 = vadd.f32 %v2002, 1e-05
          %v2007 = vrsqrt.pop %v2003
          %v2008 = vmul.f32 %v2007, %v2003
          %v2009 = vmul.f32 %v2008, %v2007
          %v2010 = vmul.f32 0.5, %v2009
          %v2011 = vsub.f32 1.5, %v2010
          %v2012 = vmul.f32 %v2007, %v2011
          %vm2013 = vweird.f32 %v2003
          %vm2014 = vweird.f32 %v2007
          %vm2015 = vmor %vm2013, %vm2014
          %v2016 = vsel %vm2015, %v2007, %v2012
          %v2017 = vrsqrt.pop %v2004
          %v2018 = vmul.f32 %v2017, %v2004
          %v2019 = vmul.f32 %v2018, %v2017
          %v2020 = vmul.f32 0.5, %v2019
          %v2021 = vsub.f32 1.5, %v2020
          %v2022 = vmul.f32 %v2017, %v2021
          %vm2023 = vweird.f32 %v2004
          %vm2024 = vweird.f32 %v2017
          %vm2025 = vmor %vm2023, %vm2024
          %v2026 = vsel %vm2025, %v2017, %v2022
          %v2027 = vrsqrt.pop %v2005
          %v2028 = vmul.f32 %v2027, %v2005
          %v2029 = vmul.f32 %v2028, %v2027
          %v2030 = vmul.f32 0.5, %v2029
          %v2031 = vsub.f32 1.5, %v2030
          %v2032 = vmul.f32 %v2027, %v2031
          %vm2033 = vweird.f32 %v2005
          %vm2034 = vweird.f32 %v2027
          %vm2035 = vmor %vm2033, %vm2034
          %v2036 = vsel %vm2035, %v2027, %v2032
          %v2037 = vrsqrt.pop %v2006
          %v2038 = vmul.f32 %v2037, %v2006
          %v2039 = vmul.f32 %v2038, %v2037
          %v2040 = vmul.f32 0.5, %v2039
          %v2041 = vsub.f32 1.5, %v2040
          %v2042 = vmul.f32 %v2037, %v2041
          %vm2043 = vweird.f32 %v2006
          %vm2044 = vweird.f32 %v2037
          %vm2045 = vmor %vm2043, %vm2044
          %v2046 = vsel %vm2045, %v2037, %v2042
          %v2047 = vmul.f32 %v1967, %v2016
          %v2048 = vmul.f32 %v1968, %v2026
          %v2049 = vmul.f32 %v1969, %v2036
          %v2050 = vmul.f32 %v1970, %v2046
          %v2051 = vperm.slane %v1923, 0
          %v2052 = vperm.slane %v1924, 0
          %v2053 = vperm.slane %v1925, 0
          %v2054 = vperm.slane %v1926, 0
          %v2055 = vmul.f32 %v2047, %v2051
          %v2056 = vmul.f32 %v2048, %v2052
          %v2057 = vmul.f32 %v2049, %v2053
          %v2058 = vmul.f32 %v2050, %v2054
          %v2059 = vperm.slane %v1923, 1
          %v2060 = vperm.slane %v1924, 1
          %v2061 = vperm.slane %v1925, 1
          %v2062 = vperm.slane %v1926, 1
          %v2063 = vadd.f32 %v2055, %v2059
          %v2064 = vadd.f32 %v2056, %v2060
          %v2065 = vadd.f32 %v2057, %v2061
          %v2066 = vadd.f32 %v2058, %v2062
          %v2067 = vmax.f32 %v2063, 0.0
          %v2068 = vmax.f32 %v2064, 0.0
          %v2069 = vmax.f32 %v2065, 0.0
          %v2070 = vmax.f32 %v2066, 0.0
          %v2071 = vld [vmem:[#allocation7] sm:$0xff]
          %v2072 = vld [vmem:[#allocation7 + $0x8] sm:$0xff]
          %v2073 = vld [vmem:[#allocation7 + $0x10] sm:$0xff]
          %v2074 = vld [vmem:[#allocation7 + $0x18] sm:$0xff]
          %v2075 = vld [vmem:[#allocation7 + $0x20] sm:$0xff]
          %v2076 = vld [vmem:[#allocation7 + $0x28] sm:$0xff]
          %v2077 = vld [vmem:[#allocation7 + $0x30] sm:$0xff]
          %v2078 = vld [vmem:[#allocation7 + $0x38] sm:$0xff]
          %v2079 = vld [vmem:[#allocation7 + $0x40] sm:$0xff]
          %v2080 = vld [vmem:[#allocation7 + $0x48] sm:$0xff]
          %v2081 = vld [vmem:[#allocation7 + $0x50] sm:$0xff]
          %v2082 = vld [vmem:[#allocation7 + $0x58] sm:$0xff]
          %v2083 = vld [vmem:[#allocation7 + $0x60] sm:$0xff]
          %v2084 = vld [vmem:[#allocation7 + $0x68] sm:$0xff]
          %v2085 = vld [vmem:[#allocation7 + $0x70] sm:$0xff]
          %v2086 = vld [vmem:[#allocation7 + $0x78] sm:$0xff]
          %v2087 = vld [vmem:[#allocation7 + $0x80] sm:$0xff]
          %v2088 = vld [vmem:[#allocation7 + $0x88] sm:$0xff]
          %v2089 = vld [vmem:[#allocation7 + $0x90] sm:$0xff]
          %v2090 = vld [vmem:[#allocation7 + $0x98] sm:$0xff]
          %v2091 = vld [vmem:[#allocation7 + $0xa0] sm:$0xff]
          %v2092 = vld [vmem:[#allocation7 + $0xa8] sm:$0xff]
          %v2093 = vld [vmem:[#allocation7 + $0xb0] sm:$0xff]
          %v2094 = vld [vmem:[#allocation7 + $0xb8] sm:$0xff]
          %v2095 = vld [vmem:[#allocation7 + $0xc0] sm:$0xff]
          %v2096 = vld [vmem:[#allocation7 + $0xc8] sm:$0xff]
          %v2097 = vld [vmem:[#allocation7 + $0xd0] sm:$0xff]
          %v2098 = vld [vmem:[#allocation7 + $0xd8] sm:$0xff]
          %v2099 = vld [vmem:[#allocation7 + $0xe0] sm:$0xff]
          %v2100 = vld [vmem:[#allocation7 + $0xe8] sm:$0xff]
          %v2101 = vld [vmem:[#allocation7 + $0xf0] sm:$0xff]
          %v2102 = vld [vmem:[#allocation7 + $0xf8] sm:$0xff]
          %v2103 = vld [vmem:[#allocation7 + $0x100] sm:$0xff]
          %v2104 = vld [vmem:[#allocation7 + $0x108] sm:$0xff]
          %v2105 = vld [vmem:[#allocation7 + $0x110] sm:$0xff]
          %v2106 = vld [vmem:[#allocation7 + $0x118] sm:$0xff]
          %v2107 = vld [vmem:[#allocation7 + $0x120] sm:$0xff]
          %v2108 = vld [vmem:[#allocation7 + $0x128] sm:$0xff]
          %v2109 = vld [vmem:[#allocation7 + $0x130] sm:$0xff]
          %v2110 = vld [vmem:[#allocation7 + $0x138] sm:$0xff]
          %v2111 = vld [vmem:[#allocation7 + $0x140] sm:$0xff]
          %v2112 = vld [vmem:[#allocation7 + $0x148] sm:$0xff]
          %v2113 = vld [vmem:[#allocation7 + $0x150] sm:$0xff]
          %v2114 = vld [vmem:[#allocation7 + $0x158] sm:$0xff]
          %v2115 = vld [vmem:[#allocation7 + $0x160] sm:$0xff]
          %v2116 = vld [vmem:[#allocation7 + $0x168] sm:$0xff]
          %v2117 = vld [vmem:[#allocation7 + $0x170] sm:$0xff]
          %v2118 = vld [vmem:[#allocation7 + $0x178] sm:$0xff]
          %v2119 = vld [vmem:[#allocation7 + $0x180] sm:$0xff]
          %v2120 = vld [vmem:[#allocation7 + $0x188] sm:$0xff]
          %v2121 = vld [vmem:[#allocation7 + $0x190] sm:$0xff]
          %v2122 = vld [vmem:[#allocation7 + $0x198] sm:$0xff]
          %v2123 = vld [vmem:[#allocation7 + $0x1a0] sm:$0xff]
          %v2124 = vld [vmem:[#allocation7 + $0x1a8] sm:$0xff]
          %v2125 = vld [vmem:[#allocation7 + $0x1b0] sm:$0xff]
          %v2126 = vld [vmem:[#allocation7 + $0x1b8] sm:$0xff]
          %v2127 = vld [vmem:[#allocation7 + $0x1c0] sm:$0xff]
          %v2128 = vld [vmem:[#allocation7 + $0x1c8] sm:$0xff]
          %v2129 = vld [vmem:[#allocation7 + $0x1d0] sm:$0xff]
          %v2130 = vld [vmem:[#allocation7 + $0x1d8] sm:$0xff]
          %v2131 = vld [vmem:[#allocation7 + $0x1e0] sm:$0xff]
          %v2132 = vld [vmem:[#allocation7 + $0x1e8] sm:$0xff]
          %v2133 = vld [vmem:[#allocation7 + $0x1f0] sm:$0xff]
          %v2134 = vld [vmem:[#allocation7 + $0x1f8] sm:$0xff]
          %v2135 = vld [vmem:[#allocation7 + $0x200] sm:$0xff]
          %v2136 = vld [vmem:[#allocation7 + $0x208] sm:$0xff]
          %v2137 = vld [vmem:[#allocation7 + $0x210] sm:$0xff]
          %v2138 = vld [vmem:[#allocation7 + $0x218] sm:$0xff]
          %v2139 = vld [vmem:[#allocation7 + $0x220] sm:$0xff]
          %v2140 = vld [vmem:[#allocation7 + $0x228] sm:$0xff]
          %v2141 = vld [vmem:[#allocation7 + $0x230] sm:$0xff]
          %v2142 = vld [vmem:[#allocation7 + $0x238] sm:$0xff]
          %v2143 = vld [vmem:[#allocation7 + $0x240] sm:$0xff]
          %v2144 = vld [vmem:[#allocation7 + $0x248] sm:$0xff]
          %v2145 = vld [vmem:[#allocation7 + $0x250] sm:$0xff]
          %v2146 = vld [vmem:[#allocation7 + $0x258] sm:$0xff]
          %v2147 = vld [vmem:[#allocation7 + $0x260] sm:$0xff]
          %v2148 = vld [vmem:[#allocation7 + $0x268] sm:$0xff]
          %v2149 = vld [vmem:[#allocation7 + $0x270] sm:$0xff]
          %v2150 = vld [vmem:[#allocation7 + $0x278] sm:$0xff]
          %v2151 = vld [vmem:[#allocation7 + $0x280] sm:$0xff]
          %v2152 = vld [vmem:[#allocation7 + $0x288] sm:$0xff]
          %v2153 = vld [vmem:[#allocation7 + $0x290] sm:$0xff]
          %v2154 = vld [vmem:[#allocation7 + $0x298] sm:$0xff]
          %v2155 = vld [vmem:[#allocation7 + $0x2a0] sm:$0xff]
          %v2156 = vld [vmem:[#allocation7 + $0x2a8] sm:$0xff]
          %v2157 = vld [vmem:[#allocation7 + $0x2b0] sm:$0xff]
          %v2158 = vld [vmem:[#allocation7 + $0x2b8] sm:$0xff]
          %v2159 = vld [vmem:[#allocation7 + $0x2c0] sm:$0xff]
          %v2160 = vld [vmem:[#allocation7 + $0x2c8] sm:$0xff]
          %v2161 = vld [vmem:[#allocation7 + $0x2d0] sm:$0xff]
          %v2162 = vld [vmem:[#allocation7 + $0x2d8] sm:$0xff]
          %v2163 = vld [vmem:[#allocation7 + $0x2e0] sm:$0xff]
          %v2164 = vld [vmem:[#allocation7 + $0x2e8] sm:$0xff]
          %v2165 = vld [vmem:[#allocation7 + $0x2f0] sm:$0xff]
          %v2166 = vld [vmem:[#allocation7 + $0x2f8] sm:$0xff]
          %v2167 = vld [vmem:[#allocation7 + $0x300] sm:$0xff]
          %v2168 = vld [vmem:[#allocation7 + $0x308] sm:$0xff]
          %v2169 = vld [vmem:[#allocation7 + $0x310] sm:$0xff]
          %v2170 = vld [vmem:[#allocation7 + $0x318] sm:$0xff]
          %v2171 = vld [vmem:[#allocation7 + $0x320] sm:$0xff]
          %v2172 = vld [vmem:[#allocation7 + $0x328] sm:$0xff]
          %v2173 = vld [vmem:[#allocation7 + $0x330] sm:$0xff]
          %v2174 = vld [vmem:[#allocation7 + $0x338] sm:$0xff]
          %v2175 = vld [vmem:[#allocation7 + $0x340] sm:$0xff]
          %v2176 = vld [vmem:[#allocation7 + $0x348] sm:$0xff]
          %v2177 = vld [vmem:[#allocation7 + $0x350] sm:$0xff]
          %v2178 = vld [vmem:[#allocation7 + $0x358] sm:$0xff]
          %v2179 = vld [vmem:[#allocation7 + $0x360] sm:$0xff]
          %v2180 = vld [vmem:[#allocation7 + $0x368] sm:$0xff]
          %v2181 = vld [vmem:[#allocation7 + $0x370] sm:$0xff]
          %v2182 = vld [vmem:[#allocation7 + $0x378] sm:$0xff]
          %v2183 = vld [vmem:[#allocation7 + $0x380] sm:$0xff]
          %v2184 = vld [vmem:[#allocation7 + $0x388] sm:$0xff]
          %v2185 = vld [vmem:[#allocation7 + $0x390] sm:$0xff]
          %v2186 = vld [vmem:[#allocation7 + $0x398] sm:$0xff]
          %v2187 = vld [vmem:[#allocation7 + $0x3a0] sm:$0xff]
          %v2188 = vld [vmem:[#allocation7 + $0x3a8] sm:$0xff]
          %v2189 = vld [vmem:[#allocation7 + $0x3b0] sm:$0xff]
          %v2190 = vld [vmem:[#allocation7 + $0x3b8] sm:$0xff]
          %v2191 = vld [vmem:[#allocation7 + $0x3c0] sm:$0xff]
          %v2192 = vld [vmem:[#allocation7 + $0x3c8] sm:$0xff]
          %v2193 = vld [vmem:[#allocation7 + $0x3d0] sm:$0xff]
          %v2194 = vld [vmem:[#allocation7 + $0x3d8] sm:$0xff]
          %v2195 = vld [vmem:[#allocation7 + $0x3e0] sm:$0xff]
          %v2196 = vld [vmem:[#allocation7 + $0x3e8] sm:$0xff]
          %v2197 = vld [vmem:[#allocation7 + $0x3f0] sm:$0xff]
          %v2198 = vld [vmem:[#allocation7 + $0x3f8] sm:$0xff]
          %2199 = vmatpush.msra.mxu0 %v2101
          %2200 = vmatpush.msra.mxu0 %v2099
          %2201 = vmatpush.msra.mxu0 %v2097
          %2202 = vmatpush.msra.mxu0 %v2095
          %2203 = vmatpush.msra.mxu0 %v2093
          %2204 = vmatpush.msra.mxu0 %v2091
          %2205 = vmatpush.msra.mxu0 %v2089
          %2206 = vmatpush.msra.mxu0 %v2087
          %2207 = vmatpush.msra.mxu0 %v2085
          %2208 = vmatpush.msra.mxu0 %v2083
          %2209 = vmatpush.msra.mxu0 %v2081
          %2210 = vmatpush.msra.mxu0 %v2079
          %2211 = vmatpush.msra.mxu0 %v2077
          %2212 = vmatpush.msra.mxu0 %v2075
          %2213 = vmatpush.msra.mxu0 %v2073
          %2214 = vmatpush.msra.mxu0 %v2071
          %2215 = vmatmul.f32.gmra.mxu0 %v2067
          %v2216 = vpop.f32.mrf.mxu0
          %v2217 = vadd.f32 0.0, %v2216
          %2218 = vdwg.mxu0
          %2219 = vmatpush.msra.mxu0 %v2133
          %2220 = vmatpush.msra.mxu0 %v2131
          %2221 = vmatpush.msra.mxu0 %v2129
          %2222 = vmatpush.msra.mxu0 %v2127
          %2223 = vmatpush.msra.mxu0 %v2125
          %2224 = vmatpush.msra.mxu0 %v2123
          %2225 = vmatpush.msra.mxu0 %v2121
          %2226 = vmatpush.msra.mxu0 %v2119
          %2227 = vmatpush.msra.mxu0 %v2117
          %2228 = vmatpush.msra.mxu0 %v2115
          %2229 = vmatpush.msra.mxu0 %v2113
          %2230 = vmatpush.msra.mxu0 %v2111
          %2231 = vmatpush.msra.mxu0 %v2109
          %2232 = vmatpush.msra.mxu0 %v2107
          %2233 = vmatpush.msra.mxu0 %v2105
          %2234 = vmatpush.msra.mxu0 %v2103
          %2235 = vmatmul.f32.gmra.mxu0 %v2068
          %v2236 = vpop.f32.mrf.mxu0
          %v2237 = vadd.f32 %v2217, %v2236
          %2238 = vdwg.mxu0
          %2239 = vmatpush.msra.mxu0 %v2165
          %2240 = vmatpush.msra.mxu0 %v2163
          %2241 = vmatpush.msra.mxu0 %v2161
          %2242 = vmatpush.msra.mxu0 %v2159
          %2243 = vmatpush.msra.mxu0 %v2157
          %2244 = vmatpush.msra.mxu0 %v2155
          %2245 = vmatpush.msra.mxu0 %v2153
          %2246 = vmatpush.msra.mxu0 %v2151
          %2247 = vmatpush.msra.mxu0 %v2149
          %2248 = vmatpush.msra.mxu0 %v2147
          %2249 = vmatpush.msra.mxu0 %v2145
          %2250 = vmatpush.msra.mxu0 %v2143
          %2251 = vmatpush.msra.mxu0 %v2141
          %2252 = vmatpush.msra.mxu0 %v2139
          %2253 = vmatpush.msra.mxu0 %v2137
          %2254 = vmatpush.msra.mxu0 %v2135
          %2255 = vmatmul.f32.gmra.mxu0 %v2069
          %v2256 = vpop.f32.mrf.mxu0
          %v2257 = vadd.f32 %v2237, %v2256
          %2258 = vdwg.mxu0
          %2259 = vmatpush.msra.mxu0 %v2197
          %2260 = vmatpush.msra.mxu0 %v2195
          %2261 = vmatpush.msra.mxu0 %v2193
          %2262 = vmatpush.msra.mxu0 %v2191
          %2263 = vmatpush.msra.mxu0 %v2189
          %2264 = vmatpush.msra.mxu0 %v2187
          %2265 = vmatpush.msra.mxu0 %v2185
          %2266 = vmatpush.msra.mxu0 %v2183
          %2267 = vmatpush.msra.mxu0 %v2181
          %2268 = vmatpush.msra.mxu0 %v2179
          %2269 = vmatpush.msra.mxu0 %v2177
          %2270 = vmatpush.msra.mxu0 %v2175
          %2271 = vmatpush.msra.mxu0 %v2173
          %2272 = vmatpush.msra.mxu0 %v2171
          %2273 = vmatpush.msra.mxu0 %v2169
          %2274 = vmatpush.msra.mxu0 %v2167
          %2275 = vmatmul.f32.gmra.mxu0 %v2070
          %v2276 = vpop.f32.mrf.mxu0
          %v2277 = vadd.f32 %v2257, %v2276
          %2278 = vdwg.mxu0
          %2279 = vmatpush.msra.mxu0 %v2102
          %2280 = vmatpush.msra.mxu0 %v2100
          %2281 = vmatpush.msra.mxu0 %v2098
          %2282 = vmatpush.msra.mxu0 %v2096
          %2283 = vmatpush.msra.mxu0 %v2094
          %2284 = vmatpush.msra.mxu0 %v2092
          %2285 = vmatpush.msra.mxu0 %v2090
          %2286 = vmatpush.msra.mxu0 %v2088
          %2287 = vmatpush.msra.mxu0 %v2086
          %2288 = vmatpush.msra.mxu0 %v2084
          %2289 = vmatpush.msra.mxu0 %v2082
          %2290 = vmatpush.msra.mxu0 %v2080
          %2291 = vmatpush.msra.mxu0 %v2078
          %2292 = vmatpush.msra.mxu0 %v2076
          %2293 = vmatpush.msra.mxu0 %v2074
          %2294 = vmatpush.msra.mxu0 %v2072
          %2295 = vmatmul.f32.gmra.mxu0 %v2067
          %v2296 = vpop.f32.mrf.mxu0
          %v2297 = vadd.f32 0.0, %v2296
          %2298 = vdwg.mxu0
          %2299 = vmatpush.msra.mxu0 %v2134
          %2300 = vmatpush.msra.mxu0 %v2132
          %2301 = vmatpush.msra.mxu0 %v2130
          %2302 = vmatpush.msra.mxu0 %v2128
          %2303 = vmatpush.msra.mxu0 %v2126
          %2304 = vmatpush.msra.mxu0 %v2124
          %2305 = vmatpush.msra.mxu0 %v2122
          %2306 = vmatpush.msra.mxu0 %v2120
          %2307 = vmatpush.msra.mxu0 %v2118
          %2308 = vmatpush.msra.mxu0 %v2116
          %2309 = vmatpush.msra.mxu0 %v2114
          %2310 = vmatpush.msra.mxu0 %v2112
          %2311 = vmatpush.msra.mxu0 %v2110
          %2312 = vmatpush.msra.mxu0 %v2108
          %2313 = vmatpush.msra.mxu0 %v2106
          %2314 = vmatpush.msra.mxu0 %v2104
          %2315 = vmatmul.f32.gmra.mxu0 %v2068
          %v2316 = vpop.f32.mrf.mxu0
          %v2317 = vadd.f32 %v2297, %v2316
          %2318 = vdwg.mxu0
          %2319 = vmatpush.msra.mxu0 %v2166
          %2320 = vmatpush.msra.mxu0 %v2164
          %2321 = vmatpush.msra.mxu0 %v2162
          %2322 = vmatpush.msra.mxu0 %v2160
          %2323 = vmatpush.msra.mxu0 %v2158
          %2324 = vmatpush.msra.mxu0 %v2156
          %2325 = vmatpush.msra.mxu0 %v2154
          %2326 = vmatpush.msra.mxu0 %v2152
          %2327 = vmatpush.msra.mxu0 %v2150
          %2328 = vmatpush.msra.mxu0 %v2148
          %2329 = vmatpush.msra.mxu0 %v2146
          %2330 = vmatpush.msra.mxu0 %v2144
          %2331 = vmatpush.msra.mxu0 %v2142
          %2332 = vmatpush.msra.mxu0 %v2140
          %2333 = vmatpush.msra.mxu0 %v2138
          %2334 = vmatpush.msra.mxu0 %v2136
          %2335 = vmatmul.f32.gmra.mxu0 %v2069
          %v2336 = vpop.f32.mrf.mxu0
          %v2337 = vadd.f32 %v2317, %v2336
          %2338 = vdwg.mxu0
          %2339 = vmatpush.msra.mxu0 %v2198
          %2340 = vmatpush.msra.mxu0 %v2196
          %2341 = vmatpush.msra.mxu0 %v2194
          %2342 = vmatpush.msra.mxu0 %v2192
          %2343 = vmatpush.msra.mxu0 %v2190
          %2344 = vmatpush.msra.mxu0 %v2188
          %2345 = vmatpush.msra.mxu0 %v2186
          %2346 = vmatpush.msra.mxu0 %v2184
          %2347 = vmatpush.msra.mxu0 %v2182
          %2348 = vmatpush.msra.mxu0 %v2180
          %2349 = vmatpush.msra.mxu0 %v2178
          %2350 = vmatpush.msra.mxu0 %v2176
          %2351 = vmatpush.msra.mxu0 %v2174
          %2352 = vmatpush.msra.mxu0 %v2172
          %2353 = vmatpush.msra.mxu0 %v2170
          %2354 = vmatpush.msra.mxu0 %v2168
          %2355 = vmatmul.f32.gmra.mxu0 %v2070
          %v2356 = vpop.f32.mrf.mxu0
          %v2357 = vadd.f32 %v2337, %v2356
          %2358 = vdwg.mxu0
          %v2359 = vrot.slane %v2277, 4
          %v2360 = vadd.f32 %v2277, %v2359
          %v2361 = vrot.slane %v2360, 2
          %v2362 = vadd.f32 %v2360, %v2361
          %v2363 = vrot.slane %v2362, 1
          %v2364 = vadd.f32 %v2362, %v2363
          %v2365 = vrot.slane %v2357, 4
          %v2366 = vadd.f32 %v2357, %v2365
          %v2367 = vrot.slane %v2366, 2
          %v2368 = vadd.f32 %v2366, %v2367
          %v2369 = vrot.slane %v2368, 1
          %v2370 = vadd.f32 %v2368, %v2369
          %v2371 = vmul.f32 %v2364, %v1962
          %v2372 = vmul.f32 %v2370, %v1962
          %v2373 = vsub.f32 %v2277, %v2371
          %v2374 = vsub.f32 %v2357, %v2372
          %v2375 = vmul.f32 %v2373, %v2373
          %v2376 = vmul.f32 %v2374, %v2374
          %v2377 = vrot.slane %v2375, 4
          %v2378 = vadd.f32 %v2375, %v2377
          %v2379 = vrot.slane %v2378, 2
          %v2380 = vadd.f32 %v2378, %v2379
          %v2381 = vrot.slane %v2380, 1
          %v2382 = vadd.f32 %v2380, %v2381
          %v2383 = vrot.slane %v2376, 4
          %v2384 = vadd.f32 %v2376, %v2383
          %v2385 = vrot.slane %v2384, 2
          %v2386 = vadd.f32 %v2384, %v2385
          %v2387 = vrot.slane %v2386, 1
          %v2388 = vadd.f32 %v2386, %v2387
          %v2389 = vmul.f32 %v2382, %v1962
          %v2390 = vmul.f32 %v2388, %v1962
          %v2391 = vadd.f32 %v2389, 1e-05
          %v2392 = vadd.f32 %v2390, 1e-05
          %v2393 = vrsqrt.pop %v2391
          %v2394 = vmul.f32 %v2393, %v2391
          %v2395 = vmul.f32 %v2394, %v2393
          %v2396 = vmul.f32 0.5, %v2395
          %v2397 = vsub.f32 1.5, %v2396
          %v2398 = vmul.f32 %v2393, %v2397
          %vm2399 = vweird.f32 %v2391
          %vm2400 = vweird.f32 %v2393
          %vm2401 = vmor %vm2399, %vm2400
          %v2402 = vsel %vm2401, %v2393, %v2398
          %v2403 = vrsqrt.pop %v2392
          %v2404 = vmul.f32 %v2403, %v2392
          %v2405 = vmul.f32 %v2404, %v2403
          %v2406 = vmul.f32 0.5, %v2405
          %v2407 = vsub.f32 1.5, %v2406
          %v2408 = vmul.f32 %v2403, %v2407
          %vm2409 = vweird.f32 %v2392
          %vm2410 = vweird.f32 %v2403
          %vm2411 = vmor %vm2409, %vm2410
          %v2412 = vsel %vm2411, %v2403, %v2408
          %v2413 = vmul.f32 %v2373, %v2402
          %v2414 = vmul.f32 %v2374, %v2412
          %v2415 = vperm.slane %v1923, 2
          %v2416 = vperm.slane %v1924, 2
          %v2417 = vmul.f32 %v2413, %v2415
          %v2418 = vmul.f32 %v2414, %v2416
          %v2419 = vperm.slane %v1923, 3
          %v2420 = vperm.slane %v1924, 3
          %v2421 = vadd.f32 %v2417, %v2419
          %v2422 = vadd.f32 %v2418, %v2420
          %v2423 = vmax.f32 %v2421, 0.0
          %v2424 = vmax.f32 %v2422, 0.0
          %v2425 = vld [vmem:[#allocation8] sm:$0xff]
          %v2426 = vld [vmem:[#allocation8 + $0x8] sm:$0xff]
          %v2427 = vld [vmem:[#allocation8 + $0x10] sm:$0xff]
          %v2428 = vld [vmem:[#allocation8 + $0x18] sm:$0xff]
          %v2429 = vld [vmem:[#allocation8 + $0x20] sm:$0xff]
          %v2430 = vld [vmem:[#allocation8 + $0x28] sm:$0xff]
          %v2431 = vld [vmem:[#allocation8 + $0x30] sm:$0xff]
          %v2432 = vld [vmem:[#allocation8 + $0x38] sm:$0xff]
          %v2433 = vld [vmem:[#allocation8 + $0x40] sm:$0xff]
          %v2434 = vld [vmem:[#allocation8 + $0x48] sm:$0xff]
          %v2435 = vld [vmem:[#allocation8 + $0x50] sm:$0xff]
          %v2436 = vld [vmem:[#allocation8 + $0x58] sm:$0xff]
          %v2437 = vld [vmem:[#allocation8 + $0x60] sm:$0xff]
          %v2438 = vld [vmem:[#allocation8 + $0x68] sm:$0xff]
          %v2439 = vld [vmem:[#allocation8 + $0x70] sm:$0xff]
          %v2440 = vld [vmem:[#allocation8 + $0x78] sm:$0xff]
          %v2441 = vld [vmem:[#allocation8 + $0x80] sm:$0xff]
          %v2442 = vld [vmem:[#allocation8 + $0x88] sm:$0xff]
          %v2443 = vld [vmem:[#allocation8 + $0x90] sm:$0xff]
          %v2444 = vld [vmem:[#allocation8 + $0x98] sm:$0xff]
          %v2445 = vld [vmem:[#allocation8 + $0xa0] sm:$0xff]
          %v2446 = vld [vmem:[#allocation8 + $0xa8] sm:$0xff]
          %v2447 = vld [vmem:[#allocation8 + $0xb0] sm:$0xff]
          %v2448 = vld [vmem:[#allocation8 + $0xb8] sm:$0xff]
          %v2449 = vld [vmem:[#allocation8 + $0xc0] sm:$0xff]
          %v2450 = vld [vmem:[#allocation8 + $0xc8] sm:$0xff]
          %v2451 = vld [vmem:[#allocation8 + $0xd0] sm:$0xff]
          %v2452 = vld [vmem:[#allocation8 + $0xd8] sm:$0xff]
          %v2453 = vld [vmem:[#allocation8 + $0xe0] sm:$0xff]
          %v2454 = vld [vmem:[#allocation8 + $0xe8] sm:$0xff]
          %v2455 = vld [vmem:[#allocation8 + $0xf0] sm:$0xff]
          %v2456 = vld [vmem:[#allocation8 + $0xf8] sm:$0xff]
          %2457 = vmatpush.msra.mxu0 %v2440
          %2458 = vmatpush.msra.mxu0 %v2439
          %2459 = vmatpush.msra.mxu0 %v2438
          %2460 = vmatpush.msra.mxu0 %v2437
          %2461 = vmatpush.msra.mxu0 %v2436
          %2462 = vmatpush.msra.mxu0 %v2435
          %2463 = vmatpush.msra.mxu0 %v2434
          %2464 = vmatpush.msra.mxu0 %v2433
          %2465 = vmatpush.msra.mxu0 %v2432
          %2466 = vmatpush.msra.mxu0 %v2431
          %2467 = vmatpush.msra.mxu0 %v2430
          %2468 = vmatpush.msra.mxu0 %v2429
          %2469 = vmatpush.msra.mxu0 %v2428
          %2470 = vmatpush.msra.mxu0 %v2427
          %2471 = vmatpush.msra.mxu0 %v2426
          %2472 = vmatpush.msra.mxu0 %v2425
          %2473 = vmatmul.f32.gmra.mxu0 %v2423
          %v2474 = vpop.f32.mrf.mxu0
          %v2475 = vadd.f32 0.0, %v2474
          %2476 = vdwg.mxu0
          %2477 = vmatpush.msra.mxu0 %v2456
          %2478 = vmatpush.msra.mxu0 %v2455
          %2479 = vmatpush.msra.mxu0 %v2454
          %2480 = vmatpush.msra.mxu0 %v2453
          %2481 = vmatpush.msra.mxu0 %v2452
          %2482 = vmatpush.msra.mxu0 %v2451
          %2483 = vmatpush.msra.mxu0 %v2450
          %2484 = vmatpush.msra.mxu0 %v2449
          %2485 = vmatpush.msra.mxu0 %v2448
          %2486 = vmatpush.msra.mxu0 %v2447
          %2487 = vmatpush.msra.mxu0 %v2446
          %2488 = vmatpush.msra.mxu0 %v2445
          %2489 = vmatpush.msra.mxu0 %v2444
          %2490 = vmatpush.msra.mxu0 %v2443
          %2491 = vmatpush.msra.mxu0 %v2442
          %2492 = vmatpush.msra.mxu0 %v2441
          %2493 = vmatmul.f32.gmra.mxu0 %v2424
          %v2494 = vpop.f32.mrf.mxu0
          %v2495 = vadd.f32 %v2475, %v2494
          %2496 = vdwg.mxu0
          %v2497 = vrot.slane %v2495, 4
          %v2498 = vadd.f32 %v2495, %v2497
          %v2499 = vrot.slane %v2498, 2
          %v2500 = vadd.f32 %v2498, %v2499
          %v2501 = vrot.slane %v2500, 1
          %v2502 = vadd.f32 %v2500, %v2501
          %v2503 = vmul.f32 %v2502, %v1962
          %v2504 = vsub.f32 %v2495, %v2503
          %v2505 = vmul.f32 %v2504, %v2504
          %v2506 = vrot.slane %v2505, 4
          %v2507 = vadd.f32 %v2505, %v2506
          %v2508 = vrot.slane %v2507, 2
          %v2509 = vadd.f32 %v2507, %v2508
          %v2510 = vrot.slane %v2509, 1
          %v2511 = vadd.f32 %v2509, %v2510
          %v2512 = vmul.f32 %v2511, %v1962
          %v2513 = vadd.f32 %v2512, 1e-05
          %v2514 = vrsqrt.pop %v2513
          %v2515 = vmul.f32 %v2514, %v2513
          %v2516 = vmul.f32 %v2515, %v2514
          %v2517 = vmul.f32 0.5, %v2516
          %v2518 = vsub.f32 1.5, %v2517
          %v2519 = vmul.f32 %v2514, %v2518
          %vm2520 = vweird.f32 %v2513
          %vm2521 = vweird.f32 %v2514
          %vm2522 = vmor %vm2520, %vm2521
          %v2523 = vsel %vm2522, %v2514, %v2519
          %v2524 = vmul.f32 %v2504, %v2523
          %v2525 = vperm.slane %v1923, 4
          %v2526 = vmul.f32 %v2524, %v2525
          %v2527 = vperm.slane %v1923, 5
          %v2528 = vadd.f32 %v2526, %v2527
          %v2529 = vmax.f32 %v2528, 0.0
          %v2530 = vld [vmem:[%s4] sm:$0xff]
          %v2531 = vld [vmem:[%s4 + $0x8] sm:$0xff]
          %v2532 = vld [vmem:[%s4 + $0x10] sm:$0xff]
          %v2533 = vld [vmem:[%s4 + $0x18] sm:$0xff]
          %v2534 = vld [vmem:[%s4 + $0x20] sm:$0xff]
          %v2535 = vld [vmem:[%s4 + $0x28] sm:$0xff]
          %v2536 = vld [vmem:[%s4 + $0x30] sm:$0xff]
          %v2537 = vld [vmem:[%s4 + $0x38] sm:$0xff]
          %v2538 = vld [vmem:[%s4 + $0x40] sm:$0xff]
          %v2539 = vld [vmem:[%s4 + $0x48] sm:$0xff]
          %v2540 = vld [vmem:[%s4 + $0x50] sm:$0xff]
          %v2541 = vld [vmem:[%s4 + $0x58] sm:$0xff]
          %v2542 = vld [vmem:[%s4 + $0x60] sm:$0xff]
          %v2543 = vld [vmem:[%s4 + $0x68] sm:$0xff]
          %v2544 = vld [vmem:[%s4 + $0x70] sm:$0xff]
          %v2545 = vld [vmem:[%s4 + $0x78] sm:$0xff]
          %2546 = vmatpush.msra.mxu0 %v2545
          %2547 = vmatpush.msra.mxu0 %v2544
          %2548 = vmatpush.msra.mxu0 %v2543
          %2549 = vmatpush.msra.mxu0 %v2542
          %2550 = vmatpush.msra.mxu0 %v2541
          %2551 = vmatpush.msra.mxu0 %v2540
          %2552 = vmatpush.msra.mxu0 %v2539
          %2553 = vmatpush.msra.mxu0 %v2538
          %2554 = vmatpush.msra.mxu0 %v2537
          %2555 = vmatpush.msra.mxu0 %v2536
          %2556 = vmatpush.msra.mxu0 %v2535
          %2557 = vmatpush.msra.mxu0 %v2534
          %2558 = vmatpush.msra.mxu0 %v2533
          %2559 = vmatpush.msra.mxu0 %v2532
          %2560 = vmatpush.msra.mxu0 %v2531
          %2561 = vmatpush.msra.mxu0 %v2530
          %2562 = vmatmul.f32.gmra.mxu0 %v2529
          %v2563 = vpop.f32.mrf.mxu0
          %v2564 = vadd.f32 0.0, %v2563
          %2565 = vdwg.mxu0
          %vm2566 = vcmask 523264
          %v2567 = vsel %vm2566, %v2564, 0.0
          %v2568 = vrot.slane %v2567, 4
          %v2569 = vadd.f32 %v2567, %v2568
          %v2570 = vrot.slane %v2569, 2
          %v2571 = vadd.f32 %v2569, %v2570
          %v2572 = vrot.slane %v2571, 1
          %v2573 = vadd.f32 %v2571, %v2572
          %v2574 = vmul.f32 %v2573, %v1962
          %v2575 = vsub.f32 %v2564, %v2574
          %v2576 = vmul.f32 %v2575, %v2575
          %v2577 = vsel %vm2566, %v2576, 0.0
          %v2578 = vrot.slane %v2577, 4
          %v2579 = vadd.f32 %v2577, %v2578
          %v2580 = vrot.slane %v2579, 2
          %v2581 = vadd.f32 %v2579, %v2580
          %v2582 = vrot.slane %v2581, 1
          %v2583 = vadd.f32 %v2581, %v2582
          %v2584 = vmul.f32 %v2583, %v1962
          %v2585 = vadd.f32 %v2584, 1e-05
          %v2586 = vrsqrt.pop %v2585
          %v2587 = vmul.f32 %v2586, %v2585
          %v2588 = vmul.f32 %v2587, %v2586
          %v2589 = vmul.f32 0.5, %v2588
          %v2590 = vsub.f32 1.5, %v2589
          %v2591 = vmul.f32 %v2586, %v2590
          %vm2592 = vweird.f32 %v2585
          %vm2593 = vweird.f32 %v2586
          %vm2594 = vmor %vm2592, %vm2593
          %v2595 = vsel %vm2594, %v2586, %v2591
          %v2596 = vmul.f32 %v2575, %v2595
          %v2597 = vperm.slane %v1923, 6
          %v2598 = vmul.f32 %v2596, %v2597
          %v2599 = vperm.slane %v1923, 7
          %v2600 = vadd.f32 %v2598, %v2599
          %v2601 = vmax.f32 %v2600, 0.0
          %v2602 = vld [vmem:[%s5] sm:$0xff]
          %v2603 = vld [vmem:[%s5 + $0x8] sm:$0xff]
          %v2604 = vld [vmem:[%s5 + $0x10] sm:$0xff]
          %v2605 = vld [vmem:[%s5 + $0x18] sm:$0xff]
          %v2606 = vld [vmem:[%s5 + $0x20] sm:$0xff]
          %v2607 = vld [vmem:[%s5 + $0x28] sm:$0xff]
          %v2608 = vld [vmem:[%s5 + $0x30] sm:$0xff]
          %v2609 = vld [vmem:[%s5 + $0x38] sm:$0xff]
          %v2611 = vsel %vm2566, %v2601, 0
          %2613 = vmatpush.msra.mxu0 0.0
          %2614 = vmatpush.msra.mxu0 0.0
          %2615 = vmatpush.msra.mxu0 0.0
          %2616 = vmatpush.msra.mxu0 0.0
          %2617 = vmatpush.msra.mxu0 0.0
          %2618 = vmatpush.msra.mxu0 0.0
          %2619 = vmatpush.msra.mxu0 0.0
          %2620 = vmatpush.msra.mxu0 0.0
          %2621 = vmatpush.msra.mxu0 %v2609
          %2622 = vmatpush.msra.mxu0 %v2608
          %2623 = vmatpush.msra.mxu0 %v2607
          %2624 = vmatpush.msra.mxu0 %v2606
          %2625 = vmatpush.msra.mxu0 %v2605
          %2626 = vmatpush.msra.mxu0 %v2604
          %2627 = vmatpush.msra.mxu0 %v2603
          %2628 = vmatpush.msra.mxu0 %v2602
          %2629 = vmatmul.f32.gmra.mxu0 %v2611
          %v2630 = vpop.f32.mrf.mxu0
          %v2631 = vadd.f32 0.0, %v2630
          %2632 = vdwg.mxu0
          %vm2633 = vcmask 261120
          %v2634 = vsel %vm2633, %v2631, 0.0
          %v2635 = vrot.slane %v2634, 4
          %v2636 = vadd.f32 %v2634, %v2635
          %v2637 = vrot.slane %v2636, 2
          %v2638 = vadd.f32 %v2636, %v2637
          %v2639 = vrot.slane %v2638, 1
          %v2640 = vadd.f32 %v2638, %v2639
          %v2641 = vmul.f32 %v2640, %v1962
          %v2642 = vsub.f32 %v2631, %v2641
          %v2643 = vmul.f32 %v2642, %v2642
          %v2644 = vsel %vm2633, %v2643, 0.0
          %v2645 = vrot.slane %v2644, 4
          %v2646 = vadd.f32 %v2644, %v2645
          %v2647 = vrot.slane %v2646, 2
          %v2648 = vadd.f32 %v2646, %v2647
          %v2649 = vrot.slane %v2648, 1
          %v2650 = vadd.f32 %v2648, %v2649
          %v2651 = vmul.f32 %v2650, %v1962
          %v2652 = vadd.f32 %v2651, 1e-05
          %v2653 = vrsqrt.pop %v2652
          %v2654 = vmul.f32 %v2653, %v2652
          %v2655 = vmul.f32 %v2654, %v2653
          %v2656 = vmul.f32 0.5, %v2655
          %v2657 = vsub.f32 1.5, %v2656
          %v2658 = vmul.f32 %v2653, %v2657
          %vm2659 = vweird.f32 %v2652
          %vm2660 = vweird.f32 %v2653
          %vm2661 = vmor %vm2659, %vm2660
          %v2662 = vsel %vm2661, %v2653, %v2658
          %v2663 = vmul.f32 %v2642, %v2662
          %v2664 = vperm.slane %v1927, 0
          %v2665 = vmul.f32 %v2663, %v2664
          %v2666 = vperm.slane %v1927, 1
          %v2667 = vadd.f32 %v2665, %v2666
          %v2668 = vmax.f32 %v2667, 0.0
          %v2669 = vld [vmem:[#allocation10] sm:$0xff]
          %v2670 = vld [vmem:[#allocation10 + $0x8] sm:$0xff]
          %v2671 = vld [vmem:[#allocation10 + $0x10] sm:$0xff]
          %v2672 = vld [vmem:[#allocation10 + $0x18] sm:$0xff]
          %v2674 = vsel %vm2633, %v2668, 0
          %2676 = vmatpush.msra.mxu0 0.0
          %2677 = vmatpush.msra.mxu0 0.0
          %2678 = vmatpush.msra.mxu0 0.0
          %2679 = vmatpush.msra.mxu0 0.0
          %2680 = vmatpush.msra.mxu0 0.0
          %2681 = vmatpush.msra.mxu0 0.0
          %2682 = vmatpush.msra.mxu0 0.0
          %2683 = vmatpush.msra.mxu0 0.0
          %2684 = vmatpush.msra.mxu0 0.0
          %2685 = vmatpush.msra.mxu0 0.0
          %2686 = vmatpush.msra.mxu0 0.0
          %2687 = vmatpush.msra.mxu0 0.0
          %2688 = vmatpush.msra.mxu0 %v2672
          %2689 = vmatpush.msra.mxu0 %v2671
          %2690 = vmatpush.msra.mxu0 %v2670
          %2691 = vmatpush.msra.mxu0 %v2669
          %2692 = vmatmul.f32.gmra.mxu0 %v2674
          %v2693 = vpop.f32.mrf.mxu0
          %v2694 = vadd.f32 0.0, %v2693
          %2695 = vdwg.mxu0
          %v2696 = vsel %vm2633, %v2694, 0.0
          %v2697 = vrot.slane %v2696, 4
          %v2698 = vadd.f32 %v2696, %v2697
          %v2699 = vrot.slane %v2698, 2
          %v2700 = vadd.f32 %v2698, %v2699
          %v2701 = vrot.slane %v2700, 1
          %v2702 = vadd.f32 %v2700, %v2701
          %v2703 = vmul.f32 %v2702, %v1962
          %v2704 = vsub.f32 %v2694, %v2703
          %v2705 = vmul.f32 %v2704, %v2704
          %v2706 = vsel %vm2633, %v2705, 0.0
          %v2707 = vrot.slane %v2706, 4
          %v2708 = vadd.f32 %v2706, %v2707
          %v2709 = vrot.slane %v2708, 2
          %v2710 = vadd.f32 %v2708, %v2709
          %v2711 = vrot.slane %v2710, 1
          %v2712 = vadd.f32 %v2710, %v2711
          %v2713 = vmul.f32 %v2712, %v1962
          %v2714 = vadd.f32 %v2713, 1e-05
          %v2715 = vrsqrt.pop %v2714
          %v2716 = vmul.f32 %v2715, %v2714
          %v2717 = vmul.f32 %v2716, %v2715
          %v2718 = vmul.f32 0.5, %v2717
          %v2719 = vsub.f32 1.5, %v2718
          %v2720 = vmul.f32 %v2715, %v2719
          %vm2721 = vweird.f32 %v2714
          %vm2722 = vweird.f32 %v2715
          %vm2723 = vmor %vm2721, %vm2722
          %v2724 = vsel %vm2723, %v2715, %v2720
          %v2725 = vmul.f32 %v2704, %v2724
          %v2726 = vperm.slane %v1927, 2
          %v2727 = vmul.f32 %v2725, %v2726
          %v2728 = vperm.slane %v1927, 3
          %v2729 = vadd.f32 %v2727, %v2728
          %v2730 = vmax.f32 %v2729, 0.0
          %v2731 = vld [vmem:[%s7] sm:$0xff]
          %v2732 = vld [vmem:[%s7 + $0x8] sm:$0xff]
          %v2733 = vld [vmem:[%s7 + $0x10] sm:$0xff]
          %v2734 = vld [vmem:[%s7 + $0x18] sm:$0xff]
          %v2735 = vperm.slane %v1927, 4
          %v2737 = vsel %vm2633, %v2730, 0
          %2739 = vmatpush.msra.mxu0 0.0
          %2740 = vmatpush.msra.mxu0 0.0
          %2741 = vmatpush.msra.mxu0 0.0
          %2742 = vmatpush.msra.mxu0 0.0
          %2743 = vmatpush.msra.mxu0 0.0
          %2744 = vmatpush.msra.mxu0 0.0
          %2745 = vmatpush.msra.mxu0 0.0
          %2746 = vmatpush.msra.mxu0 0.0
          %2747 = vmatpush.msra.mxu0 0.0
          %2748 = vmatpush.msra.mxu0 0.0
          %2749 = vmatpush.msra.mxu0 0.0
          %2750 = vmatpush.msra.mxu0 0.0
          %2751 = vmatpush.msra.mxu0 %v2734
          %2752 = vmatpush.msra.mxu0 %v2733
          %2753 = vmatpush.msra.mxu0 %v2732
          %2754 = vmatpush.msra.mxu0 %v2731
          %2755 = vmatmul.f32.gmra.mxu0 %v2737
          %v2756 = vpop.f32.mrf.mxu0
          %v2757 = vadd.f32 %v2735, %v2756
          %2758 = vdwg.mxu0
          %v2759 = vxor.u32 %v2757, 2147483648
          %v2760 = vmul.f32 %v2759, 1.442695
          %v2761 = vpow.pop %v2760
          %v2762 = vadd.f32 %v2761, 1.0
          %v2763 = vrcp.pop %v2762
          %v2764 = vmul.f32 %v2762, %v2763
          %v2765 = vsub.f32 1.0, %v2764
          %v2766 = vmul.f32 %v2763, %v2765
          %v2767 = vadd.f32 %v2763, %v2766
          %vm2768 = vweird.f32 %v2762
          %vm2769 = vweird.f32 %v2763
          %vm2770 = vmor %vm2768, %vm2769
          %v2771 = vsel %vm2770, %v2763, %v2767
          %v2772 = vand.u32 2147483647, %v2762
          %vm2773 = vcmp.eq.f32.partialorder %v2772, 8.507059e+37
          %v2774 = vand.u32 %v2762, 2147483648
          %v2775 = vor.u32 1.1754944e-38, %v2774
          %v2776 = vsel %vm2773, %v2775, %v2771
          %v2777 = vmul.f32 1.0, %v2776
          %vm2778 = vcmask 15360
          %2779 = vst.msk [vmem:[%s9] sm:$0xff] %vm2778, %v2777
        $region88: #{tpu_custom_call.1} parent=55 // pred_fallthru
          _
        // Predicated region
        $region89: #{tpu_custom_call.1} parent=55 // pred_check
          %p2780 = pneg %p240
        $region90: #{tpu_custom_call.1} parent=55 // pred_check_branch
          %2782 = sbr.rel (%p2780) target = $region92
        $region91: #{tpu_custom_call.1} parent=55 // pred_region
          _
        $region92: #{tpu_custom_call.1} parent=55 // pred_fallthru
          _
        // Predicated region
        $region93: #{tpu_custom_call.1} parent=55 // pred_check
          %p2783 = pneg %p240
        $region94: #{tpu_custom_call.1} parent=55 // pred_check_branch
          %2785 = sbr.rel (%p2783) target = $region96
        $region95: #{tpu_custom_call.1} parent=55 // pred_region
          _
        $region96: #{tpu_custom_call.1} parent=55 // pred_fallthru
          _
      $region56: #{tpu_custom_call.1} parent=5 // pred_fallthru
        _
      %p2786 = scmp.le.s32.totalorder 2, %s23
      // Predicated region
      $region97: #{tpu_custom_call.1} parent=5 // pred_check
        %p2787 = pneg %p2786
      $region98: #{tpu_custom_call.1} parent=5 // pred_check_branch
        %2789 = sbr.rel (%p2787) target = $region100
      $region99: #{tpu_custom_call.1} parent=5 // pred_region
        %s2790 = ssub.s32 %s23, 2
      $region100: #{tpu_custom_call.1} parent=5 // pred_fallthru
        _
    $region6: #{tpu_custom_call.1} parent=1 // loop_footer
      %s27 = sadd.s32 1, %s23
    $region7: #{tpu_custom_call.1} parent=1 // loop_footer_branch
      %22 = sbr.rel target = $region3
    $region8: #{tpu_custom_call.1} parent=1 // loop_exit
      _
    %2791 = vsyncpa [#allocation4], 1
    %s2792 = scalar_lea.sflag [#allocation4], 1
    %2793 = vsyncpa %s2792, 1
    %2794 = vsyncpa [#allocation6], 1
    %s2795 = scalar_lea.sflag [#allocation6], 1
    %2796 = vsyncpa %s2795, 1
    %2797 = vsyncpa [#allocation9], 1
    %2798 = vsyncpa [#allocation12], 1

</llo_original>
